<compile_context>
chip_gen: v7x
topology: tpu7x:2x2x1
jax: 0.10.0
libtpu: 0.0.40
codegen_flags: <defaults>
</compile_context>

<pallas_src>
import functools

import jax
import jax.numpy as jnp
import numpy as np
from jax import lax
from jax.experimental import pallas as pl
from jax.experimental.pallas import tpu as pltpu

SELU_ALPHA = 1.6732632423543772
SELU_SCALE = 1.0507009873554805


def _selu(y):
    neg = SELU_ALPHA * (jnp.exp(jnp.minimum(y, 0.0)) - 1.0)
    return SELU_SCALE * jnp.where(y > 0.0, y, neg)


# ---------------------------------------------------------------------------
# Kernel 1: fused 3x3 conv (9 shifted in-VMEM taps -> MXU matmuls) + bias + SELU
#   x_ref : (1, Cin, Mext)   Mext = Hp*Wp + 2*(Wp+1)   (flattened padded image + halo)
#   w_ref : (9, Cout, Cin)   tap-major weights (kh*3 + kw)
#   b_ref : (Cout, 1)
#   o_ref : (1, Cout, Mi)    Mi = Hp*Wp  (lane-dense: spatial on lanes)
# ---------------------------------------------------------------------------
def _conv3x3_selu_kernel(x_ref, w_ref, b_ref, o_ref, *, wp, m_out):
    cout = o_ref.shape[1]
    acc = jnp.zeros((cout, m_out), dtype=jnp.float32)
    for kh in range(3):
        for kw in range(3):
            d = kh * wp + kw                       # static shift on the flat spatial axis
            xs = x_ref[0, :, d:d + m_out]          # (Cin, Mi) shifted tap, built in VMEM
            acc = acc + jnp.dot(w_ref[3 * kh + kw], xs,
                                preferred_element_type=jnp.float32)
    y = acc + b_ref[...]
    o_ref[0] = _selu(y)


# ---------------------------------------------------------------------------
# Kernel 2: fused 1x1 conv (matmul) + bias + SELU (bottleneck)
#   x_ref : (1, Cin, M)   w_ref : (Cout, Cin)   b_ref : (Cout, 1)   o_ref : (1, Cout, M)
# ---------------------------------------------------------------------------
def _conv1x1_selu_kernel(x_ref, w_ref, b_ref, o_ref):
    y = jnp.dot(w_ref[...], x_ref[0], preferred_element_type=jnp.float32) + b_ref[...]
    o_ref[0] = _selu(y)


def _to_flat_ext(x_nchw):
    """(N,C,H,W) -> (N, C, Hp*Wp + 2*(Wp+1)): 1-pixel spatial zero pad, flatten, halo pad."""
    N, C, H, W = x_nchw.shape
    Hp, Wp = H + 2, W + 2
    xp = jnp.pad(x_nchw, ((0, 0), (0, 0), (1, 1), (1, 1))).reshape(N, C, Hp * Wp)
    return jnp.pad(xp, ((0, 0), (0, 0), (Wp + 1, Wp + 1)))


def conv3x3_selu(x_nchw, w, b):
    """SELU(Conv2d(k=3, pad=1)(x) + b) via one fused Pallas kernel per call."""
    N, Cin, H, W = x_nchw.shape
    Cout = w.shape[0]
    Hp, Wp = H + 2, W + 2
    Mi = Hp * Wp
    Mext = Mi + 2 * (Wp + 1)

    x_ext = _to_flat_ext(x_nchw)                                     # (N, Cin, Mext)
    w_taps = jnp.transpose(w, (2, 3, 0, 1)).reshape(9, Cout, Cin)    # (9, Cout, Cin)
    b_col = b.reshape(Cout, 1)

    kernel = functools.partial(_conv3x3_selu_kernel, wp=Wp, m_out=Mi)
    out = pl.pallas_call(
        kernel,
        out_shape=jax.ShapeDtypeStruct((N, Cout, Mi), jnp.float32),
        grid_spec=pltpu.PrefetchScalarGridSpec(
            num_scalar_prefetch=0,
            grid=(N,),                                               # one whole image per step
            in_specs=[
                pl.BlockSpec((1, Cin, Mext), lambda n: (n, 0, 0)),
                pl.BlockSpec((9, Cout, Cin), lambda n: (0, 0, 0)),
                pl.BlockSpec((Cout, 1), lambda n: (0, 0)),
            ],
            out_specs=pl.BlockSpec((1, Cout, Mi), lambda n: (n, 0, 0)),
        ),
        compiler_params=pltpu.CompilerParams(
            dimension_semantics=("parallel",),
            vmem_limit_bytes=32 * 1024 * 1024,
        ),
        cost_estimate=pl.CostEstimate(
            flops=int(2 * 9 * N * Mi * Cin * Cout),
            transcendentals=int(N * Mi * Cout),
            bytes_accessed=int(4 * (N * Cin * Mext + 9 * Cout * Cin + Cout + N * Cout * Mi)),
        ),
    )(x_ext, w_taps, b_col)

    # Drop the 1-pixel conv-padding border (garbage rows/cols from the flattened layout).
    return out.reshape(N, Cout, Hp, Wp)[:, :, 1:H + 1, 1:W + 1]


def conv1x1_selu(x_nchw, w, b):
    """SELU(Conv2d(k=1)(x) + b) as a lane-dense fused matmul kernel."""
    N, Cin, H, W = x_nchw.shape
    Cout = w.shape[0]
    M = H * W
    x_flat = x_nchw.reshape(N, Cin, M)
    w_mat = w.reshape(Cout, Cin)
    b_col = b.reshape(Cout, 1)

    out = pl.pallas_call(
        _conv1x1_selu_kernel,
        out_shape=jax.ShapeDtypeStruct((N, Cout, M), jnp.float32),
        grid_spec=pltpu.PrefetchScalarGridSpec(
            num_scalar_prefetch=0,
            grid=(N,),
            in_specs=[
                pl.BlockSpec((1, Cin, M), lambda n: (n, 0, 0)),
                pl.BlockSpec((Cout, Cin), lambda n: (0, 0)),
                pl.BlockSpec((Cout, 1), lambda n: (0, 0)),
            ],
            out_specs=pl.BlockSpec((1, Cout, M), lambda n: (n, 0, 0)),
        ),
        compiler_params=pltpu.CompilerParams(
            dimension_semantics=("parallel",),
            vmem_limit_bytes=32 * 1024 * 1024,
        ),
    )(x_flat, w_mat, b_col)
    return out.reshape(N, Cout, H, W)


@jax.jit
def sadenseblock_forward(x, dense_params, bottleneck_params):
    """Pallas implementation of SADenseBlock.forward (is_SELU=True, is_BN=False)."""
    feats = x
    for (w, b) in dense_params:
        y = conv3x3_selu(feats, w, b)
        # TODO(synk): CBAM(growthRate, 2, is_SELU=True, is_BN=False) is referenced by the spec
        # but its class definition is not provided in Burst_Model.py; applied as identity here.
        feats = jnp.concatenate([feats, y], axis=1)
    wb, bb = bottleneck_params
    return conv1x1_selu(feats, wb, bb)


# ---------------------------------------------------------------------------
# Pure-JAX reference (same CBAM-as-identity assumption) for correctness checking
# ---------------------------------------------------------------------------
def _reference(x, dense_params, bottleneck_params):
    feats = x
    for (w, b) in dense_params:
        y = lax.conv_general_dilated(feats, w, (1, 1), ((1, 1), (1, 1)),
                                     dimension_numbers=("NCHW", "OIHW", "NCHW"))
        y = _selu(y + b.reshape(1, -1, 1, 1))
        feats = jnp.concatenate([feats, y], axis=1)
    wb, bb = bottleneck_params
    y = lax.conv_general_dilated(feats, wb, (1, 1), ((0, 0), (0, 0)),
                                 dimension_numbers=("NCHW", "OIHW", "NCHW"))
    return _selu(y + bb.reshape(1, -1, 1, 1))


if __name__ == "__main__":
    key = jax.random.PRNGKey(0)
    N, in_size, H, W = 2, 4, 16, 16
    nDenselayer, growthRate = 3, 4

    keys = jax.random.split(key, 2 * nDenselayer + 3)
    ki = 0
    dense_params = []
    c = in_size
    for _ in range(nDenselayer):
        fan_in = c * 9
        w = jax.random.normal(keys[ki], (growthRate, c, 3, 3), jnp.float32) / np.sqrt(fan_in)
        ki += 1
        b = 0.1 * jax.random.normal(keys[ki], (growthRate,), jnp.float32)
        ki += 1
        dense_params.append((w, b))
        c += growthRate
    wb = jax.random.normal(keys[ki], (in_size, c, 1, 1), jnp.float32) / np.sqrt(c)
    ki += 1
    bb = 0.1 * jax.random.normal(keys[ki], (in_size,), jnp.float32)
    ki += 1
    x = jax.random.normal(keys[ki], (N, in_size, H, W), jnp.float32)

    dense_params = tuple(dense_params)
    bottleneck_params = (wb, bb)

    out = sadenseblock_forward(x, dense_params, bottleneck_params)
    out = jax.block_until_ready(out)

    ref = _reference(x, dense_params, bottleneck_params)
    np.testing.assert_allclose(np.asarray(out), np.asarray(ref), rtol=5e-4, atol=5e-4)
    assert out.shape == (N, in_size, H, W)

    print("KERNEL_OK")
</pallas_src>

<mosaic_0001>
module attributes {stable_mosaic.version = 11 : i64} {
  func.func @_conv3x3_selu_kernel(%arg0: i32, %arg1: memref<1x4x362xf32, #tpu.memory_space<vmem>>, %arg2: memref<9x4x4xf32, #tpu.memory_space<vmem>>, %arg3: memref<4x1xf32, #tpu.memory_space<vmem>>, %arg4: memref<1x4x324xf32, #tpu.memory_space<vmem>>) attributes {dimension_semantics = [#tpu.dimension_semantics<parallel>], iteration_bounds = array<i64: 2>, scalar_prefetch = 0 : i64, scratch_operands = 0 : i64, tpu.core_type = #tpu.core_type<tc>, window_params = [{transform_indices = @transform_0, window_bounds = array<i64: 1, 4, 362>}, {pipeline_mode = #tpu.pipeline_mode<synchronous>, transform_indices = @transform_1, window_bounds = array<i64: 9, 4, 4>}, {pipeline_mode = #tpu.pipeline_mode<synchronous>, transform_indices = @transform_2, window_bounds = array<i64: 4, 1>}, {transform_indices = @transform_3, window_bounds = array<i64: 1, 4, 324>}]} {
    %cst = arith.constant 0.000000e+00 : f32
    %0 = vector.broadcast %cst : f32 to vector<4x324xf32>
    %c0 = arith.constant 0 : index
    %c0_0 = arith.constant 0 : index
    %c0_1 = arith.constant 0 : index
    %1 = vector.load %arg1[%c0, %c0_0, %c0_1] : memref<1x4x362xf32, #tpu.memory_space<vmem>>, vector<1x4x324xf32>
    %2 = vector.shape_cast %1 : vector<1x4x324xf32> to vector<4x324xf32>
    %c0_2 = arith.constant 0 : index
    %c0_3 = arith.constant 0 : index
    %c0_4 = arith.constant 0 : index
    %3 = vector.load %arg2[%c0_2, %c0_3, %c0_4] : memref<9x4x4xf32, #tpu.memory_space<vmem>>, vector<1x4x4xf32>
    %4 = vector.shape_cast %3 : vector<1x4x4xf32> to vector<4x4xf32>
    %cst_5 = arith.constant dense<0.000000e+00> : vector<4x324xf32>
    %5 = tpu.matmul %4, %2, %cst_5 {dimension_numbers = #tpu.dot_dimension_numbers<[1], [0], [0], [1], [0, 0, 1, 1], [], []>} : vector<4x4xf32>, vector<4x324xf32>, vector<4x324xf32> -> vector<4x324xf32>
    %6 = arith.addf %0, %5 : vector<4x324xf32>
    %c0_6 = arith.constant 0 : index
    %c0_7 = arith.constant 0 : index
    %c1 = arith.constant 1 : index
    %7 = vector.load %arg1[%c0_6, %c0_7, %c1] : memref<1x4x362xf32, #tpu.memory_space<vmem>>, vector<1x4x324xf32>
    %8 = vector.shape_cast %7 : vector<1x4x324xf32> to vector<4x324xf32>
    %c1_8 = arith.constant 1 : index
    %c0_9 = arith.constant 0 : index
    %c0_10 = arith.constant 0 : index
    %9 = vector.load %arg2[%c1_8, %c0_9, %c0_10] : memref<9x4x4xf32, #tpu.memory_space<vmem>>, vector<1x4x4xf32>
    %10 = vector.shape_cast %9 : vector<1x4x4xf32> to vector<4x4xf32>
    %cst_11 = arith.constant dense<0.000000e+00> : vector<4x324xf32>
    %11 = tpu.matmul %10, %8, %cst_11 {dimension_numbers = #tpu.dot_dimension_numbers<[1], [0], [0], [1], [0, 0, 1, 1], [], []>} : vector<4x4xf32>, vector<4x324xf32>, vector<4x324xf32> -> vector<4x324xf32>
    %12 = arith.addf %6, %11 : vector<4x324xf32>
    %c0_12 = arith.constant 0 : index
    %c0_13 = arith.constant 0 : index
    %c2 = arith.constant 2 : index
    %13 = vector.load %arg1[%c0_12, %c0_13, %c2] : memref<1x4x362xf32, #tpu.memory_space<vmem>>, vector<1x4x324xf32>
    %14 = vector.shape_cast %13 : vector<1x4x324xf32> to vector<4x324xf32>
    %c2_14 = arith.constant 2 : index
    %c0_15 = arith.constant 0 : index
    %c0_16 = arith.constant 0 : index
    %15 = vector.load %arg2[%c2_14, %c0_15, %c0_16] : memref<9x4x4xf32, #tpu.memory_space<vmem>>, vector<1x4x4xf32>
    %16 = vector.shape_cast %15 : vector<1x4x4xf32> to vector<4x4xf32>
    %cst_17 = arith.constant dense<0.000000e+00> : vector<4x324xf32>
    %17 = tpu.matmul %16, %14, %cst_17 {dimension_numbers = #tpu.dot_dimension_numbers<[1], [0], [0], [1], [0, 0, 1, 1], [], []>} : vector<4x4xf32>, vector<4x324xf32>, vector<4x324xf32> -> vector<4x324xf32>
    %18 = arith.addf %12, %17 : vector<4x324xf32>
    %c0_18 = arith.constant 0 : index
    %c0_19 = arith.constant 0 : index
    %c18 = arith.constant 18 : index
    %19 = vector.load %arg1[%c0_18, %c0_19, %c18] : memref<1x4x362xf32, #tpu.memory_space<vmem>>, vector<1x4x324xf32>
    %20 = vector.shape_cast %19 : vector<1x4x324xf32> to vector<4x324xf32>
    %c3 = arith.constant 3 : index
    %c0_20 = arith.constant 0 : index
    %c0_21 = arith.constant 0 : index
    %21 = vector.load %arg2[%c3, %c0_20, %c0_21] : memref<9x4x4xf32, #tpu.memory_space<vmem>>, vector<1x4x4xf32>
    %22 = vector.shape_cast %21 : vector<1x4x4xf32> to vector<4x4xf32>
    %cst_22 = arith.constant dense<0.000000e+00> : vector<4x324xf32>
    %23 = tpu.matmul %22, %20, %cst_22 {dimension_numbers = #tpu.dot_dimension_numbers<[1], [0], [0], [1], [0, 0, 1, 1], [], []>} : vector<4x4xf32>, vector<4x324xf32>, vector<4x324xf32> -> vector<4x324xf32>
    %24 = arith.addf %18, %23 : vector<4x324xf32>
    %c0_23 = arith.constant 0 : index
    %c0_24 = arith.constant 0 : index
    %c19 = arith.constant 19 : index
    %25 = vector.load %arg1[%c0_23, %c0_24, %c19] : memref<1x4x362xf32, #tpu.memory_space<vmem>>, vector<1x4x324xf32>
    %26 = vector.shape_cast %25 : vector<1x4x324xf32> to vector<4x324xf32>
    %c4 = arith.constant 4 : index
    %c0_25 = arith.constant 0 : index
    %c0_26 = arith.constant 0 : index
    %27 = vector.load %arg2[%c4, %c0_25, %c0_26] : memref<9x4x4xf32, #tpu.memory_space<vmem>>, vector<1x4x4xf32>
    %28 = vector.shape_cast %27 : vector<1x4x4xf32> to vector<4x4xf32>
    %cst_27 = arith.constant dense<0.000000e+00> : vector<4x324xf32>
    %29 = tpu.matmul %28, %26, %cst_27 {dimension_numbers = #tpu.dot_dimension_numbers<[1], [0], [0], [1], [0, 0, 1, 1], [], []>} : vector<4x4xf32>, vector<4x324xf32>, vector<4x324xf32> -> vector<4x324xf32>
    %30 = arith.addf %24, %29 : vector<4x324xf32>
    %c0_28 = arith.constant 0 : index
    %c0_29 = arith.constant 0 : index
    %c20 = arith.constant 20 : index
    %31 = vector.load %arg1[%c0_28, %c0_29, %c20] : memref<1x4x362xf32, #tpu.memory_space<vmem>>, vector<1x4x324xf32>
    %32 = vector.shape_cast %31 : vector<1x4x324xf32> to vector<4x324xf32>
    %c5 = arith.constant 5 : index
    %c0_30 = arith.constant 0 : index
    %c0_31 = arith.constant 0 : index
    %33 = vector.load %arg2[%c5, %c0_30, %c0_31] : memref<9x4x4xf32, #tpu.memory_space<vmem>>, vector<1x4x4xf32>
    %34 = vector.shape_cast %33 : vector<1x4x4xf32> to vector<4x4xf32>
    %cst_32 = arith.constant dense<0.000000e+00> : vector<4x324xf32>
    %35 = tpu.matmul %34, %32, %cst_32 {dimension_numbers = #tpu.dot_dimension_numbers<[1], [0], [0], [1], [0, 0, 1, 1], [], []>} : vector<4x4xf32>, vector<4x324xf32>, vector<4x324xf32> -> vector<4x324xf32>
    %36 = arith.addf %30, %35 : vector<4x324xf32>
    %c0_33 = arith.constant 0 : index
    %c0_34 = arith.constant 0 : index
    %c36 = arith.constant 36 : index
    %37 = vector.load %arg1[%c0_33, %c0_34, %c36] : memref<1x4x362xf32, #tpu.memory_space<vmem>>, vector<1x4x324xf32>
    %38 = vector.shape_cast %37 : vector<1x4x324xf32> to vector<4x324xf32>
    %c6 = arith.constant 6 : index
    %c0_35 = arith.constant 0 : index
    %c0_36 = arith.constant 0 : index
    %39 = vector.load %arg2[%c6, %c0_35, %c0_36] : memref<9x4x4xf32, #tpu.memory_space<vmem>>, vector<1x4x4xf32>
    %40 = vector.shape_cast %39 : vector<1x4x4xf32> to vector<4x4xf32>
    %cst_37 = arith.constant dense<0.000000e+00> : vector<4x324xf32>
    %41 = tpu.matmul %40, %38, %cst_37 {dimension_numbers = #tpu.dot_dimension_numbers<[1], [0], [0], [1], [0, 0, 1, 1], [], []>} : vector<4x4xf32>, vector<4x324xf32>, vector<4x324xf32> -> vector<4x324xf32>
    %42 = arith.addf %36, %41 : vector<4x324xf32>
    %c0_38 = arith.constant 0 : index
    %c0_39 = arith.constant 0 : index
    %c37 = arith.constant 37 : index
    %43 = vector.load %arg1[%c0_38, %c0_39, %c37] : memref<1x4x362xf32, #tpu.memory_space<vmem>>, vector<1x4x324xf32>
    %44 = vector.shape_cast %43 : vector<1x4x324xf32> to vector<4x324xf32>
    %c7 = arith.constant 7 : index
    %c0_40 = arith.constant 0 : index
    %c0_41 = arith.constant 0 : index
    %45 = vector.load %arg2[%c7, %c0_40, %c0_41] : memref<9x4x4xf32, #tpu.memory_space<vmem>>, vector<1x4x4xf32>
    %46 = vector.shape_cast %45 : vector<1x4x4xf32> to vector<4x4xf32>
    %cst_42 = arith.constant dense<0.000000e+00> : vector<4x324xf32>
    %47 = tpu.matmul %46, %44, %cst_42 {dimension_numbers = #tpu.dot_dimension_numbers<[1], [0], [0], [1], [0, 0, 1, 1], [], []>} : vector<4x4xf32>, vector<4x324xf32>, vector<4x324xf32> -> vector<4x324xf32>
    %48 = arith.addf %42, %47 : vector<4x324xf32>
    %c0_43 = arith.constant 0 : index
    %c0_44 = arith.constant 0 : index
    %c38 = arith.constant 38 : index
    %49 = vector.load %arg1[%c0_43, %c0_44, %c38] : memref<1x4x362xf32, #tpu.memory_space<vmem>>, vector<1x4x324xf32>
    %50 = vector.shape_cast %49 : vector<1x4x324xf32> to vector<4x324xf32>
    %c8 = arith.constant 8 : index
    %c0_45 = arith.constant 0 : index
    %c0_46 = arith.constant 0 : index
    %51 = vector.load %arg2[%c8, %c0_45, %c0_46] : memref<9x4x4xf32, #tpu.memory_space<vmem>>, vector<1x4x4xf32>
    %52 = vector.shape_cast %51 : vector<1x4x4xf32> to vector<4x4xf32>
    %cst_47 = arith.constant dense<0.000000e+00> : vector<4x324xf32>
    %53 = tpu.matmul %52, %50, %cst_47 {dimension_numbers = #tpu.dot_dimension_numbers<[1], [0], [0], [1], [0, 0, 1, 1], [], []>} : vector<4x4xf32>, vector<4x324xf32>, vector<4x324xf32> -> vector<4x324xf32>
    %54 = arith.addf %48, %53 : vector<4x324xf32>
    %c0_48 = arith.constant 0 : index
    %c0_49 = arith.constant 0 : index
    %55 = vector.load %arg3[%c0_48, %c0_49] : memref<4x1xf32, #tpu.memory_space<vmem>>, vector<4x1xf32>
    %56 = vector.broadcast %55 : vector<4x1xf32> to vector<4x324xf32>
    %57 = arith.addf %54, %56 : vector<4x324xf32>
    %cst_50 = arith.constant 0.000000e+00 : f32
    %58 = vector.broadcast %cst_50 : f32 to vector<4x324xf32>
    %59 = arith.minimumf %57, %58 : vector<4x324xf32>
    %60 = math.exp %59 : vector<4x324xf32>
    %cst_51 = arith.constant 1.000000e+00 : f32
    %61 = vector.broadcast %cst_51 : f32 to vector<4x324xf32>
    %62 = arith.subf %60, %61 : vector<4x324xf32>
    %cst_52 = arith.constant 1.67326319 : f32
    %63 = vector.broadcast %cst_52 : f32 to vector<4x324xf32>
    %64 = arith.mulf %63, %62 : vector<4x324xf32>
    %cst_53 = arith.constant 0.000000e+00 : f32
    %65 = vector.broadcast %cst_53 : f32 to vector<4x324xf32>
    %66 = arith.cmpf ogt, %57, %65 : vector<4x324xf32>
    %67 = arith.select %66, %57, %64 : vector<4x324xi1>, vector<4x324xf32>
    %cst_54 = arith.constant 1.05070102 : f32
    %68 = vector.broadcast %cst_54 : f32 to vector<4x324xf32>
    %69 = arith.mulf %68, %67 : vector<4x324xf32>
    %c0_55 = arith.constant 0 : index
    %c0_56 = arith.constant 0 : index
    %c0_57 = arith.constant 0 : index
    %70 = vector.load %arg4[%c0_55, %c0_56, %c0_57] : memref<1x4x324xf32, #tpu.memory_space<vmem>>, vector<1x4x324xf32>
    %71 = vector.shape_cast %70 : vector<1x4x324xf32> to vector<4x324xf32>
    %72 = vector.shape_cast %69 : vector<4x324xf32> to vector<1x4x324xf32>
    tpu.vector_store %arg4[%c0_55, %c0_56, %c0_57], %72 {strides = array<i32>} : memref<1x4x324xf32, #tpu.memory_space<vmem>>, vector<1x4x324xf32>,
    return
  }
  func.func @transform_0(%arg0: i32) -> (i32, i32, i32) {
    %c0_i32 = arith.constant 0 : i32
    %c0_i32_0 = arith.constant 0 : i32
    %c0_i32_1 = arith.constant 0 : i32
    return %arg0, %c0_i32, %c0_i32_0 : i32, i32, i32
  }
  func.func @transform_1(%arg0: i32) -> (i32, i32, i32) {
    %c0_i32 = arith.constant 0 : i32
    %c0_i32_0 = arith.constant 0 : i32
    %c0_i32_1 = arith.constant 0 : i32
    %c0_i32_2 = arith.constant 0 : i32
    return %c0_i32, %c0_i32_0, %c0_i32_1 : i32, i32, i32
  }
  func.func @transform_2(%arg0: i32) -> (i32, i32) {
    %c0_i32 = arith.constant 0 : i32
    %c0_i32_0 = arith.constant 0 : i32
    %c0_i32_1 = arith.constant 0 : i32
    return %c0_i32, %c0_i32_0 : i32, i32
  }
  func.func @transform_3(%arg0: i32) -> (i32, i32, i32) {
    %c0_i32 = arith.constant 0 : i32
    %c0_i32_0 = arith.constant 0 : i32
    %c0_i32_1 = arith.constant 0 : i32
    return %arg0, %c0_i32, %c0_i32_0 : i32, i32, i32
  }
}

module attributes {stable_mosaic.version = 11 : i64} {
  func.func @_conv3x3_selu_kernel(%arg0: i32, %arg1: memref<1x8x362xf32, #tpu.memory_space<vmem>>, %arg2: memref<9x4x8xf32, #tpu.memory_space<vmem>>, %arg3: memref<4x1xf32, #tpu.memory_space<vmem>>, %arg4: memref<1x4x324xf32, #tpu.memory_space<vmem>>) attributes {dimension_semantics = [#tpu.dimension_semantics<parallel>], iteration_bounds = array<i64: 2>, scalar_prefetch = 0 : i64, scratch_operands = 0 : i64, tpu.core_type = #tpu.core_type<tc>, window_params = [{transform_indices = @transform_0, window_bounds = array<i64: 1, 8, 362>}, {pipeline_mode = #tpu.pipeline_mode<synchronous>, transform_indices = @transform_1, window_bounds = array<i64: 9, 4, 8>}, {pipeline_mode = #tpu.pipeline_mode<synchronous>, transform_indices = @transform_2, window_bounds = array<i64: 4, 1>}, {transform_indices = @transform_3, window_bounds = array<i64: 1, 4, 324>}]} {
    %cst = arith.constant 0.000000e+00 : f32
    %0 = vector.broadcast %cst : f32 to vector<4x324xf32>
    %c0 = arith.constant 0 : index
    %c0_0 = arith.constant 0 : index
    %c0_1 = arith.constant 0 : index
    %1 = vector.load %arg1[%c0, %c0_0, %c0_1] : memref<1x8x362xf32, #tpu.memory_space<vmem>>, vector<1x8x324xf32>
    %2 = vector.shape_cast %1 : vector<1x8x324xf32> to vector<8x324xf32>
    %c0_2 = arith.constant 0 : index
    %c0_3 = arith.constant 0 : index
    %c0_4 = arith.constant 0 : index
    %3 = vector.load %arg2[%c0_2, %c0_3, %c0_4] : memref<9x4x8xf32, #tpu.memory_space<vmem>>, vector<1x4x8xf32>
    %4 = vector.shape_cast %3 : vector<1x4x8xf32> to vector<4x8xf32>
    %cst_5 = arith.constant dense<0.000000e+00> : vector<4x324xf32>
    %5 = tpu.matmul %4, %2, %cst_5 {dimension_numbers = #tpu.dot_dimension_numbers<[1], [0], [0], [1], [0, 0, 1, 1], [], []>} : vector<4x8xf32>, vector<8x324xf32>, vector<4x324xf32> -> vector<4x324xf32>
    %6 = arith.addf %0, %5 : vector<4x324xf32>
    %c0_6 = arith.constant 0 : index
    %c0_7 = arith.constant 0 : index
    %c1 = arith.constant 1 : index
    %7 = vector.load %arg1[%c0_6, %c0_7, %c1] : memref<1x8x362xf32, #tpu.memory_space<vmem>>, vector<1x8x324xf32>
    %8 = vector.shape_cast %7 : vector<1x8x324xf32> to vector<8x324xf32>
    %c1_8 = arith.constant 1 : index
    %c0_9 = arith.constant 0 : index
    %c0_10 = arith.constant 0 : index
    %9 = vector.load %arg2[%c1_8, %c0_9, %c0_10] : memref<9x4x8xf32, #tpu.memory_space<vmem>>, vector<1x4x8xf32>
    %10 = vector.shape_cast %9 : vector<1x4x8xf32> to vector<4x8xf32>
    %cst_11 = arith.constant dense<0.000000e+00> : vector<4x324xf32>
    %11 = tpu.matmul %10, %8, %cst_11 {dimension_numbers = #tpu.dot_dimension_numbers<[1], [0], [0], [1], [0, 0, 1, 1], [], []>} : vector<4x8xf32>, vector<8x324xf32>, vector<4x324xf32> -> vector<4x324xf32>
    %12 = arith.addf %6, %11 : vector<4x324xf32>
    %c0_12 = arith.constant 0 : index
    %c0_13 = arith.constant 0 : index
    %c2 = arith.constant 2 : index
    %13 = vector.load %arg1[%c0_12, %c0_13, %c2] : memref<1x8x362xf32, #tpu.memory_space<vmem>>, vector<1x8x324xf32>
    %14 = vector.shape_cast %13 : vector<1x8x324xf32> to vector<8x324xf32>
    %c2_14 = arith.constant 2 : index
    %c0_15 = arith.constant 0 : index
    %c0_16 = arith.constant 0 : index
    %15 = vector.load %arg2[%c2_14, %c0_15, %c0_16] : memref<9x4x8xf32, #tpu.memory_space<vmem>>, vector<1x4x8xf32>
    %16 = vector.shape_cast %15 : vector<1x4x8xf32> to vector<4x8xf32>
    %cst_17 = arith.constant dense<0.000000e+00> : vector<4x324xf32>
    %17 = tpu.matmul %16, %14, %cst_17 {dimension_numbers = #tpu.dot_dimension_numbers<[1], [0], [0], [1], [0, 0, 1, 1], [], []>} : vector<4x8xf32>, vector<8x324xf32>, vector<4x324xf32> -> vector<4x324xf32>
    %18 = arith.addf %12, %17 : vector<4x324xf32>
    %c0_18 = arith.constant 0 : index
    %c0_19 = arith.constant 0 : index
    %c18 = arith.constant 18 : index
    %19 = vector.load %arg1[%c0_18, %c0_19, %c18] : memref<1x8x362xf32, #tpu.memory_space<vmem>>, vector<1x8x324xf32>
    %20 = vector.shape_cast %19 : vector<1x8x324xf32> to vector<8x324xf32>
    %c3 = arith.constant 3 : index
    %c0_20 = arith.constant 0 : index
    %c0_21 = arith.constant 0 : index
    %21 = vector.load %arg2[%c3, %c0_20, %c0_21] : memref<9x4x8xf32, #tpu.memory_space<vmem>>, vector<1x4x8xf32>
    %22 = vector.shape_cast %21 : vector<1x4x8xf32> to vector<4x8xf32>
    %cst_22 = arith.constant dense<0.000000e+00> : vector<4x324xf32>
    %23 = tpu.matmul %22, %20, %cst_22 {dimension_numbers = #tpu.dot_dimension_numbers<[1], [0], [0], [1], [0, 0, 1, 1], [], []>} : vector<4x8xf32>, vector<8x324xf32>, vector<4x324xf32> -> vector<4x324xf32>
    %24 = arith.addf %18, %23 : vector<4x324xf32>
    %c0_23 = arith.constant 0 : index
    %c0_24 = arith.constant 0 : index
    %c19 = arith.constant 19 : index
    %25 = vector.load %arg1[%c0_23, %c0_24, %c19] : memref<1x8x362xf32, #tpu.memory_space<vmem>>, vector<1x8x324xf32>
    %26 = vector.shape_cast %25 : vector<1x8x324xf32> to vector<8x324xf32>
    %c4 = arith.constant 4 : index
    %c0_25 = arith.constant 0 : index
    %c0_26 = arith.constant 0 : index
    %27 = vector.load %arg2[%c4, %c0_25, %c0_26] : memref<9x4x8xf32, #tpu.memory_space<vmem>>, vector<1x4x8xf32>
    %28 = vector.shape_cast %27 : vector<1x4x8xf32> to vector<4x8xf32>
    %cst_27 = arith.constant dense<0.000000e+00> : vector<4x324xf32>
    %29 = tpu.matmul %28, %26, %cst_27 {dimension_numbers = #tpu.dot_dimension_numbers<[1], [0], [0], [1], [0, 0, 1, 1], [], []>} : vector<4x8xf32>, vector<8x324xf32>, vector<4x324xf32> -> vector<4x324xf32>
    %30 = arith.addf %24, %29 : vector<4x324xf32>
    %c0_28 = arith.constant 0 : index
    %c0_29 = arith.constant 0 : index
    %c20 = arith.constant 20 : index
    %31 = vector.load %arg1[%c0_28, %c0_29, %c20] : memref<1x8x362xf32, #tpu.memory_space<vmem>>, vector<1x8x324xf32>
    %32 = vector.shape_cast %31 : vector<1x8x324xf32> to vector<8x324xf32>
    %c5 = arith.constant 5 : index
    %c0_30 = arith.constant 0 : index
    %c0_31 = arith.constant 0 : index
    %33 = vector.load %arg2[%c5, %c0_30, %c0_31] : memref<9x4x8xf32, #tpu.memory_space<vmem>>, vector<1x4x8xf32>
    %34 = vector.shape_cast %33 : vector<1x4x8xf32> to vector<4x8xf32>
    %cst_32 = arith.constant dense<0.000000e+00> : vector<4x324xf32>
    %35 = tpu.matmul %34, %32, %cst_32 {dimension_numbers = #tpu.dot_dimension_numbers<[1], [0], [0], [1], [0, 0, 1, 1], [], []>} : vector<4x8xf32>, vector<8x324xf32>, vector<4x324xf32> -> vector<4x324xf32>
    %36 = arith.addf %30, %35 : vector<4x324xf32>
    %c0_33 = arith.constant 0 : index
    %c0_34 = arith.constant 0 : index
    %c36 = arith.constant 36 : index
    %37 = vector.load %arg1[%c0_33, %c0_34, %c36] : memref<1x8x362xf32, #tpu.memory_space<vmem>>, vector<1x8x324xf32>
    %38 = vector.shape_cast %37 : vector<1x8x324xf32> to vector<8x324xf32>
    %c6 = arith.constant 6 : index
    %c0_35 = arith.constant 0 : index
    %c0_36 = arith.constant 0 : index
    %39 = vector.load %arg2[%c6, %c0_35, %c0_36] : memref<9x4x8xf32, #tpu.memory_space<vmem>>, vector<1x4x8xf32>
    %40 = vector.shape_cast %39 : vector<1x4x8xf32> to vector<4x8xf32>
    %cst_37 = arith.constant dense<0.000000e+00> : vector<4x324xf32>
    %41 = tpu.matmul %40, %38, %cst_37 {dimension_numbers = #tpu.dot_dimension_numbers<[1], [0], [0], [1], [0, 0, 1, 1], [], []>} : vector<4x8xf32>, vector<8x324xf32>, vector<4x324xf32> -> vector<4x324xf32>
    %42 = arith.addf %36, %41 : vector<4x324xf32>
    %c0_38 = arith.constant 0 : index
    %c0_39 = arith.constant 0 : index
    %c37 = arith.constant 37 : index
    %43 = vector.load %arg1[%c0_38, %c0_39, %c37] : memref<1x8x362xf32, #tpu.memory_space<vmem>>, vector<1x8x324xf32>
    %44 = vector.shape_cast %43 : vector<1x8x324xf32> to vector<8x324xf32>
    %c7 = arith.constant 7 : index
    %c0_40 = arith.constant 0 : index
    %c0_41 = arith.constant 0 : index
    %45 = vector.load %arg2[%c7, %c0_40, %c0_41] : memref<9x4x8xf32, #tpu.memory_space<vmem>>, vector<1x4x8xf32>
    %46 = vector.shape_cast %45 : vector<1x4x8xf32> to vector<4x8xf32>
    %cst_42 = arith.constant dense<0.000000e+00> : vector<4x324xf32>
    %47 = tpu.matmul %46, %44, %cst_42 {dimension_numbers = #tpu.dot_dimension_numbers<[1], [0], [0], [1], [0, 0, 1, 1], [], []>} : vector<4x8xf32>, vector<8x324xf32>, vector<4x324xf32> -> vector<4x324xf32>
    %48 = arith.addf %42, %47 : vector<4x324xf32>
    %c0_43 = arith.constant 0 : index
    %c0_44 = arith.constant 0 : index
    %c38 = arith.constant 38 : index
    %49 = vector.load %arg1[%c0_43, %c0_44, %c38] : memref<1x8x362xf32, #tpu.memory_space<vmem>>, vector<1x8x324xf32>
    %50 = vector.shape_cast %49 : vector<1x8x324xf32> to vector<8x324xf32>
    %c8 = arith.constant 8 : index
    %c0_45 = arith.constant 0 : index
    %c0_46 = arith.constant 0 : index
    %51 = vector.load %arg2[%c8, %c0_45, %c0_46] : memref<9x4x8xf32, #tpu.memory_space<vmem>>, vector<1x4x8xf32>
    %52 = vector.shape_cast %51 : vector<1x4x8xf32> to vector<4x8xf32>
    %cst_47 = arith.constant dense<0.000000e+00> : vector<4x324xf32>
    %53 = tpu.matmul %52, %50, %cst_47 {dimension_numbers = #tpu.dot_dimension_numbers<[1], [0], [0], [1], [0, 0, 1, 1], [], []>} : vector<4x8xf32>, vector<8x324xf32>, vector<4x324xf32> -> vector<4x324xf32>
    %54 = arith.addf %48, %53 : vector<4x324xf32>
    %c0_48 = arith.constant 0 : index
    %c0_49 = arith.constant 0 : index
    %55 = vector.load %arg3[%c0_48, %c0_49] : memref<4x1xf32, #tpu.memory_space<vmem>>, vector<4x1xf32>
    %56 = vector.broadcast %55 : vector<4x1xf32> to vector<4x324xf32>
    %57 = arith.addf %54, %56 : vector<4x324xf32>
    %cst_50 = arith.constant 0.000000e+00 : f32
    %58 = vector.broadcast %cst_50 : f32 to vector<4x324xf32>
    %59 = arith.minimumf %57, %58 : vector<4x324xf32>
    %60 = math.exp %59 : vector<4x324xf32>
    %cst_51 = arith.constant 1.000000e+00 : f32
    %61 = vector.broadcast %cst_51 : f32 to vector<4x324xf32>
    %62 = arith.subf %60, %61 : vector<4x324xf32>
    %cst_52 = arith.constant 1.67326319 : f32
    %63 = vector.broadcast %cst_52 : f32 to vector<4x324xf32>
    %64 = arith.mulf %63, %62 : vector<4x324xf32>
    %cst_53 = arith.constant 0.000000e+00 : f32
    %65 = vector.broadcast %cst_53 : f32 to vector<4x324xf32>
    %66 = arith.cmpf ogt, %57, %65 : vector<4x324xf32>
    %67 = arith.select %66, %57, %64 : vector<4x324xi1>, vector<4x324xf32>
    %cst_54 = arith.constant 1.05070102 : f32
    %68 = vector.broadcast %cst_54 : f32 to vector<4x324xf32>
    %69 = arith.mulf %68, %67 : vector<4x324xf32>
    %c0_55 = arith.constant 0 : index
    %c0_56 = arith.constant 0 : index
    %c0_57 = arith.constant 0 : index
    %70 = vector.load %arg4[%c0_55, %c0_56, %c0_57] : memref<1x4x324xf32, #tpu.memory_space<vmem>>, vector<1x4x324xf32>
    %71 = vector.shape_cast %70 : vector<1x4x324xf32> to vector<4x324xf32>
    %72 = vector.shape_cast %69 : vector<4x324xf32> to vector<1x4x324xf32>
    tpu.vector_store %arg4[%c0_55, %c0_56, %c0_57], %72 {strides = array<i32>} : memref<1x4x324xf32, #tpu.memory_space<vmem>>, vector<1x4x324xf32>,
    return
  }
  func.func @transform_0(%arg0: i32) -> (i32, i32, i32) {
    %c0_i32 = arith.constant 0 : i32
    %c0_i32_0 = arith.constant 0 : i32
    %c0_i32_1 = arith.constant 0 : i32
    return %arg0, %c0_i32, %c0_i32_0 : i32, i32, i32
  }
  func.func @transform_1(%arg0: i32) -> (i32, i32, i32) {
    %c0_i32 = arith.constant 0 : i32
    %c0_i32_0 = arith.constant 0 : i32
    %c0_i32_1 = arith.constant 0 : i32
    %c0_i32_2 = arith.constant 0 : i32
    return %c0_i32, %c0_i32_0, %c0_i32_1 : i32, i32, i32
  }
  func.func @transform_2(%arg0: i32) -> (i32, i32) {
    %c0_i32 = arith.constant 0 : i32
    %c0_i32_0 = arith.constant 0 : i32
    %c0_i32_1 = arith.constant 0 : i32
    return %c0_i32, %c0_i32_0 : i32, i32
  }
  func.func @transform_3(%arg0: i32) -> (i32, i32, i32) {
    %c0_i32 = arith.constant 0 : i32
    %c0_i32_0 = arith.constant 0 : i32
    %c0_i32_1 = arith.constant 0 : i32
    return %arg0, %c0_i32, %c0_i32_0 : i32, i32, i32
  }
}

module attributes {stable_mosaic.version = 11 : i64} {
  func.func @_conv3x3_selu_kernel(%arg0: i32, %arg1: memref<1x12x362xf32, #tpu.memory_space<vmem>>, %arg2: memref<9x4x12xf32, #tpu.memory_space<vmem>>, %arg3: memref<4x1xf32, #tpu.memory_space<vmem>>, %arg4: memref<1x4x324xf32, #tpu.memory_space<vmem>>) attributes {dimension_semantics = [#tpu.dimension_semantics<parallel>], iteration_bounds = array<i64: 2>, scalar_prefetch = 0 : i64, scratch_operands = 0 : i64, tpu.core_type = #tpu.core_type<tc>, window_params = [{transform_indices = @transform_0, window_bounds = array<i64: 1, 12, 362>}, {pipeline_mode = #tpu.pipeline_mode<synchronous>, transform_indices = @transform_1, window_bounds = array<i64: 9, 4, 12>}, {pipeline_mode = #tpu.pipeline_mode<synchronous>, transform_indices = @transform_2, window_bounds = array<i64: 4, 1>}, {transform_indices = @transform_3, window_bounds = array<i64: 1, 4, 324>}]} {
    %cst = arith.constant 0.000000e+00 : f32
    %0 = vector.broadcast %cst : f32 to vector<4x324xf32>
    %c0 = arith.constant 0 : index
    %c0_0 = arith.constant 0 : index
    %c0_1 = arith.constant 0 : index
    %1 = vector.load %arg1[%c0, %c0_0, %c0_1] : memref<1x12x362xf32, #tpu.memory_space<vmem>>, vector<1x12x324xf32>
    %2 = vector.shape_cast %1 : vector<1x12x324xf32> to vector<12x324xf32>
    %c0_2 = arith.constant 0 : index
    %c0_3 = arith.constant 0 : index
    %c0_4 = arith.constant 0 : index
    %3 = vector.load %arg2[%c0_2, %c0_3, %c0_4] : memref<9x4x12xf32, #tpu.memory_space<vmem>>, vector<1x4x12xf32>
    %4 = vector.shape_cast %3 : vector<1x4x12xf32> to vector<4x12xf32>
    %cst_5 = arith.constant dense<0.000000e+00> : vector<4x324xf32>
    %5 = tpu.matmul %4, %2, %cst_5 {dimension_numbers = #tpu.dot_dimension_numbers<[1], [0], [0], [1], [0, 0, 1, 1], [], []>} : vector<4x12xf32>, vector<12x324xf32>, vector<4x324xf32> -> vector<4x324xf32>
    %6 = arith.addf %0, %5 : vector<4x324xf32>
    %c0_6 = arith.constant 0 : index
    %c0_7 = arith.constant 0 : index
    %c1 = arith.constant 1 : index
    %7 = vector.load %arg1[%c0_6, %c0_7, %c1] : memref<1x12x362xf32, #tpu.memory_space<vmem>>, vector<1x12x324xf32>
    %8 = vector.shape_cast %7 : vector<1x12x324xf32> to vector<12x324xf32>
    %c1_8 = arith.constant 1 : index
    %c0_9 = arith.constant 0 : index
    %c0_10 = arith.constant 0 : index
    %9 = vector.load %arg2[%c1_8, %c0_9, %c0_10] : memref<9x4x12xf32, #tpu.memory_space<vmem>>, vector<1x4x12xf32>
    %10 = vector.shape_cast %9 : vector<1x4x12xf32> to vector<4x12xf32>
    %cst_11 = arith.constant dense<0.000000e+00> : vector<4x324xf32>
    %11 = tpu.matmul %10, %8, %cst_11 {dimension_numbers = #tpu.dot_dimension_numbers<[1], [0], [0], [1], [0, 0, 1, 1], [], []>} : vector<4x12xf32>, vector<12x324xf32>, vector<4x324xf32> -> vector<4x324xf32>
    %12 = arith.addf %6, %11 : vector<4x324xf32>
    %c0_12 = arith.constant 0 : index
    %c0_13 = arith.constant 0 : index
    %c2 = arith.constant 2 : index
    %13 = vector.load %arg1[%c0_12, %c0_13, %c2] : memref<1x12x362xf32, #tpu.memory_space<vmem>>, vector<1x12x324xf32>
    %14 = vector.shape_cast %13 : vector<1x12x324xf32> to vector<12x324xf32>
    %c2_14 = arith.constant 2 : index
    %c0_15 = arith.constant 0 : index
    %c0_16 = arith.constant 0 : index
    %15 = vector.load %arg2[%c2_14, %c0_15, %c0_16] : memref<9x4x12xf32, #tpu.memory_space<vmem>>, vector<1x4x12xf32>
    %16 = vector.shape_cast %15 : vector<1x4x12xf32> to vector<4x12xf32>
    %cst_17 = arith.constant dense<0.000000e+00> : vector<4x324xf32>
    %17 = tpu.matmul %16, %14, %cst_17 {dimension_numbers = #tpu.dot_dimension_numbers<[1], [0], [0], [1], [0, 0, 1, 1], [], []>} : vector<4x12xf32>, vector<12x324xf32>, vector<4x324xf32> -> vector<4x324xf32>
    %18 = arith.addf %12, %17 : vector<4x324xf32>
    %c0_18 = arith.constant 0 : index
    %c0_19 = arith.constant 0 : index
    %c18 = arith.constant 18 : index
    %19 = vector.load %arg1[%c0_18, %c0_19, %c18] : memref<1x12x362xf32, #tpu.memory_space<vmem>>, vector<1x12x324xf32>
    %20 = vector.shape_cast %19 : vector<1x12x324xf32> to vector<12x324xf32>
    %c3 = arith.constant 3 : index
    %c0_20 = arith.constant 0 : index
    %c0_21 = arith.constant 0 : index
    %21 = vector.load %arg2[%c3, %c0_20, %c0_21] : memref<9x4x12xf32, #tpu.memory_space<vmem>>, vector<1x4x12xf32>
    %22 = vector.shape_cast %21 : vector<1x4x12xf32> to vector<4x12xf32>
    %cst_22 = arith.constant dense<0.000000e+00> : vector<4x324xf32>
    %23 = tpu.matmul %22, %20, %cst_22 {dimension_numbers = #tpu.dot_dimension_numbers<[1], [0], [0], [1], [0, 0, 1, 1], [], []>} : vector<4x12xf32>, vector<12x324xf32>, vector<4x324xf32> -> vector<4x324xf32>
    %24 = arith.addf %18, %23 : vector<4x324xf32>
    %c0_23 = arith.constant 0 : index
    %c0_24 = arith.constant 0 : index
    %c19 = arith.constant 19 : index
    %25 = vector.load %arg1[%c0_23, %c0_24, %c19] : memref<1x12x362xf32, #tpu.memory_space<vmem>>, vector<1x12x324xf32>
    %26 = vector.shape_cast %25 : vector<1x12x324xf32> to vector<12x324xf32>
    %c4 = arith.constant 4 : index
    %c0_25 = arith.constant 0 : index
    %c0_26 = arith.constant 0 : index
    %27 = vector.load %arg2[%c4, %c0_25, %c0_26] : memref<9x4x12xf32, #tpu.memory_space<vmem>>, vector<1x4x12xf32>
    %28 = vector.shape_cast %27 : vector<1x4x12xf32> to vector<4x12xf32>
    %cst_27 = arith.constant dense<0.000000e+00> : vector<4x324xf32>
    %29 = tpu.matmul %28, %26, %cst_27 {dimension_numbers = #tpu.dot_dimension_numbers<[1], [0], [0], [1], [0, 0, 1, 1], [], []>} : vector<4x12xf32>, vector<12x324xf32>, vector<4x324xf32> -> vector<4x324xf32>
    %30 = arith.addf %24, %29 : vector<4x324xf32>
    %c0_28 = arith.constant 0 : index
    %c0_29 = arith.constant 0 : index
    %c20 = arith.constant 20 : index
    %31 = vector.load %arg1[%c0_28, %c0_29, %c20] : memref<1x12x362xf32, #tpu.memory_space<vmem>>, vector<1x12x324xf32>
    %32 = vector.shape_cast %31 : vector<1x12x324xf32> to vector<12x324xf32>
    %c5 = arith.constant 5 : index
    %c0_30 = arith.constant 0 : index
    %c0_31 = arith.constant 0 : index
    %33 = vector.load %arg2[%c5, %c0_30, %c0_31] : memref<9x4x12xf32, #tpu.memory_space<vmem>>, vector<1x4x12xf32>
    %34 = vector.shape_cast %33 : vector<1x4x12xf32> to vector<4x12xf32>
    %cst_32 = arith.constant dense<0.000000e+00> : vector<4x324xf32>
    %35 = tpu.matmul %34, %32, %cst_32 {dimension_numbers = #tpu.dot_dimension_numbers<[1], [0], [0], [1], [0, 0, 1, 1], [], []>} : vector<4x12xf32>, vector<12x324xf32>, vector<4x324xf32> -> vector<4x324xf32>
    %36 = arith.addf %30, %35 : vector<4x324xf32>
    %c0_33 = arith.constant 0 : index
    %c0_34 = arith.constant 0 : index
    %c36 = arith.constant 36 : index
    %37 = vector.load %arg1[%c0_33, %c0_34, %c36] : memref<1x12x362xf32, #tpu.memory_space<vmem>>, vector<1x12x324xf32>
    %38 = vector.shape_cast %37 : vector<1x12x324xf32> to vector<12x324xf32>
    %c6 = arith.constant 6 : index
    %c0_35 = arith.constant 0 : index
    %c0_36 = arith.constant 0 : index
    %39 = vector.load %arg2[%c6, %c0_35, %c0_36] : memref<9x4x12xf32, #tpu.memory_space<vmem>>, vector<1x4x12xf32>
    %40 = vector.shape_cast %39 : vector<1x4x12xf32> to vector<4x12xf32>
    %cst_37 = arith.constant dense<0.000000e+00> : vector<4x324xf32>
    %41 = tpu.matmul %40, %38, %cst_37 {dimension_numbers = #tpu.dot_dimension_numbers<[1], [0], [0], [1], [0, 0, 1, 1], [], []>} : vector<4x12xf32>, vector<12x324xf32>, vector<4x324xf32> -> vector<4x324xf32>
    %42 = arith.addf %36, %41 : vector<4x324xf32>
    %c0_38 = arith.constant 0 : index
    %c0_39 = arith.constant 0 : index
    %c37 = arith.constant 37 : index
    %43 = vector.load %arg1[%c0_38, %c0_39, %c37] : memref<1x12x362xf32, #tpu.memory_space<vmem>>, vector<1x12x324xf32>
    %44 = vector.shape_cast %43 : vector<1x12x324xf32> to vector<12x324xf32>
    %c7 = arith.constant 7 : index
    %c0_40 = arith.constant 0 : index
    %c0_41 = arith.constant 0 : index
    %45 = vector.load %arg2[%c7, %c0_40, %c0_41] : memref<9x4x12xf32, #tpu.memory_space<vmem>>, vector<1x4x12xf32>
    %46 = vector.shape_cast %45 : vector<1x4x12xf32> to vector<4x12xf32>
    %cst_42 = arith.constant dense<0.000000e+00> : vector<4x324xf32>
    %47 = tpu.matmul %46, %44, %cst_42 {dimension_numbers = #tpu.dot_dimension_numbers<[1], [0], [0], [1], [0, 0, 1, 1], [], []>} : vector<4x12xf32>, vector<12x324xf32>, vector<4x324xf32> -> vector<4x324xf32>
    %48 = arith.addf %42, %47 : vector<4x324xf32>
    %c0_43 = arith.constant 0 : index
    %c0_44 = arith.constant 0 : index
    %c38 = arith.constant 38 : index
    %49 = vector.load %arg1[%c0_43, %c0_44, %c38] : memref<1x12x362xf32, #tpu.memory_space<vmem>>, vector<1x12x324xf32>
    %50 = vector.shape_cast %49 : vector<1x12x324xf32> to vector<12x324xf32>
    %c8 = arith.constant 8 : index
    %c0_45 = arith.constant 0 : index
    %c0_46 = arith.constant 0 : index
    %51 = vector.load %arg2[%c8, %c0_45, %c0_46] : memref<9x4x12xf32, #tpu.memory_space<vmem>>, vector<1x4x12xf32>
    %52 = vector.shape_cast %51 : vector<1x4x12xf32> to vector<4x12xf32>
    %cst_47 = arith.constant dense<0.000000e+00> : vector<4x324xf32>
    %53 = tpu.matmul %52, %50, %cst_47 {dimension_numbers = #tpu.dot_dimension_numbers<[1], [0], [0], [1], [0, 0, 1, 1], [], []>} : vector<4x12xf32>, vector<12x324xf32>, vector<4x324xf32> -> vector<4x324xf32>
    %54 = arith.addf %48, %53 : vector<4x324xf32>
    %c0_48 = arith.constant 0 : index
    %c0_49 = arith.constant 0 : index
    %55 = vector.load %arg3[%c0_48, %c0_49] : memref<4x1xf32, #tpu.memory_space<vmem>>, vector<4x1xf32>
    %56 = vector.broadcast %55 : vector<4x1xf32> to vector<4x324xf32>
    %57 = arith.addf %54, %56 : vector<4x324xf32>
    %cst_50 = arith.constant 0.000000e+00 : f32
    %58 = vector.broadcast %cst_50 : f32 to vector<4x324xf32>
    %59 = arith.minimumf %57, %58 : vector<4x324xf32>
    %60 = math.exp %59 : vector<4x324xf32>
    %cst_51 = arith.constant 1.000000e+00 : f32
    %61 = vector.broadcast %cst_51 : f32 to vector<4x324xf32>
    %62 = arith.subf %60, %61 : vector<4x324xf32>
    %cst_52 = arith.constant 1.67326319 : f32
    %63 = vector.broadcast %cst_52 : f32 to vector<4x324xf32>
    %64 = arith.mulf %63, %62 : vector<4x324xf32>
    %cst_53 = arith.constant 0.000000e+00 : f32
    %65 = vector.broadcast %cst_53 : f32 to vector<4x324xf32>
    %66 = arith.cmpf ogt, %57, %65 : vector<4x324xf32>
    %67 = arith.select %66, %57, %64 : vector<4x324xi1>, vector<4x324xf32>
    %cst_54 = arith.constant 1.05070102 : f32
    %68 = vector.broadcast %cst_54 : f32 to vector<4x324xf32>
    %69 = arith.mulf %68, %67 : vector<4x324xf32>
    %c0_55 = arith.constant 0 : index
    %c0_56 = arith.constant 0 : index
    %c0_57 = arith.constant 0 : index
    %70 = vector.load %arg4[%c0_55, %c0_56, %c0_57] : memref<1x4x324xf32, #tpu.memory_space<vmem>>, vector<1x4x324xf32>
    %71 = vector.shape_cast %70 : vector<1x4x324xf32> to vector<4x324xf32>
    %72 = vector.shape_cast %69 : vector<4x324xf32> to vector<1x4x324xf32>
    tpu.vector_store %arg4[%c0_55, %c0_56, %c0_57], %72 {strides = array<i32>} : memref<1x4x324xf32, #tpu.memory_space<vmem>>, vector<1x4x324xf32>,
    return
  }
  func.func @transform_0(%arg0: i32) -> (i32, i32, i32) {
    %c0_i32 = arith.constant 0 : i32
    %c0_i32_0 = arith.constant 0 : i32
    %c0_i32_1 = arith.constant 0 : i32
    return %arg0, %c0_i32, %c0_i32_0 : i32, i32, i32
  }
  func.func @transform_1(%arg0: i32) -> (i32, i32, i32) {
    %c0_i32 = arith.constant 0 : i32
    %c0_i32_0 = arith.constant 0 : i32
    %c0_i32_1 = arith.constant 0 : i32
    %c0_i32_2 = arith.constant 0 : i32
    return %c0_i32, %c0_i32_0, %c0_i32_1 : i32, i32, i32
  }
  func.func @transform_2(%arg0: i32) -> (i32, i32) {
    %c0_i32 = arith.constant 0 : i32
    %c0_i32_0 = arith.constant 0 : i32
    %c0_i32_1 = arith.constant 0 : i32
    return %c0_i32, %c0_i32_0 : i32, i32
  }
  func.func @transform_3(%arg0: i32) -> (i32, i32, i32) {
    %c0_i32 = arith.constant 0 : i32
    %c0_i32_0 = arith.constant 0 : i32
    %c0_i32_1 = arith.constant 0 : i32
    return %arg0, %c0_i32, %c0_i32_0 : i32, i32, i32
  }
}

module attributes {stable_mosaic.version = 11 : i64} {
  func.func @_conv1x1_selu_kernel(%arg0: i32, %arg1: memref<1x16x256xf32, #tpu.memory_space<vmem>>, %arg2: memref<4x16xf32, #tpu.memory_space<vmem>>, %arg3: memref<4x1xf32, #tpu.memory_space<vmem>>, %arg4: memref<1x4x256xf32, #tpu.memory_space<vmem>>) attributes {dimension_semantics = [#tpu.dimension_semantics<parallel>], iteration_bounds = array<i64: 2>, scalar_prefetch = 0 : i64, scratch_operands = 0 : i64, tpu.core_type = #tpu.core_type<tc>, window_params = [{transform_indices = @transform_0, window_bounds = array<i64: 1, 16, 256>}, {pipeline_mode = #tpu.pipeline_mode<synchronous>, transform_indices = @transform_1, window_bounds = array<i64: 4, 16>}, {pipeline_mode = #tpu.pipeline_mode<synchronous>, transform_indices = @transform_2, window_bounds = array<i64: 4, 1>}, {transform_indices = @transform_3, window_bounds = array<i64: 1, 4, 256>}]} {
    %c0 = arith.constant 0 : index
    %c0_0 = arith.constant 0 : index
    %0 = vector.load %arg2[%c0, %c0_0] : memref<4x16xf32, #tpu.memory_space<vmem>>, vector<4x16xf32>
    %c0_1 = arith.constant 0 : index
    %c0_2 = arith.constant 0 : index
    %c0_3 = arith.constant 0 : index
    %1 = vector.load %arg1[%c0_1, %c0_2, %c0_3] : memref<1x16x256xf32, #tpu.memory_space<vmem>>, vector<1x16x256xf32>
    %2 = vector.shape_cast %1 : vector<1x16x256xf32> to vector<16x256xf32>
    %cst = arith.constant dense<0.000000e+00> : vector<4x256xf32>
    %3 = tpu.matmul %0, %2, %cst {dimension_numbers = #tpu.dot_dimension_numbers<[1], [0], [0], [1], [0, 0, 1, 1], [], []>} : vector<4x16xf32>, vector<16x256xf32>, vector<4x256xf32> -> vector<4x256xf32>
    %c0_4 = arith.constant 0 : index
    %c0_5 = arith.constant 0 : index
    %4 = vector.load %arg3[%c0_4, %c0_5] : memref<4x1xf32, #tpu.memory_space<vmem>>, vector<4x1xf32>
    %5 = vector.broadcast %4 : vector<4x1xf32> to vector<4x256xf32>
    %6 = arith.addf %3, %5 : vector<4x256xf32>
    %cst_6 = arith.constant 0.000000e+00 : f32
    %7 = vector.broadcast %cst_6 : f32 to vector<4x256xf32>
    %8 = arith.minimumf %6, %7 : vector<4x256xf32>
    %9 = math.exp %8 : vector<4x256xf32>
    %cst_7 = arith.constant 1.000000e+00 : f32
    %10 = vector.broadcast %cst_7 : f32 to vector<4x256xf32>
    %11 = arith.subf %9, %10 : vector<4x256xf32>
    %cst_8 = arith.constant 1.67326319 : f32
    %12 = vector.broadcast %cst_8 : f32 to vector<4x256xf32>
    %13 = arith.mulf %12, %11 : vector<4x256xf32>
    %cst_9 = arith.constant 0.000000e+00 : f32
    %14 = vector.broadcast %cst_9 : f32 to vector<4x256xf32>
    %15 = arith.cmpf ogt, %6, %14 : vector<4x256xf32>
    %16 = arith.select %15, %6, %13 : vector<4x256xi1>, vector<4x256xf32>
    %cst_10 = arith.constant 1.05070102 : f32
    %17 = vector.broadcast %cst_10 : f32 to vector<4x256xf32>
    %18 = arith.mulf %17, %16 : vector<4x256xf32>
    %c0_11 = arith.constant 0 : index
    %c0_12 = arith.constant 0 : index
    %c0_13 = arith.constant 0 : index
    %19 = vector.load %arg4[%c0_11, %c0_12, %c0_13] : memref<1x4x256xf32, #tpu.memory_space<vmem>>, vector<1x4x256xf32>
    %20 = vector.shape_cast %19 : vector<1x4x256xf32> to vector<4x256xf32>
    %21 = vector.shape_cast %18 : vector<4x256xf32> to vector<1x4x256xf32>
    tpu.vector_store %arg4[%c0_11, %c0_12, %c0_13], %21 {strides = array<i32>} : memref<1x4x256xf32, #tpu.memory_space<vmem>>, vector<1x4x256xf32>,
    return
  }
  func.func @transform_0(%arg0: i32) -> (i32, i32, i32) {
    %c0_i32 = arith.constant 0 : i32
    %c0_i32_0 = arith.constant 0 : i32
    %c0_i32_1 = arith.constant 0 : i32
    return %arg0, %c0_i32, %c0_i32_0 : i32, i32, i32
  }
  func.func @transform_1(%arg0: i32) -> (i32, i32) {
    %c0_i32 = arith.constant 0 : i32
    %c0_i32_0 = arith.constant 0 : i32
    %c0_i32_1 = arith.constant 0 : i32
    return %c0_i32, %c0_i32_0 : i32, i32
  }
  func.func @transform_2(%arg0: i32) -> (i32, i32) {
    %c0_i32 = arith.constant 0 : i32
    %c0_i32_0 = arith.constant 0 : i32
    %c0_i32_1 = arith.constant 0 : i32
    return %c0_i32, %c0_i32_0 : i32, i32
  }
  func.func @transform_3(%arg0: i32) -> (i32, i32, i32) {
    %c0_i32 = arith.constant 0 : i32
    %c0_i32_0 = arith.constant 0 : i32
    %c0_i32_1 = arith.constant 0 : i32
    return %arg0, %c0_i32, %c0_i32_0 : i32, i32, i32
  }
}

</mosaic_0001>

<llo_original>
// kernel: sadenseblock_forward.4
$region0: #{sadenseblock_forward.4}
  #allocation0 [shape = 'u32[]', space=smem, size = 0x4, offset = 0x4, fixed_abs, tag = 'smem constant byte address 0x4 - core index']
  #allocation1 [shape = 'u32[144,128]{1,0:T(1,128)}', space=vmem, size = 0x12000, scoped, tag = 'internal scratch']
  %s0 = inlined_call_operand.vmem [shape: f32[2,4,362], index: 0, kind: input, shape index: {}]
  %s1 = inlined_call_operand.vmem [shape: f32[9,4,4], index: 1, kind: input, shape index: {}]
  %s2 = inlined_call_operand.vmem [shape: f32[4,1], index: 2, kind: input, shape index: {}]
  %s3 = inlined_call_operand.vmem [shape: f32[2,4,324], index: 3, kind: output, shape index: {}]
  %s4 = sld [smem:[#allocation0]]
  $region45: #{sadenseblock_forward.4} parent=0
    _
  %s6 = ssub.s32 1, %s4
  %s7 = scalar_select 0, %s6, %s4
  loop: start=0, step=1, limit=4
  $region2: #{sadenseblock_forward.4} parent=0 // loop_pre_header
    _
  $region3: #{sadenseblock_forward.4} parent=0 // loop_header
    %s9 = sphi 0, %s13
    %p10 = scmp.ge.s32.totalorder %s9, 4
    %s19 = sphi 0, %s21
    %s22 = sphi 0, %s19
    %s23 = sphi 0, %s22
    %s39 = sphi 0, %s23
    %s43 = sphi 0, %s43
    %s45 = sphi 0, %s43
    %s46 = sphi 0, %s45
    %s60 = sphi 0, %s46
    %s64 = sphi 0, %s64
    %s66 = sphi 0, %s64
    %s67 = sphi 0, %s66
    %s81 = sphi 0, %s67
    %s87 = sphi 0, %s89
    %s90 = sphi 0, %s87
    %s91 = sphi 0, %s90
    %s107 = sphi 0, %s91
  $region4: #{sadenseblock_forward.4} parent=0 // loop_header_branch
    %12 = sbr.rel (%p10) target = $region8
  $region5: #{sadenseblock_forward.4} parent=0 // loop_body
    %s14 = ssub.s32 %s9, 1
    %s15 = ssub.s32 %s9, 2
    %s16 = sadd.s32 %s9, 1
    %s17 = ssub.s32 %s9, %s16
    %p18 = scmp.eq.s32.totalorder %s17, 0
    %s20 = sadd.s32 %s19, 1
    %s21 = scalar_select %p18, %s19, %s20
    %p24 = pneg %p18
    %p25 = scmp.eq.s32.totalorder %s9, 1
    %p26 = por %p24, %p25
    %p27 = scmp.ne.s32.totalorder %s19, %s22
    %p28 = scmp.eq.s32.totalorder %s9, 0
    %p29 = por %p27, %p28
    %p30 = scmp.ne.s32.totalorder %s19, %s22
    %p31 = scmp.eq.s32.totalorder %s14, 1
    %p32 = por %p30, %p31
    %p33 = scmp.ne.s32.totalorder %s22, %s23
    %p34 = scmp.eq.s32.totalorder %s14, 0
    %p35 = por %p33, %p34
    %p36 = scmp.ne.s32.totalorder %s22, %s23
    %p37 = scmp.eq.s32.totalorder %s15, 1
    %p38 = por %p36, %p37
    %p40 = scmp.ne.s32.totalorder %s23, %s39
    %p41 = scmp.eq.s32.totalorder %s15, 0
    %p42 = por %p40, %p41
    %s44 = sadd.s32 %s43, 1
    %p47 = scmp.eq.s32.totalorder %s9, 1
    %p48 = scmp.ne.s32.totalorder %s43, %s45
    %p49 = scmp.eq.s32.totalorder %s9, 0
    %p50 = por %p48, %p49
    %p51 = scmp.ne.s32.totalorder %s43, %s45
    %p52 = scmp.eq.s32.totalorder %s14, 1
    %p53 = por %p51, %p52
    %p54 = scmp.ne.s32.totalorder %s45, %s46
    %p55 = scmp.eq.s32.totalorder %s14, 0
    %p56 = por %p54, %p55
    %p57 = scmp.ne.s32.totalorder %s45, %s46
    %p58 = scmp.eq.s32.totalorder %s15, 1
    %p59 = por %p57, %p58
    %p61 = scmp.ne.s32.totalorder %s46, %s60
    %p62 = scmp.eq.s32.totalorder %s15, 0
    %p63 = por %p61, %p62
    %s65 = sadd.s32 %s64, 1
    %p68 = scmp.eq.s32.totalorder %s9, 1
    %p69 = scmp.ne.s32.totalorder %s64, %s66
    %p70 = scmp.eq.s32.totalorder %s9, 0
    %p71 = por %p69, %p70
    %p72 = scmp.ne.s32.totalorder %s64, %s66
    %p73 = scmp.eq.s32.totalorder %s14, 1
    %p74 = por %p72, %p73
    %p75 = scmp.ne.s32.totalorder %s66, %s67
    %p76 = scmp.eq.s32.totalorder %s14, 0
    %p77 = por %p75, %p76
    %p78 = scmp.ne.s32.totalorder %s66, %s67
    %p79 = scmp.eq.s32.totalorder %s15, 1
    %p80 = por %p78, %p79
    %p82 = scmp.ne.s32.totalorder %s67, %s81
    %p83 = scmp.eq.s32.totalorder %s15, 0
    %p84 = por %p82, %p83
    %s85 = ssub.s32 %s9, %s16
    %p86 = scmp.eq.s32.totalorder %s85, 0
    %s88 = sadd.s32 %s87, 1
    %s89 = scalar_select %p86, %s87, %s88
    %p92 = pneg %p86
    %p93 = scmp.eq.s32.totalorder %s9, 1
    %p94 = por %p92, %p93
    %p95 = scmp.ne.s32.totalorder %s87, %s90
    %p96 = scmp.eq.s32.totalorder %s9, 0
    %p97 = por %p95, %p96
    %p98 = scmp.ne.s32.totalorder %s87, %s90
    %p99 = scmp.eq.s32.totalorder %s14, 1
    %p100 = por %p98, %p99
    %p101 = scmp.ne.s32.totalorder %s90, %s91
    %p102 = scmp.eq.s32.totalorder %s14, 0
    %p103 = por %p101, %p102
    %p104 = scmp.ne.s32.totalorder %s90, %s91
    %p105 = scmp.eq.s32.totalorder %s15, 1
    %p106 = por %p104, %p105
    %p108 = scmp.ne.s32.totalorder %s91, %s107
    %p109 = scmp.eq.s32.totalorder %s15, 0
    %p110 = por %p108, %p109
    %p111 = scmp.le.s32.totalorder 1, %s9
    %p112 = scmp.lt.s32.totalorder %s9, 3
    %p113 = pnand %p111, %p112
    %p114 = pneg %p113
    // Predicated region
    $region9: #{sadenseblock_forward.4} parent=5 // pred_check
      _
    $region10: #{sadenseblock_forward.4} parent=5 // pred_check_branch
      %116 = sbr.rel (%p113) target = $region12
    $region11: #{sadenseblock_forward.4} parent=5 // pred_region
      %s117 = ssub.s32 %s9, 1
      // Predicated region
      $region13: #{sadenseblock_forward.4} parent=11 // pred_check
        %p118 = pneg %p56
      $region14: #{sadenseblock_forward.4} parent=11 // pred_check_branch
        %120 = sbr.rel (%p118) target = $region16
      $region15: #{sadenseblock_forward.4} parent=11 // pred_region
        _
      $region16: #{sadenseblock_forward.4} parent=11 // pred_fallthru
        _
      // Predicated region
      $region17: #{sadenseblock_forward.4} parent=11 // pred_check
        %p121 = pneg %p77
      $region18: #{sadenseblock_forward.4} parent=11 // pred_check_branch
        %123 = sbr.rel (%p121) target = $region20
      $region19: #{sadenseblock_forward.4} parent=11 // pred_region
        _
      $region20: #{sadenseblock_forward.4} parent=11 // pred_fallthru
        _
    $region12: #{sadenseblock_forward.4} parent=5 // pred_fallthru
      _
    %p124 = scmp.lt.s32.totalorder %s9, 2
    // Predicated region
    $region21: #{sadenseblock_forward.4} parent=5 // pred_check
      %p125 = pneg %p124
    $region22: #{sadenseblock_forward.4} parent=5 // pred_check_branch
      %127 = sbr.rel (%p125) target = $region24
    $region23: #{sadenseblock_forward.4} parent=5 // pred_region
      // Predicated region
      $region25: #{sadenseblock_forward.4} parent=23 // pred_check
        %p128 = pneg %p29
      $region26: #{sadenseblock_forward.4} parent=23 // pred_check_branch
        %130 = sbr.rel (%p128) target = $region28
      $region27: #{sadenseblock_forward.4} parent=23 // pred_region
        %p131 = scmp.lt.s32.totalorder %s9, 1
        %s132 = scalar_select %p131, %s9, 1
        %s133 = smul.addr %s132, 3
        %s134 = smul.addr %s133, 4
        %s135 = scalar_lea.vmem %s0, %s134
      $region28: #{sadenseblock_forward.4} parent=23 // pred_fallthru
        _
    $region24: #{sadenseblock_forward.4} parent=5 // pred_fallthru
      _
    %p136 = scmp.le.s32.totalorder 1, %s9
    %p137 = scmp.lt.s32.totalorder %s9, 3
    %p138 = pnand %p136, %p137
    %p139 = pneg %p138
    // Predicated region
    $region29: #{sadenseblock_forward.4} parent=5 // pred_check
      _
    $region30: #{sadenseblock_forward.4} parent=5 // pred_check_branch
      %141 = sbr.rel (%p138) target = $region32
    $region31: #{sadenseblock_forward.4} parent=5 // pred_region
      %s142 = ssub.s32 %s9, 1
      %p143 = scmp.lt.s32.totalorder %s14, 1
      %s144 = scalar_select %p143, %s14, 1
      %s145 = smul.addr %s144, 3
      %s146 = smul.addr %s145, 4
      %s147 = scalar_lea.vmem %s0, %s146
      %p148 = pneg %p35
      %p149 = pneg %p32
      %p150 = pneg %p56
      %p151 = pneg %p53
      %p152 = pneg %p77
      %p153 = pneg %p74
      %p154 = pneg %p103
      %p155 = pneg %p100
      %p156 = scmp.lt.s32.totalorder %s14, 1
      %s157 = scalar_select %p156, %s14, 1
      %s158 = smul.addr %s157, 3
      %s159 = smul.addr %s158, 4
      %s160 = scalar_lea.vmem %s3, %s159
      %p161 = scmp.lt.s32.totalorder %s14, 1
      %s162 = scalar_select %p161, %s14, 1
      %s163 = smul.addr %s162, 3
      %s164 = smul.addr %s163, 4
      %s165 = scalar_lea.vmem %s0, %s164
      %p166 = scmp.lt.s32.totalorder %s14, 1
      %s167 = scalar_select %p166, %s14, 1
      %s168 = smul.addr %s167, 3
      %s169 = smul.addr %s168, 4
      %s170 = scalar_lea.vmem %s3, %s169
      %v171 = vld [vmem:[%s165] sm:$0xff]
      %v172 = vld [vmem:[%s165 + $0x8] sm:$0xf]
      %v173 = vld [vmem:[%s1] sm:$0xf]
      %s174 = scalar_lea.vmem %s1, 4
      %v175 = vld [vmem:[%s174] sm:$0xf]
      %v178 = vcombine.high %v171, %v171
      %179 = vrot.lane.b32.xlu0 %v171, 127
      %v180 = vpop.permute.xlu0 %179
      %181 = vrot.lane.b32.xlu0 %v178, 127
      %v182 = vpop.permute.xlu0 %181
      %183 = vrot.lane.b32.xlu0 %v172, 127
      %v184 = vpop.permute.xlu0 %183
      %vm185 = vcmask 1039360
      %v186 = vsel %vm185, %v180, %v182
      %v187 = vsel %vm185, %v182, %v184
      %vm188 = vcmask 31744
      %v190 = vsel %vm188, %v175, 0
      %vm192 = vcmask 1043456
      %v193 = vsel %vm192, %v186, 0
      %v195 = vsel %vm192, %v187, 0
      %v197 = vsel %vm192, %v184, 0
      %199 = vmatprep.subr.mxu0 %v195
      %200 = vmatpush1.msra.mxu0 %v193
      %201 = vmatprep.subr.mxu0 0.0
      %202 = vmatpush1.msra.mxu0 0.0
      %203 = vmatprep.subr.mxu0 0.0
      %204 = vmatpush1.msra.mxu0 0.0
      %205 = vmatprep.subr.mxu0 0.0
      %206 = vmatpush1.msra.mxu0 0.0
      %207 = vmatprep.subr.mxu0 0.0
      %208 = vmatpush1.msra.mxu0 0.0
      %209 = vmatprep.subr.mxu0 0.0
      %210 = vmatpush1.msra.mxu0 0.0
      %211 = vmatprep.subr.mxu0 0.0
      %212 = vmatpush1.msra.mxu0 0.0
      %213 = vmatprep.subr.mxu0 0.0
      %214 = vmatpush1.msra.mxu0 0.0
      %215 = vmatprep.subr.mxu0 0.0
      %216 = vmatpush1.msra.mxu0 0.0
      %217 = vmatprep.subr.mxu0 0.0
      %218 = vmatpush1.msra.mxu0 0.0
      %219 = vmatprep.subr.mxu0 0.0
      %220 = vmatpush1.msra.mxu0 0.0
      %221 = vmatprep.subr.mxu0 0.0
      %222 = vmatpush1.msra.mxu0 0.0
      %223 = vmatprep.subr.mxu0 0.0
      %224 = vmatpush1.msra.mxu0 0.0
      %225 = vmatprep.subr.mxu0 0.0
      %226 = vmatpush1.msra.mxu0 0.0
      %227 = vmatprep.subr.mxu0 0.0
      %228 = vmatpush1.msra.mxu0 0.0
      %229 = vmatprep.subr.mxu0 0.0
      %230 = vmatpush1.msra.mxu0 0.0
      %231 = vmatprep.subr.mxu0 0.0
      %232 = vmatpush1.msra.mxu0 0.0
      %233 = vmatprep.subr.mxu0 0.0
      %234 = vmatpush1.msra.mxu0 0.0
      %235 = vmatprep.subr.mxu0 0.0
      %236 = vmatpush1.msra.mxu0 0.0
      %237 = vmatprep.subr.mxu0 0.0
      %238 = vmatpush1.msra.mxu0 0.0
      %239 = vmatprep.subr.mxu0 0.0
      %240 = vmatpush1.msra.mxu0 0.0
      %241 = vmatprep.subr.mxu0 0.0
      %242 = vmatpush1.msra.mxu0 0.0
      %243 = vmatprep.subr.mxu0 0.0
      %244 = vmatpush1.msra.mxu0 0.0
      %245 = vmatprep.subr.mxu0 0.0
      %246 = vmatpush1.msra.mxu0 0.0
      %247 = vmatprep.subr.mxu0 0.0
      %248 = vmatpush1.msra.mxu0 0.0
      %249 = vmatprep.subr.mxu0 0.0
      %250 = vmatpush1.msra.mxu0 0.0
      %251 = vmatprep.subr.mxu0 0.0
      %252 = vmatpush1.msra.mxu0 0.0
      %253 = vmatprep.subr.mxu0 0.0
      %254 = vmatpush1.msra.mxu0 0.0
      %255 = vmatprep.subr.mxu0 0.0
      %256 = vmatpush1.msra.mxu0 0.0
      %257 = vmatprep.subr.mxu0 0.0
      %258 = vmatpush1.msra.mxu0 0.0
      %259 = vmatprep.subr.mxu0 0.0
      %260 = vmatpush1.msra.mxu0 0.0
      %261 = vmatprep.subr.mxu0 0.0
      %262 = vmatpush1.msra.mxu0 0.0
      %263 = vmatprep.mubr.f32.mxu0 0.0
      %264 = vmatmul.mubr.f32.gmra.mrb[0].mxu0 %v190
      %v265 = vpop.f32.mrb[0].mxu0
      %v266 = vadd.f32 0.0, %v265
      %v267 = vpop.f32.mrb[0].mxu0
      %v268 = vadd.f32 0.0, %v267
      %269 = vdwg.mxu0
      %270 = vmatprep.subr.mxu0 0.0
      %271 = vmatpush1.msra.mxu0 %v197
      %272 = vmatprep.subr.mxu0 0.0
      %273 = vmatpush1.msra.mxu0 0.0
      %274 = vmatprep.subr.mxu0 0.0
      %275 = vmatpush1.msra.mxu0 0.0
      %276 = vmatprep.subr.mxu0 0.0
      %277 = vmatpush1.msra.mxu0 0.0
      %278 = vmatprep.subr.mxu0 0.0
      %279 = vmatpush1.msra.mxu0 0.0
      %280 = vmatprep.subr.mxu0 0.0
      %281 = vmatpush1.msra.mxu0 0.0
      %282 = vmatprep.subr.mxu0 0.0
      %283 = vmatpush1.msra.mxu0 0.0
      %284 = vmatprep.subr.mxu0 0.0
      %285 = vmatpush1.msra.mxu0 0.0
      %286 = vmatprep.subr.mxu0 0.0
      %287 = vmatpush1.msra.mxu0 0.0
      %288 = vmatprep.subr.mxu0 0.0
      %289 = vmatpush1.msra.mxu0 0.0
      %290 = vmatprep.subr.mxu0 0.0
      %291 = vmatpush1.msra.mxu0 0.0
      %292 = vmatprep.subr.mxu0 0.0
      %293 = vmatpush1.msra.mxu0 0.0
      %294 = vmatprep.subr.mxu0 0.0
      %295 = vmatpush1.msra.mxu0 0.0
      %296 = vmatprep.subr.mxu0 0.0
      %297 = vmatpush1.msra.mxu0 0.0
      %298 = vmatprep.subr.mxu0 0.0
      %299 = vmatpush1.msra.mxu0 0.0
      %300 = vmatprep.subr.mxu0 0.0
      %301 = vmatpush1.msra.mxu0 0.0
      %302 = vmatprep.subr.mxu0 0.0
      %303 = vmatpush1.msra.mxu0 0.0
      %304 = vmatprep.subr.mxu0 0.0
      %305 = vmatpush1.msra.mxu0 0.0
      %306 = vmatprep.subr.mxu0 0.0
      %307 = vmatpush1.msra.mxu0 0.0
      %308 = vmatprep.subr.mxu0 0.0
      %309 = vmatpush1.msra.mxu0 0.0
      %310 = vmatprep.subr.mxu0 0.0
      %311 = vmatpush1.msra.mxu0 0.0
      %312 = vmatprep.subr.mxu0 0.0
      %313 = vmatpush1.msra.mxu0 0.0
      %314 = vmatprep.subr.mxu0 0.0
      %315 = vmatpush1.msra.mxu0 0.0
      %316 = vmatprep.subr.mxu0 0.0
      %317 = vmatpush1.msra.mxu0 0.0
      %318 = vmatprep.subr.mxu0 0.0
      %319 = vmatpush1.msra.mxu0 0.0
      %320 = vmatprep.subr.mxu0 0.0
      %321 = vmatpush1.msra.mxu0 0.0
      %322 = vmatprep.subr.mxu0 0.0
      %323 = vmatpush1.msra.mxu0 0.0
      %324 = vmatprep.subr.mxu0 0.0
      %325 = vmatpush1.msra.mxu0 0.0
      %326 = vmatprep.subr.mxu0 0.0
      %327 = vmatpush1.msra.mxu0 0.0
      %328 = vmatprep.subr.mxu0 0.0
      %329 = vmatpush1.msra.mxu0 0.0
      %330 = vmatprep.subr.mxu0 0.0
      %331 = vmatpush1.msra.mxu0 0.0
      %332 = vmatprep.subr.mxu0 0.0
      %333 = vmatpush1.msra.mxu0 0.0
      %334 = vmatprep.mubr.f32.mxu0 0.0
      %335 = vmatmul.mubr.f32.gmra.mrb[0].mxu0 %v190
      %v336 = vpop.f32.mrb[0].mxu0
      %v337 = vadd.f32 0.0, %v336
      %v338 = vpop.f32.mrb[0].mxu0
      %339 = vdwg.mxu0
      %v341 = vsel %vm188, %v173, 0
      %v343 = vsel %vm192, %v171, 0
      %v345 = vsel %vm192, %v178, 0
      %v347 = vsel %vm192, %v172, 0
      %349 = vmatprep.subr.mxu0 %v345
      %350 = vmatpush1.msra.mxu0 %v343
      %351 = vmatprep.subr.mxu0 0.0
      %352 = vmatpush1.msra.mxu0 0.0
      %353 = vmatprep.subr.mxu0 0.0
      %354 = vmatpush1.msra.mxu0 0.0
      %355 = vmatprep.subr.mxu0 0.0
      %356 = vmatpush1.msra.mxu0 0.0
      %357 = vmatprep.subr.mxu0 0.0
      %358 = vmatpush1.msra.mxu0 0.0
      %359 = vmatprep.subr.mxu0 0.0
      %360 = vmatpush1.msra.mxu0 0.0
      %361 = vmatprep.subr.mxu0 0.0
      %362 = vmatpush1.msra.mxu0 0.0
      %363 = vmatprep.subr.mxu0 0.0
      %364 = vmatpush1.msra.mxu0 0.0
      %365 = vmatprep.subr.mxu0 0.0
      %366 = vmatpush1.msra.mxu0 0.0
      %367 = vmatprep.subr.mxu0 0.0
      %368 = vmatpush1.msra.mxu0 0.0
      %369 = vmatprep.subr.mxu0 0.0
      %370 = vmatpush1.msra.mxu0 0.0
      %371 = vmatprep.subr.mxu0 0.0
      %372 = vmatpush1.msra.mxu0 0.0
      %373 = vmatprep.subr.mxu0 0.0
      %374 = vmatpush1.msra.mxu0 0.0
      %375 = vmatprep.subr.mxu0 0.0
      %376 = vmatpush1.msra.mxu0 0.0
      %377 = vmatprep.subr.mxu0 0.0
      %378 = vmatpush1.msra.mxu0 0.0
      %379 = vmatprep.subr.mxu0 0.0
      %380 = vmatpush1.msra.mxu0 0.0
      %381 = vmatprep.subr.mxu0 0.0
      %382 = vmatpush1.msra.mxu0 0.0
      %383 = vmatprep.subr.mxu0 0.0
      %384 = vmatpush1.msra.mxu0 0.0
      %385 = vmatprep.subr.mxu0 0.0
      %386 = vmatpush1.msra.mxu0 0.0
      %387 = vmatprep.subr.mxu0 0.0
      %388 = vmatpush1.msra.mxu0 0.0
      %389 = vmatprep.subr.mxu0 0.0
      %390 = vmatpush1.msra.mxu0 0.0
      %391 = vmatprep.subr.mxu0 0.0
      %392 = vmatpush1.msra.mxu0 0.0
      %393 = vmatprep.subr.mxu0 0.0
      %394 = vmatpush1.msra.mxu0 0.0
      %395 = vmatprep.subr.mxu0 0.0
      %396 = vmatpush1.msra.mxu0 0.0
      %397 = vmatprep.subr.mxu0 0.0
      %398 = vmatpush1.msra.mxu0 0.0
      %399 = vmatprep.subr.mxu0 0.0
      %400 = vmatpush1.msra.mxu0 0.0
      %401 = vmatprep.subr.mxu0 0.0
      %402 = vmatpush1.msra.mxu0 0.0
      %403 = vmatprep.subr.mxu0 0.0
      %404 = vmatpush1.msra.mxu0 0.0
      %405 = vmatprep.subr.mxu0 0.0
      %406 = vmatpush1.msra.mxu0 0.0
      %407 = vmatprep.subr.mxu0 0.0
      %408 = vmatpush1.msra.mxu0 0.0
      %409 = vmatprep.subr.mxu0 0.0
      %410 = vmatpush1.msra.mxu0 0.0
      %411 = vmatprep.subr.mxu0 0.0
      %412 = vmatpush1.msra.mxu0 0.0
      %413 = vmatprep.mubr.f32.mxu0 0.0
      %414 = vmatmul.mubr.f32.gmra.mrb[0].mxu0 %v341
      %v415 = vpop.f32.mrb[0].mxu0
      %v416 = vadd.f32 %v266, %v415
      %v417 = vpop.f32.mrb[0].mxu0
      %v418 = vadd.f32 %v268, %v417
      %419 = vdwg.mxu0
      %420 = vmatprep.subr.mxu0 0.0
      %421 = vmatpush1.msra.mxu0 %v347
      %422 = vmatprep.subr.mxu0 0.0
      %423 = vmatpush1.msra.mxu0 0.0
      %424 = vmatprep.subr.mxu0 0.0
      %425 = vmatpush1.msra.mxu0 0.0
      %426 = vmatprep.subr.mxu0 0.0
      %427 = vmatpush1.msra.mxu0 0.0
      %428 = vmatprep.subr.mxu0 0.0
      %429 = vmatpush1.msra.mxu0 0.0
      %430 = vmatprep.subr.mxu0 0.0
      %431 = vmatpush1.msra.mxu0 0.0
      %432 = vmatprep.subr.mxu0 0.0
      %433 = vmatpush1.msra.mxu0 0.0
      %434 = vmatprep.subr.mxu0 0.0
      %435 = vmatpush1.msra.mxu0 0.0
      %436 = vmatprep.subr.mxu0 0.0
      %437 = vmatpush1.msra.mxu0 0.0
      %438 = vmatprep.subr.mxu0 0.0
      %439 = vmatpush1.msra.mxu0 0.0
      %440 = vmatprep.subr.mxu0 0.0
      %441 = vmatpush1.msra.mxu0 0.0
      %442 = vmatprep.subr.mxu0 0.0
      %443 = vmatpush1.msra.mxu0 0.0
      %444 = vmatprep.subr.mxu0 0.0
      %445 = vmatpush1.msra.mxu0 0.0
      %446 = vmatprep.subr.mxu0 0.0
      %447 = vmatpush1.msra.mxu0 0.0
      %448 = vmatprep.subr.mxu0 0.0
      %449 = vmatpush1.msra.mxu0 0.0
      %450 = vmatprep.subr.mxu0 0.0
      %451 = vmatpush1.msra.mxu0 0.0
      %452 = vmatprep.subr.mxu0 0.0
      %453 = vmatpush1.msra.mxu0 0.0
      %454 = vmatprep.subr.mxu0 0.0
      %455 = vmatpush1.msra.mxu0 0.0
      %456 = vmatprep.subr.mxu0 0.0
      %457 = vmatpush1.msra.mxu0 0.0
      %458 = vmatprep.subr.mxu0 0.0
      %459 = vmatpush1.msra.mxu0 0.0
      %460 = vmatprep.subr.mxu0 0.0
      %461 = vmatpush1.msra.mxu0 0.0
      %462 = vmatprep.subr.mxu0 0.0
      %463 = vmatpush1.msra.mxu0 0.0
      %464 = vmatprep.subr.mxu0 0.0
      %465 = vmatpush1.msra.mxu0 0.0
      %466 = vmatprep.subr.mxu0 0.0
      %467 = vmatpush1.msra.mxu0 0.0
      %468 = vmatprep.subr.mxu0 0.0
      %469 = vmatpush1.msra.mxu0 0.0
      %470 = vmatprep.subr.mxu0 0.0
      %471 = vmatpush1.msra.mxu0 0.0
      %472 = vmatprep.subr.mxu0 0.0
      %473 = vmatpush1.msra.mxu0 0.0
      %474 = vmatprep.subr.mxu0 0.0
      %475 = vmatpush1.msra.mxu0 0.0
      %476 = vmatprep.subr.mxu0 0.0
      %477 = vmatpush1.msra.mxu0 0.0
      %478 = vmatprep.subr.mxu0 0.0
      %479 = vmatpush1.msra.mxu0 0.0
      %480 = vmatprep.subr.mxu0 0.0
      %481 = vmatpush1.msra.mxu0 0.0
      %482 = vmatprep.subr.mxu0 0.0
      %483 = vmatpush1.msra.mxu0 0.0
      %484 = vmatprep.mubr.f32.mxu0 0.0
      %485 = vmatmul.mubr.f32.gmra.mrb[0].mxu0 %v341
      %v486 = vpop.f32.mrb[0].mxu0
      %v487 = vadd.f32 %v337, %v486
      %v488 = vpop.f32.mrb[0].mxu0
      %489 = vdwg.mxu0
      %v490 = vld [vmem:[%s165] sm:$0xff]
      %v491 = vld [vmem:[%s165 + $0x8] sm:$0xf]
      %s492 = scalar_lea.vmem %s1, 8
      %v493 = vld [vmem:[%s492] sm:$0xf]
      %v496 = vcombine.high %v490, %v490
      %497 = vrot.lane.b32.xlu0 %v490, 126
      %v498 = vpop.permute.xlu0 %497
      %499 = vrot.lane.b32.xlu0 %v496, 126
      %v500 = vpop.permute.xlu0 %499
      %501 = vrot.lane.b32.xlu0 %v491, 126
      %v502 = vpop.permute.xlu0 %501
      %vm503 = vcmask 1031168
      %v504 = vsel %vm503, %v498, %v500
      %v505 = vsel %vm503, %v500, %v502
      %v507 = vsel %vm188, %v493, 0
      %v509 = vsel %vm192, %v504, 0
      %v511 = vsel %vm192, %v505, 0
      %v513 = vsel %vm192, %v502, 0
      %515 = vmatprep.subr.mxu0 %v511
      %516 = vmatpush1.msra.mxu0 %v509
      %517 = vmatprep.subr.mxu0 0.0
      %518 = vmatpush1.msra.mxu0 0.0
      %519 = vmatprep.subr.mxu0 0.0
      %520 = vmatpush1.msra.mxu0 0.0
      %521 = vmatprep.subr.mxu0 0.0
      %522 = vmatpush1.msra.mxu0 0.0
      %523 = vmatprep.subr.mxu0 0.0
      %524 = vmatpush1.msra.mxu0 0.0
      %525 = vmatprep.subr.mxu0 0.0
      %526 = vmatpush1.msra.mxu0 0.0
      %527 = vmatprep.subr.mxu0 0.0
      %528 = vmatpush1.msra.mxu0 0.0
      %529 = vmatprep.subr.mxu0 0.0
      %530 = vmatpush1.msra.mxu0 0.0
      %531 = vmatprep.subr.mxu0 0.0
      %532 = vmatpush1.msra.mxu0 0.0
      %533 = vmatprep.subr.mxu0 0.0
      %534 = vmatpush1.msra.mxu0 0.0
      %535 = vmatprep.subr.mxu0 0.0
      %536 = vmatpush1.msra.mxu0 0.0
      %537 = vmatprep.subr.mxu0 0.0
      %538 = vmatpush1.msra.mxu0 0.0
      %539 = vmatprep.subr.mxu0 0.0
      %540 = vmatpush1.msra.mxu0 0.0
      %541 = vmatprep.subr.mxu0 0.0
      %542 = vmatpush1.msra.mxu0 0.0
      %543 = vmatprep.subr.mxu0 0.0
      %544 = vmatpush1.msra.mxu0 0.0
      %545 = vmatprep.subr.mxu0 0.0
      %546 = vmatpush1.msra.mxu0 0.0
      %547 = vmatprep.subr.mxu0 0.0
      %548 = vmatpush1.msra.mxu0 0.0
      %549 = vmatprep.subr.mxu0 0.0
      %550 = vmatpush1.msra.mxu0 0.0
      %551 = vmatprep.subr.mxu0 0.0
      %552 = vmatpush1.msra.mxu0 0.0
      %553 = vmatprep.subr.mxu0 0.0
      %554 = vmatpush1.msra.mxu0 0.0
      %555 = vmatprep.subr.mxu0 0.0
      %556 = vmatpush1.msra.mxu0 0.0
      %557 = vmatprep.subr.mxu0 0.0
      %558 = vmatpush1.msra.mxu0 0.0
      %559 = vmatprep.subr.mxu0 0.0
      %560 = vmatpush1.msra.mxu0 0.0
      %561 = vmatprep.subr.mxu0 0.0
      %562 = vmatpush1.msra.mxu0 0.0
      %563 = vmatprep.subr.mxu0 0.0
      %564 = vmatpush1.msra.mxu0 0.0
      %565 = vmatprep.subr.mxu0 0.0
      %566 = vmatpush1.msra.mxu0 0.0
      %567 = vmatprep.subr.mxu0 0.0
      %568 = vmatpush1.msra.mxu0 0.0
      %569 = vmatprep.subr.mxu0 0.0
      %570 = vmatpush1.msra.mxu0 0.0
      %571 = vmatprep.subr.mxu0 0.0
      %572 = vmatpush1.msra.mxu0 0.0
      %573 = vmatprep.subr.mxu0 0.0
      %574 = vmatpush1.msra.mxu0 0.0
      %575 = vmatprep.subr.mxu0 0.0
      %576 = vmatpush1.msra.mxu0 0.0
      %577 = vmatprep.subr.mxu0 0.0
      %578 = vmatpush1.msra.mxu0 0.0
      %579 = vmatprep.mubr.f32.mxu0 0.0
      %580 = vmatmul.mubr.f32.gmra.mrb[0].mxu0 %v507
      %v581 = vpop.f32.mrb[0].mxu0
      %v582 = vadd.f32 0.0, %v581
      %v583 = vpop.f32.mrb[0].mxu0
      %v584 = vadd.f32 0.0, %v583
      %585 = vdwg.mxu0
      %586 = vmatprep.subr.mxu0 0.0
      %587 = vmatpush1.msra.mxu0 %v513
      %588 = vmatprep.subr.mxu0 0.0
      %589 = vmatpush1.msra.mxu0 0.0
      %590 = vmatprep.subr.mxu0 0.0
      %591 = vmatpush1.msra.mxu0 0.0
      %592 = vmatprep.subr.mxu0 0.0
      %593 = vmatpush1.msra.mxu0 0.0
      %594 = vmatprep.subr.mxu0 0.0
      %595 = vmatpush1.msra.mxu0 0.0
      %596 = vmatprep.subr.mxu0 0.0
      %597 = vmatpush1.msra.mxu0 0.0
      %598 = vmatprep.subr.mxu0 0.0
      %599 = vmatpush1.msra.mxu0 0.0
      %600 = vmatprep.subr.mxu0 0.0
      %601 = vmatpush1.msra.mxu0 0.0
      %602 = vmatprep.subr.mxu0 0.0
      %603 = vmatpush1.msra.mxu0 0.0
      %604 = vmatprep.subr.mxu0 0.0
      %605 = vmatpush1.msra.mxu0 0.0
      %606 = vmatprep.subr.mxu0 0.0
      %607 = vmatpush1.msra.mxu0 0.0
      %608 = vmatprep.subr.mxu0 0.0
      %609 = vmatpush1.msra.mxu0 0.0
      %610 = vmatprep.subr.mxu0 0.0
      %611 = vmatpush1.msra.mxu0 0.0
      %612 = vmatprep.subr.mxu0 0.0
      %613 = vmatpush1.msra.mxu0 0.0
      %614 = vmatprep.subr.mxu0 0.0
      %615 = vmatpush1.msra.mxu0 0.0
      %616 = vmatprep.subr.mxu0 0.0
      %617 = vmatpush1.msra.mxu0 0.0
      %618 = vmatprep.subr.mxu0 0.0
      %619 = vmatpush1.msra.mxu0 0.0
      %620 = vmatprep.subr.mxu0 0.0
      %621 = vmatpush1.msra.mxu0 0.0
      %622 = vmatprep.subr.mxu0 0.0
      %623 = vmatpush1.msra.mxu0 0.0
      %624 = vmatprep.subr.mxu0 0.0
      %625 = vmatpush1.msra.mxu0 0.0
      %626 = vmatprep.subr.mxu0 0.0
      %627 = vmatpush1.msra.mxu0 0.0
      %628 = vmatprep.subr.mxu0 0.0
      %629 = vmatpush1.msra.mxu0 0.0
      %630 = vmatprep.subr.mxu0 0.0
      %631 = vmatpush1.msra.mxu0 0.0
      %632 = vmatprep.subr.mxu0 0.0
      %633 = vmatpush1.msra.mxu0 0.0
      %634 = vmatprep.subr.mxu0 0.0
      %635 = vmatpush1.msra.mxu0 0.0
      %636 = vmatprep.subr.mxu0 0.0
      %637 = vmatpush1.msra.mxu0 0.0
      %638 = vmatprep.subr.mxu0 0.0
      %639 = vmatpush1.msra.mxu0 0.0
      %640 = vmatprep.subr.mxu0 0.0
      %641 = vmatpush1.msra.mxu0 0.0
      %642 = vmatprep.subr.mxu0 0.0
      %643 = vmatpush1.msra.mxu0 0.0
      %644 = vmatprep.subr.mxu0 0.0
      %645 = vmatpush1.msra.mxu0 0.0
      %646 = vmatprep.subr.mxu0 0.0
      %647 = vmatpush1.msra.mxu0 0.0
      %648 = vmatprep.subr.mxu0 0.0
      %649 = vmatpush1.msra.mxu0 0.0
      %650 = vmatprep.mubr.f32.mxu0 0.0
      %651 = vmatmul.mubr.f32.gmra.mrb[0].mxu0 %v507
      %v652 = vpop.f32.mrb[0].mxu0
      %v653 = vadd.f32 0.0, %v652
      %v654 = vpop.f32.mrb[0].mxu0
      %655 = vdwg.mxu0
      %v656 = vadd.f32 %v416, %v582
      %v657 = vadd.f32 %v418, %v584
      %v658 = vadd.f32 %v487, %v653
      %v659 = vld [vmem:[%s165] sm:$0xff]
      %v660 = vld [vmem:[%s165 + $0x8] sm:$0xf]
      %s661 = scalar_lea.vmem %s1, 12
      %v662 = vld [vmem:[%s661] sm:$0xf]
      %v665 = vcombine.high %v659, %v659
      %666 = vrot.lane.b32.xlu0 %v659, 110
      %v667 = vpop.permute.xlu0 %666
      %668 = vrot.lane.b32.xlu0 %v665, 110
      %v669 = vpop.permute.xlu0 %668
      %670 = vrot.lane.b32.xlu0 %v660, 110
      %v671 = vpop.permute.xlu0 %670
      %vm672 = vcmask 900096
      %v673 = vsel %vm672, %v667, %v669
      %v674 = vsel %vm672, %v669, %v671
      %v676 = vsel %vm188, %v662, 0
      %v678 = vsel %vm192, %v673, 0
      %v680 = vsel %vm192, %v674, 0
      %v682 = vsel %vm192, %v671, 0
      %684 = vmatprep.subr.mxu0 %v680
      %685 = vmatpush1.msra.mxu0 %v678
      %686 = vmatprep.subr.mxu0 0.0
      %687 = vmatpush1.msra.mxu0 0.0
      %688 = vmatprep.subr.mxu0 0.0
      %689 = vmatpush1.msra.mxu0 0.0
      %690 = vmatprep.subr.mxu0 0.0
      %691 = vmatpush1.msra.mxu0 0.0
      %692 = vmatprep.subr.mxu0 0.0
      %693 = vmatpush1.msra.mxu0 0.0
      %694 = vmatprep.subr.mxu0 0.0
      %695 = vmatpush1.msra.mxu0 0.0
      %696 = vmatprep.subr.mxu0 0.0
      %697 = vmatpush1.msra.mxu0 0.0
      %698 = vmatprep.subr.mxu0 0.0
      %699 = vmatpush1.msra.mxu0 0.0
      %700 = vmatprep.subr.mxu0 0.0
      %701 = vmatpush1.msra.mxu0 0.0
      %702 = vmatprep.subr.mxu0 0.0
      %703 = vmatpush1.msra.mxu0 0.0
      %704 = vmatprep.subr.mxu0 0.0
      %705 = vmatpush1.msra.mxu0 0.0
      %706 = vmatprep.subr.mxu0 0.0
      %707 = vmatpush1.msra.mxu0 0.0
      %708 = vmatprep.subr.mxu0 0.0
      %709 = vmatpush1.msra.mxu0 0.0
      %710 = vmatprep.subr.mxu0 0.0
      %711 = vmatpush1.msra.mxu0 0.0
      %712 = vmatprep.subr.mxu0 0.0
      %713 = vmatpush1.msra.mxu0 0.0
      %714 = vmatprep.subr.mxu0 0.0
      %715 = vmatpush1.msra.mxu0 0.0
      %716 = vmatprep.subr.mxu0 0.0
      %717 = vmatpush1.msra.mxu0 0.0
      %718 = vmatprep.subr.mxu0 0.0
      %719 = vmatpush1.msra.mxu0 0.0
      %720 = vmatprep.subr.mxu0 0.0
      %721 = vmatpush1.msra.mxu0 0.0
      %722 = vmatprep.subr.mxu0 0.0
      %723 = vmatpush1.msra.mxu0 0.0
      %724 = vmatprep.subr.mxu0 0.0
      %725 = vmatpush1.msra.mxu0 0.0
      %726 = vmatprep.subr.mxu0 0.0
      %727 = vmatpush1.msra.mxu0 0.0
      %728 = vmatprep.subr.mxu0 0.0
      %729 = vmatpush1.msra.mxu0 0.0
      %730 = vmatprep.subr.mxu0 0.0
      %731 = vmatpush1.msra.mxu0 0.0
      %732 = vmatprep.subr.mxu0 0.0
      %733 = vmatpush1.msra.mxu0 0.0
      %734 = vmatprep.subr.mxu0 0.0
      %735 = vmatpush1.msra.mxu0 0.0
      %736 = vmatprep.subr.mxu0 0.0
      %737 = vmatpush1.msra.mxu0 0.0
      %738 = vmatprep.subr.mxu0 0.0
      %739 = vmatpush1.msra.mxu0 0.0
      %740 = vmatprep.subr.mxu0 0.0
      %741 = vmatpush1.msra.mxu0 0.0
      %742 = vmatprep.subr.mxu0 0.0
      %743 = vmatpush1.msra.mxu0 0.0
      %744 = vmatprep.subr.mxu0 0.0
      %745 = vmatpush1.msra.mxu0 0.0
      %746 = vmatprep.subr.mxu0 0.0
      %747 = vmatpush1.msra.mxu0 0.0
      %748 = vmatprep.mubr.f32.mxu0 0.0
      %749 = vmatmul.mubr.f32.gmra.mrb[0].mxu0 %v676
      %v750 = vpop.f32.mrb[0].mxu0
      %v751 = vadd.f32 0.0, %v750
      %v752 = vpop.f32.mrb[0].mxu0
      %v753 = vadd.f32 0.0, %v752
      %754 = vdwg.mxu0
      %755 = vmatprep.subr.mxu0 0.0
      %756 = vmatpush1.msra.mxu0 %v682
      %757 = vmatprep.subr.mxu0 0.0
      %758 = vmatpush1.msra.mxu0 0.0
      %759 = vmatprep.subr.mxu0 0.0
      %760 = vmatpush1.msra.mxu0 0.0
      %761 = vmatprep.subr.mxu0 0.0
      %762 = vmatpush1.msra.mxu0 0.0
      %763 = vmatprep.subr.mxu0 0.0
      %764 = vmatpush1.msra.mxu0 0.0
      %765 = vmatprep.subr.mxu0 0.0
      %766 = vmatpush1.msra.mxu0 0.0
      %767 = vmatprep.subr.mxu0 0.0
      %768 = vmatpush1.msra.mxu0 0.0
      %769 = vmatprep.subr.mxu0 0.0
      %770 = vmatpush1.msra.mxu0 0.0
      %771 = vmatprep.subr.mxu0 0.0
      %772 = vmatpush1.msra.mxu0 0.0
      %773 = vmatprep.subr.mxu0 0.0
      %774 = vmatpush1.msra.mxu0 0.0
      %775 = vmatprep.subr.mxu0 0.0
      %776 = vmatpush1.msra.mxu0 0.0
      %777 = vmatprep.subr.mxu0 0.0
      %778 = vmatpush1.msra.mxu0 0.0
      %779 = vmatprep.subr.mxu0 0.0
      %780 = vmatpush1.msra.mxu0 0.0
      %781 = vmatprep.subr.mxu0 0.0
      %782 = vmatpush1.msra.mxu0 0.0
      %783 = vmatprep.subr.mxu0 0.0
      %784 = vmatpush1.msra.mxu0 0.0
      %785 = vmatprep.subr.mxu0 0.0
      %786 = vmatpush1.msra.mxu0 0.0
      %787 = vmatprep.subr.mxu0 0.0
      %788 = vmatpush1.msra.mxu0 0.0
      %789 = vmatprep.subr.mxu0 0.0
      %790 = vmatpush1.msra.mxu0 0.0
      %791 = vmatprep.subr.mxu0 0.0
      %792 = vmatpush1.msra.mxu0 0.0
      %793 = vmatprep.subr.mxu0 0.0
      %794 = vmatpush1.msra.mxu0 0.0
      %795 = vmatprep.subr.mxu0 0.0
      %796 = vmatpush1.msra.mxu0 0.0
      %797 = vmatprep.subr.mxu0 0.0
      %798 = vmatpush1.msra.mxu0 0.0
      %799 = vmatprep.subr.mxu0 0.0
      %800 = vmatpush1.msra.mxu0 0.0
      %801 = vmatprep.subr.mxu0 0.0
      %802 = vmatpush1.msra.mxu0 0.0
      %803 = vmatprep.subr.mxu0 0.0
      %804 = vmatpush1.msra.mxu0 0.0
      %805 = vmatprep.subr.mxu0 0.0
      %806 = vmatpush1.msra.mxu0 0.0
      %807 = vmatprep.subr.mxu0 0.0
      %808 = vmatpush1.msra.mxu0 0.0
      %809 = vmatprep.subr.mxu0 0.0
      %810 = vmatpush1.msra.mxu0 0.0
      %811 = vmatprep.subr.mxu0 0.0
      %812 = vmatpush1.msra.mxu0 0.0
      %813 = vmatprep.subr.mxu0 0.0
      %814 = vmatpush1.msra.mxu0 0.0
      %815 = vmatprep.subr.mxu0 0.0
      %816 = vmatpush1.msra.mxu0 0.0
      %817 = vmatprep.subr.mxu0 0.0
      %818 = vmatpush1.msra.mxu0 0.0
      %819 = vmatprep.mubr.f32.mxu0 0.0
      %820 = vmatmul.mubr.f32.gmra.mrb[0].mxu0 %v676
      %v821 = vpop.f32.mrb[0].mxu0
      %v822 = vadd.f32 0.0, %v821
      %v823 = vpop.f32.mrb[0].mxu0
      %824 = vdwg.mxu0
      %v825 = vadd.f32 %v656, %v751
      %v826 = vadd.f32 %v657, %v753
      %v827 = vadd.f32 %v658, %v822
      %v828 = vld [vmem:[%s165] sm:$0xff]
      %v829 = vld [vmem:[%s165 + $0x8] sm:$0xf]
      %s830 = scalar_lea.vmem %s1, 16
      %v831 = vld [vmem:[%s830] sm:$0xf]
      %v834 = vcombine.high %v828, %v828
      %835 = vrot.lane.b32.xlu0 %v828, 109
      %v836 = vpop.permute.xlu0 %835
      %837 = vrot.lane.b32.xlu0 %v834, 109
      %v838 = vpop.permute.xlu0 %837
      %839 = vrot.lane.b32.xlu0 %v829, 109
      %v840 = vpop.permute.xlu0 %839
      %vm841 = vcmask 891904
      %v842 = vsel %vm841, %v836, %v838
      %v843 = vsel %vm841, %v838, %v840
      %v845 = vsel %vm188, %v831, 0
      %v847 = vsel %vm192, %v842, 0
      %v849 = vsel %vm192, %v843, 0
      %v851 = vsel %vm192, %v840, 0
      %853 = vmatprep.subr.mxu0 %v849
      %854 = vmatpush1.msra.mxu0 %v847
      %855 = vmatprep.subr.mxu0 0.0
      %856 = vmatpush1.msra.mxu0 0.0
      %857 = vmatprep.subr.mxu0 0.0
      %858 = vmatpush1.msra.mxu0 0.0
      %859 = vmatprep.subr.mxu0 0.0
      %860 = vmatpush1.msra.mxu0 0.0
      %861 = vmatprep.subr.mxu0 0.0
      %862 = vmatpush1.msra.mxu0 0.0
      %863 = vmatprep.subr.mxu0 0.0
      %864 = vmatpush1.msra.mxu0 0.0
      %865 = vmatprep.subr.mxu0 0.0
      %866 = vmatpush1.msra.mxu0 0.0
      %867 = vmatprep.subr.mxu0 0.0
      %868 = vmatpush1.msra.mxu0 0.0
      %869 = vmatprep.subr.mxu0 0.0
      %870 = vmatpush1.msra.mxu0 0.0
      %871 = vmatprep.subr.mxu0 0.0
      %872 = vmatpush1.msra.mxu0 0.0
      %873 = vmatprep.subr.mxu0 0.0
      %874 = vmatpush1.msra.mxu0 0.0
      %875 = vmatprep.subr.mxu0 0.0
      %876 = vmatpush1.msra.mxu0 0.0
      %877 = vmatprep.subr.mxu0 0.0
      %878 = vmatpush1.msra.mxu0 0.0
      %879 = vmatprep.subr.mxu0 0.0
      %880 = vmatpush1.msra.mxu0 0.0
      %881 = vmatprep.subr.mxu0 0.0
      %882 = vmatpush1.msra.mxu0 0.0
      %883 = vmatprep.subr.mxu0 0.0
      %884 = vmatpush1.msra.mxu0 0.0
      %885 = vmatprep.subr.mxu0 0.0
      %886 = vmatpush1.msra.mxu0 0.0
      %887 = vmatprep.subr.mxu0 0.0
      %888 = vmatpush1.msra.mxu0 0.0
      %889 = vmatprep.subr.mxu0 0.0
      %890 = vmatpush1.msra.mxu0 0.0
      %891 = vmatprep.subr.mxu0 0.0
      %892 = vmatpush1.msra.mxu0 0.0
      %893 = vmatprep.subr.mxu0 0.0
      %894 = vmatpush1.msra.mxu0 0.0
      %895 = vmatprep.subr.mxu0 0.0
      %896 = vmatpush1.msra.mxu0 0.0
      %897 = vmatprep.subr.mxu0 0.0
      %898 = vmatpush1.msra.mxu0 0.0
      %899 = vmatprep.subr.mxu0 0.0
      %900 = vmatpush1.msra.mxu0 0.0
      %901 = vmatprep.subr.mxu0 0.0
      %902 = vmatpush1.msra.mxu0 0.0
      %903 = vmatprep.subr.mxu0 0.0
      %904 = vmatpush1.msra.mxu0 0.0
      %905 = vmatprep.subr.mxu0 0.0
      %906 = vmatpush1.msra.mxu0 0.0
      %907 = vmatprep.subr.mxu0 0.0
      %908 = vmatpush1.msra.mxu0 0.0
      %909 = vmatprep.subr.mxu0 0.0
      %910 = vmatpush1.msra.mxu0 0.0
      %911 = vmatprep.subr.mxu0 0.0
      %912 = vmatpush1.msra.mxu0 0.0
      %913 = vmatprep.subr.mxu0 0.0
      %914 = vmatpush1.msra.mxu0 0.0
      %915 = vmatprep.subr.mxu0 0.0
      %916 = vmatpush1.msra.mxu0 0.0
      %917 = vmatprep.mubr.f32.mxu0 0.0
      %918 = vmatmul.mubr.f32.gmra.mrb[0].mxu0 %v845
      %v919 = vpop.f32.mrb[0].mxu0
      %v920 = vadd.f32 0.0, %v919
      %v921 = vpop.f32.mrb[0].mxu0
      %v922 = vadd.f32 0.0, %v921
      %923 = vdwg.mxu0
      %924 = vmatprep.subr.mxu0 0.0
      %925 = vmatpush1.msra.mxu0 %v851
      %926 = vmatprep.subr.mxu0 0.0
      %927 = vmatpush1.msra.mxu0 0.0
      %928 = vmatprep.subr.mxu0 0.0
      %929 = vmatpush1.msra.mxu0 0.0
      %930 = vmatprep.subr.mxu0 0.0
      %931 = vmatpush1.msra.mxu0 0.0
      %932 = vmatprep.subr.mxu0 0.0
      %933 = vmatpush1.msra.mxu0 0.0
      %934 = vmatprep.subr.mxu0 0.0
      %935 = vmatpush1.msra.mxu0 0.0
      %936 = vmatprep.subr.mxu0 0.0
      %937 = vmatpush1.msra.mxu0 0.0
      %938 = vmatprep.subr.mxu0 0.0
      %939 = vmatpush1.msra.mxu0 0.0
      %940 = vmatprep.subr.mxu0 0.0
      %941 = vmatpush1.msra.mxu0 0.0
      %942 = vmatprep.subr.mxu0 0.0
      %943 = vmatpush1.msra.mxu0 0.0
      %944 = vmatprep.subr.mxu0 0.0
      %945 = vmatpush1.msra.mxu0 0.0
      %946 = vmatprep.subr.mxu0 0.0
      %947 = vmatpush1.msra.mxu0 0.0
      %948 = vmatprep.subr.mxu0 0.0
      %949 = vmatpush1.msra.mxu0 0.0
      %950 = vmatprep.subr.mxu0 0.0
      %951 = vmatpush1.msra.mxu0 0.0
      %952 = vmatprep.subr.mxu0 0.0
      %953 = vmatpush1.msra.mxu0 0.0
      %954 = vmatprep.subr.mxu0 0.0
      %955 = vmatpush1.msra.mxu0 0.0
      %956 = vmatprep.subr.mxu0 0.0
      %957 = vmatpush1.msra.mxu0 0.0
      %958 = vmatprep.subr.mxu0 0.0
      %959 = vmatpush1.msra.mxu0 0.0
      %960 = vmatprep.subr.mxu0 0.0
      %961 = vmatpush1.msra.mxu0 0.0
      %962 = vmatprep.subr.mxu0 0.0
      %963 = vmatpush1.msra.mxu0 0.0
      %964 = vmatprep.subr.mxu0 0.0
      %965 = vmatpush1.msra.mxu0 0.0
      %966 = vmatprep.subr.mxu0 0.0
      %967 = vmatpush1.msra.mxu0 0.0
      %968 = vmatprep.subr.mxu0 0.0
      %969 = vmatpush1.msra.mxu0 0.0
      %970 = vmatprep.subr.mxu0 0.0
      %971 = vmatpush1.msra.mxu0 0.0
      %972 = vmatprep.subr.mxu0 0.0
      %973 = vmatpush1.msra.mxu0 0.0
      %974 = vmatprep.subr.mxu0 0.0
      %975 = vmatpush1.msra.mxu0 0.0
      %976 = vmatprep.subr.mxu0 0.0
      %977 = vmatpush1.msra.mxu0 0.0
      %978 = vmatprep.subr.mxu0 0.0
      %979 = vmatpush1.msra.mxu0 0.0
      %980 = vmatprep.subr.mxu0 0.0
      %981 = vmatpush1.msra.mxu0 0.0
      %982 = vmatprep.subr.mxu0 0.0
      %983 = vmatpush1.msra.mxu0 0.0
      %984 = vmatprep.subr.mxu0 0.0
      %985 = vmatpush1.msra.mxu0 0.0
      %986 = vmatprep.subr.mxu0 0.0
      %987 = vmatpush1.msra.mxu0 0.0
      %988 = vmatprep.mubr.f32.mxu0 0.0
      %989 = vmatmul.mubr.f32.gmra.mrb[0].mxu0 %v845
      %v990 = vpop.f32.mrb[0].mxu0
      %v991 = vadd.f32 0.0, %v990
      %v992 = vpop.f32.mrb[0].mxu0
      %993 = vdwg.mxu0
      %v994 = vadd.f32 %v825, %v920
      %v995 = vadd.f32 %v826, %v922
      %v996 = vadd.f32 %v827, %v991
      %v997 = vld [vmem:[%s165] sm:$0xff]
      %v998 = vld [vmem:[%s165 + $0x8] sm:$0xf]
      %s999 = scalar_lea.vmem %s1, 20
      %v1000 = vld [vmem:[%s999] sm:$0xf]
      %v1003 = vcombine.high %v997, %v997
      %1004 = vrot.lane.b32.xlu0 %v997, 108
      %v1005 = vpop.permute.xlu0 %1004
      %1006 = vrot.lane.b32.xlu0 %v1003, 108
      %v1007 = vpop.permute.xlu0 %1006
      %1008 = vrot.lane.b32.xlu0 %v998, 108
      %v1009 = vpop.permute.xlu0 %1008
      %vm1010 = vcmask 883712
      %v1011 = vsel %vm1010, %v1005, %v1007
      %v1012 = vsel %vm1010, %v1007, %v1009
      %v1014 = vsel %vm188, %v1000, 0
      %v1016 = vsel %vm192, %v1011, 0
      %v1018 = vsel %vm192, %v1012, 0
      %v1020 = vsel %vm192, %v1009, 0
      %1022 = vmatprep.subr.mxu0 %v1018
      %1023 = vmatpush1.msra.mxu0 %v1016
      %1024 = vmatprep.subr.mxu0 0.0
      %1025 = vmatpush1.msra.mxu0 0.0
      %1026 = vmatprep.subr.mxu0 0.0
      %1027 = vmatpush1.msra.mxu0 0.0
      %1028 = vmatprep.subr.mxu0 0.0
      %1029 = vmatpush1.msra.mxu0 0.0
      %1030 = vmatprep.subr.mxu0 0.0
      %1031 = vmatpush1.msra.mxu0 0.0
      %1032 = vmatprep.subr.mxu0 0.0
      %1033 = vmatpush1.msra.mxu0 0.0
      %1034 = vmatprep.subr.mxu0 0.0
      %1035 = vmatpush1.msra.mxu0 0.0
      %1036 = vmatprep.subr.mxu0 0.0
      %1037 = vmatpush1.msra.mxu0 0.0
      %1038 = vmatprep.subr.mxu0 0.0
      %1039 = vmatpush1.msra.mxu0 0.0
      %1040 = vmatprep.subr.mxu0 0.0
      %1041 = vmatpush1.msra.mxu0 0.0
      %1042 = vmatprep.subr.mxu0 0.0
      %1043 = vmatpush1.msra.mxu0 0.0
      %1044 = vmatprep.subr.mxu0 0.0
      %1045 = vmatpush1.msra.mxu0 0.0
      %1046 = vmatprep.subr.mxu0 0.0
      %1047 = vmatpush1.msra.mxu0 0.0
      %1048 = vmatprep.subr.mxu0 0.0
      %1049 = vmatpush1.msra.mxu0 0.0
      %1050 = vmatprep.subr.mxu0 0.0
      %1051 = vmatpush1.msra.mxu0 0.0
      %1052 = vmatprep.subr.mxu0 0.0
      %1053 = vmatpush1.msra.mxu0 0.0
      %1054 = vmatprep.subr.mxu0 0.0
      %1055 = vmatpush1.msra.mxu0 0.0
      %1056 = vmatprep.subr.mxu0 0.0
      %1057 = vmatpush1.msra.mxu0 0.0
      %1058 = vmatprep.subr.mxu0 0.0
      %1059 = vmatpush1.msra.mxu0 0.0
      %1060 = vmatprep.subr.mxu0 0.0
      %1061 = vmatpush1.msra.mxu0 0.0
      %1062 = vmatprep.subr.mxu0 0.0
      %1063 = vmatpush1.msra.mxu0 0.0
      %1064 = vmatprep.subr.mxu0 0.0
      %1065 = vmatpush1.msra.mxu0 0.0
      %1066 = vmatprep.subr.mxu0 0.0
      %1067 = vmatpush1.msra.mxu0 0.0
      %1068 = vmatprep.subr.mxu0 0.0
      %1069 = vmatpush1.msra.mxu0 0.0
      %1070 = vmatprep.subr.mxu0 0.0
      %1071 = vmatpush1.msra.mxu0 0.0
      %1072 = vmatprep.subr.mxu0 0.0
      %1073 = vmatpush1.msra.mxu0 0.0
      %1074 = vmatprep.subr.mxu0 0.0
      %1075 = vmatpush1.msra.mxu0 0.0
      %1076 = vmatprep.subr.mxu0 0.0
      %1077 = vmatpush1.msra.mxu0 0.0
      %1078 = vmatprep.subr.mxu0 0.0
      %1079 = vmatpush1.msra.mxu0 0.0
      %1080 = vmatprep.subr.mxu0 0.0
      %1081 = vmatpush1.msra.mxu0 0.0
      %1082 = vmatprep.subr.mxu0 0.0
      %1083 = vmatpush1.msra.mxu0 0.0
      %1084 = vmatprep.subr.mxu0 0.0
      %1085 = vmatpush1.msra.mxu0 0.0
      %1086 = vmatprep.mubr.f32.mxu0 0.0
      %1087 = vmatmul.mubr.f32.gmra.mrb[0].mxu0 %v1014
      %v1088 = vpop.f32.mrb[0].mxu0
      %v1089 = vadd.f32 0.0, %v1088
      %v1090 = vpop.f32.mrb[0].mxu0
      %v1091 = vadd.f32 0.0, %v1090
      %1092 = vdwg.mxu0
      %1093 = vmatprep.subr.mxu0 0.0
      %1094 = vmatpush1.msra.mxu0 %v1020
      %1095 = vmatprep.subr.mxu0 0.0
      %1096 = vmatpush1.msra.mxu0 0.0
      %1097 = vmatprep.subr.mxu0 0.0
      %1098 = vmatpush1.msra.mxu0 0.0
      %1099 = vmatprep.subr.mxu0 0.0
      %1100 = vmatpush1.msra.mxu0 0.0
      %1101 = vmatprep.subr.mxu0 0.0
      %1102 = vmatpush1.msra.mxu0 0.0
      %1103 = vmatprep.subr.mxu0 0.0
      %1104 = vmatpush1.msra.mxu0 0.0
      %1105 = vmatprep.subr.mxu0 0.0
      %1106 = vmatpush1.msra.mxu0 0.0
      %1107 = vmatprep.subr.mxu0 0.0
      %1108 = vmatpush1.msra.mxu0 0.0
      %1109 = vmatprep.subr.mxu0 0.0
      %1110 = vmatpush1.msra.mxu0 0.0
      %1111 = vmatprep.subr.mxu0 0.0
      %1112 = vmatpush1.msra.mxu0 0.0
      %1113 = vmatprep.subr.mxu0 0.0
      %1114 = vmatpush1.msra.mxu0 0.0
      %1115 = vmatprep.subr.mxu0 0.0
      %1116 = vmatpush1.msra.mxu0 0.0
      %1117 = vmatprep.subr.mxu0 0.0
      %1118 = vmatpush1.msra.mxu0 0.0
      %1119 = vmatprep.subr.mxu0 0.0
      %1120 = vmatpush1.msra.mxu0 0.0
      %1121 = vmatprep.subr.mxu0 0.0
      %1122 = vmatpush1.msra.mxu0 0.0
      %1123 = vmatprep.subr.mxu0 0.0
      %1124 = vmatpush1.msra.mxu0 0.0
      %1125 = vmatprep.subr.mxu0 0.0
      %1126 = vmatpush1.msra.mxu0 0.0
      %1127 = vmatprep.subr.mxu0 0.0
      %1128 = vmatpush1.msra.mxu0 0.0
      %1129 = vmatprep.subr.mxu0 0.0
      %1130 = vmatpush1.msra.mxu0 0.0
      %1131 = vmatprep.subr.mxu0 0.0
      %1132 = vmatpush1.msra.mxu0 0.0
      %1133 = vmatprep.subr.mxu0 0.0
      %1134 = vmatpush1.msra.mxu0 0.0
      %1135 = vmatprep.subr.mxu0 0.0
      %1136 = vmatpush1.msra.mxu0 0.0
      %1137 = vmatprep.subr.mxu0 0.0
      %1138 = vmatpush1.msra.mxu0 0.0
      %1139 = vmatprep.subr.mxu0 0.0
      %1140 = vmatpush1.msra.mxu0 0.0
      %1141 = vmatprep.subr.mxu0 0.0
      %1142 = vmatpush1.msra.mxu0 0.0
      %1143 = vmatprep.subr.mxu0 0.0
      %1144 = vmatpush1.msra.mxu0 0.0
      %1145 = vmatprep.subr.mxu0 0.0
      %1146 = vmatpush1.msra.mxu0 0.0
      %1147 = vmatprep.subr.mxu0 0.0
      %1148 = vmatpush1.msra.mxu0 0.0
      %1149 = vmatprep.subr.mxu0 0.0
      %1150 = vmatpush1.msra.mxu0 0.0
      %1151 = vmatprep.subr.mxu0 0.0
      %1152 = vmatpush1.msra.mxu0 0.0
      %1153 = vmatprep.subr.mxu0 0.0
      %1154 = vmatpush1.msra.mxu0 0.0
      %1155 = vmatprep.subr.mxu0 0.0
      %1156 = vmatpush1.msra.mxu0 0.0
      %1157 = vmatprep.mubr.f32.mxu0 0.0
      %1158 = vmatmul.mubr.f32.gmra.mrb[0].mxu0 %v1014
      %v1159 = vpop.f32.mrb[0].mxu0
      %v1160 = vadd.f32 0.0, %v1159
      %v1161 = vpop.f32.mrb[0].mxu0
      %1162 = vdwg.mxu0
      %v1163 = vadd.f32 %v994, %v1089
      %v1164 = vadd.f32 %v995, %v1091
      %v1165 = vadd.f32 %v996, %v1160
      %v1166 = vld [vmem:[%s165] sm:$0xff]
      %v1167 = vld [vmem:[%s165 + $0x8] sm:$0xf]
      %s1168 = scalar_lea.vmem %s1, 24
      %v1169 = vld [vmem:[%s1168] sm:$0xf]
      %v1172 = vcombine.high %v1166, %v1166
      %1173 = vrot.lane.b32.xlu0 %v1166, 92
      %v1174 = vpop.permute.xlu0 %1173
      %1175 = vrot.lane.b32.xlu0 %v1172, 92
      %v1176 = vpop.permute.xlu0 %1175
      %1177 = vrot.lane.b32.xlu0 %v1167, 92
      %v1178 = vpop.permute.xlu0 %1177
      %vm1179 = vcmask 752640
      %v1180 = vsel %vm1179, %v1174, %v1176
      %v1181 = vsel %vm1179, %v1176, %v1178
      %v1183 = vsel %vm188, %v1169, 0
      %v1185 = vsel %vm192, %v1180, 0
      %v1187 = vsel %vm192, %v1181, 0
      %v1189 = vsel %vm192, %v1178, 0
      %1191 = vmatprep.subr.mxu0 %v1187
      %1192 = vmatpush1.msra.mxu0 %v1185
      %1193 = vmatprep.subr.mxu0 0.0
      %1194 = vmatpush1.msra.mxu0 0.0
      %1195 = vmatprep.subr.mxu0 0.0
      %1196 = vmatpush1.msra.mxu0 0.0
      %1197 = vmatprep.subr.mxu0 0.0
      %1198 = vmatpush1.msra.mxu0 0.0
      %1199 = vmatprep.subr.mxu0 0.0
      %1200 = vmatpush1.msra.mxu0 0.0
      %1201 = vmatprep.subr.mxu0 0.0
      %1202 = vmatpush1.msra.mxu0 0.0
      %1203 = vmatprep.subr.mxu0 0.0
      %1204 = vmatpush1.msra.mxu0 0.0
      %1205 = vmatprep.subr.mxu0 0.0
      %1206 = vmatpush1.msra.mxu0 0.0
      %1207 = vmatprep.subr.mxu0 0.0
      %1208 = vmatpush1.msra.mxu0 0.0
      %1209 = vmatprep.subr.mxu0 0.0
      %1210 = vmatpush1.msra.mxu0 0.0
      %1211 = vmatprep.subr.mxu0 0.0
      %1212 = vmatpush1.msra.mxu0 0.0
      %1213 = vmatprep.subr.mxu0 0.0
      %1214 = vmatpush1.msra.mxu0 0.0
      %1215 = vmatprep.subr.mxu0 0.0
      %1216 = vmatpush1.msra.mxu0 0.0
      %1217 = vmatprep.subr.mxu0 0.0
      %1218 = vmatpush1.msra.mxu0 0.0
      %1219 = vmatprep.subr.mxu0 0.0
      %1220 = vmatpush1.msra.mxu0 0.0
      %1221 = vmatprep.subr.mxu0 0.0
      %1222 = vmatpush1.msra.mxu0 0.0
      %1223 = vmatprep.subr.mxu0 0.0
      %1224 = vmatpush1.msra.mxu0 0.0
      %1225 = vmatprep.subr.mxu0 0.0
      %1226 = vmatpush1.msra.mxu0 0.0
      %1227 = vmatprep.subr.mxu0 0.0
      %1228 = vmatpush1.msra.mxu0 0.0
      %1229 = vmatprep.subr.mxu0 0.0
      %1230 = vmatpush1.msra.mxu0 0.0
      %1231 = vmatprep.subr.mxu0 0.0
      %1232 = vmatpush1.msra.mxu0 0.0
      %1233 = vmatprep.subr.mxu0 0.0
      %1234 = vmatpush1.msra.mxu0 0.0
      %1235 = vmatprep.subr.mxu0 0.0
      %1236 = vmatpush1.msra.mxu0 0.0
      %1237 = vmatprep.subr.mxu0 0.0
      %1238 = vmatpush1.msra.mxu0 0.0
      %1239 = vmatprep.subr.mxu0 0.0
      %1240 = vmatpush1.msra.mxu0 0.0
      %1241 = vmatprep.subr.mxu0 0.0
      %1242 = vmatpush1.msra.mxu0 0.0
      %1243 = vmatprep.subr.mxu0 0.0
      %1244 = vmatpush1.msra.mxu0 0.0
      %1245 = vmatprep.subr.mxu0 0.0
      %1246 = vmatpush1.msra.mxu0 0.0
      %1247 = vmatprep.subr.mxu0 0.0
      %1248 = vmatpush1.msra.mxu0 0.0
      %1249 = vmatprep.subr.mxu0 0.0
      %1250 = vmatpush1.msra.mxu0 0.0
      %1251 = vmatprep.subr.mxu0 0.0
      %1252 = vmatpush1.msra.mxu0 0.0
      %1253 = vmatprep.subr.mxu0 0.0
      %1254 = vmatpush1.msra.mxu0 0.0
      %1255 = vmatprep.mubr.f32.mxu0 0.0
      %1256 = vmatmul.mubr.f32.gmra.mrb[0].mxu0 %v1183
      %v1257 = vpop.f32.mrb[0].mxu0
      %v1258 = vadd.f32 0.0, %v1257
      %v1259 = vpop.f32.mrb[0].mxu0
      %v1260 = vadd.f32 0.0, %v1259
      %1261 = vdwg.mxu0
      %1262 = vmatprep.subr.mxu0 0.0
      %1263 = vmatpush1.msra.mxu0 %v1189
      %1264 = vmatprep.subr.mxu0 0.0
      %1265 = vmatpush1.msra.mxu0 0.0
      %1266 = vmatprep.subr.mxu0 0.0
      %1267 = vmatpush1.msra.mxu0 0.0
      %1268 = vmatprep.subr.mxu0 0.0
      %1269 = vmatpush1.msra.mxu0 0.0
      %1270 = vmatprep.subr.mxu0 0.0
      %1271 = vmatpush1.msra.mxu0 0.0
      %1272 = vmatprep.subr.mxu0 0.0
      %1273 = vmatpush1.msra.mxu0 0.0
      %1274 = vmatprep.subr.mxu0 0.0
      %1275 = vmatpush1.msra.mxu0 0.0
      %1276 = vmatprep.subr.mxu0 0.0
      %1277 = vmatpush1.msra.mxu0 0.0
      %1278 = vmatprep.subr.mxu0 0.0
      %1279 = vmatpush1.msra.mxu0 0.0
      %1280 = vmatprep.subr.mxu0 0.0
      %1281 = vmatpush1.msra.mxu0 0.0
      %1282 = vmatprep.subr.mxu0 0.0
      %1283 = vmatpush1.msra.mxu0 0.0
      %1284 = vmatprep.subr.mxu0 0.0
      %1285 = vmatpush1.msra.mxu0 0.0
      %1286 = vmatprep.subr.mxu0 0.0
      %1287 = vmatpush1.msra.mxu0 0.0
      %1288 = vmatprep.subr.mxu0 0.0
      %1289 = vmatpush1.msra.mxu0 0.0
      %1290 = vmatprep.subr.mxu0 0.0
      %1291 = vmatpush1.msra.mxu0 0.0
      %1292 = vmatprep.subr.mxu0 0.0
      %1293 = vmatpush1.msra.mxu0 0.0
      %1294 = vmatprep.subr.mxu0 0.0
      %1295 = vmatpush1.msra.mxu0 0.0
      %1296 = vmatprep.subr.mxu0 0.0
      %1297 = vmatpush1.msra.mxu0 0.0
      %1298 = vmatprep.subr.mxu0 0.0
      %1299 = vmatpush1.msra.mxu0 0.0
      %1300 = vmatprep.subr.mxu0 0.0
      %1301 = vmatpush1.msra.mxu0 0.0
      %1302 = vmatprep.subr.mxu0 0.0
      %1303 = vmatpush1.msra.mxu0 0.0
      %1304 = vmatprep.subr.mxu0 0.0
      %1305 = vmatpush1.msra.mxu0 0.0
      %1306 = vmatprep.subr.mxu0 0.0
      %1307 = vmatpush1.msra.mxu0 0.0
      %1308 = vmatprep.subr.mxu0 0.0
      %1309 = vmatpush1.msra.mxu0 0.0
      %1310 = vmatprep.subr.mxu0 0.0
      %1311 = vmatpush1.msra.mxu0 0.0
      %1312 = vmatprep.subr.mxu0 0.0
      %1313 = vmatpush1.msra.mxu0 0.0
      %1314 = vmatprep.subr.mxu0 0.0
      %1315 = vmatpush1.msra.mxu0 0.0
      %1316 = vmatprep.subr.mxu0 0.0
      %1317 = vmatpush1.msra.mxu0 0.0
      %1318 = vmatprep.subr.mxu0 0.0
      %1319 = vmatpush1.msra.mxu0 0.0
      %1320 = vmatprep.subr.mxu0 0.0
      %1321 = vmatpush1.msra.mxu0 0.0
      %1322 = vmatprep.subr.mxu0 0.0
      %1323 = vmatpush1.msra.mxu0 0.0
      %1324 = vmatprep.subr.mxu0 0.0
      %1325 = vmatpush1.msra.mxu0 0.0
      %1326 = vmatprep.mubr.f32.mxu0 0.0
      %1327 = vmatmul.mubr.f32.gmra.mrb[0].mxu0 %v1183
      %v1328 = vpop.f32.mrb[0].mxu0
      %v1329 = vadd.f32 0.0, %v1328
      %v1330 = vpop.f32.mrb[0].mxu0
      %1331 = vdwg.mxu0
      %v1332 = vadd.f32 %v1163, %v1258
      %v1333 = vadd.f32 %v1164, %v1260
      %v1334 = vadd.f32 %v1165, %v1329
      %v1335 = vld [vmem:[%s165] sm:$0xff]
      %v1336 = vld [vmem:[%s165 + $0x8] sm:$0xf]
      %s1337 = scalar_lea.vmem %s1, 28
      %v1338 = vld [vmem:[%s1337] sm:$0xf]
      %v1341 = vcombine.high %v1335, %v1335
      %1342 = vrot.lane.b32.xlu0 %v1335, 91
      %v1343 = vpop.permute.xlu0 %1342
      %1344 = vrot.lane.b32.xlu0 %v1341, 91
      %v1345 = vpop.permute.xlu0 %1344
      %1346 = vrot.lane.b32.xlu0 %v1336, 91
      %v1347 = vpop.permute.xlu0 %1346
      %vm1348 = vcmask 744448
      %v1349 = vsel %vm1348, %v1343, %v1345
      %v1350 = vsel %vm1348, %v1345, %v1347
      %v1352 = vsel %vm188, %v1338, 0
      %v1354 = vsel %vm192, %v1349, 0
      %v1356 = vsel %vm192, %v1350, 0
      %v1358 = vsel %vm192, %v1347, 0
      %1360 = vmatprep.subr.mxu0 %v1356
      %1361 = vmatpush1.msra.mxu0 %v1354
      %1362 = vmatprep.subr.mxu0 0.0
      %1363 = vmatpush1.msra.mxu0 0.0
      %1364 = vmatprep.subr.mxu0 0.0
      %1365 = vmatpush1.msra.mxu0 0.0
      %1366 = vmatprep.subr.mxu0 0.0
      %1367 = vmatpush1.msra.mxu0 0.0
      %1368 = vmatprep.subr.mxu0 0.0
      %1369 = vmatpush1.msra.mxu0 0.0
      %1370 = vmatprep.subr.mxu0 0.0
      %1371 = vmatpush1.msra.mxu0 0.0
      %1372 = vmatprep.subr.mxu0 0.0
      %1373 = vmatpush1.msra.mxu0 0.0
      %1374 = vmatprep.subr.mxu0 0.0
      %1375 = vmatpush1.msra.mxu0 0.0
      %1376 = vmatprep.subr.mxu0 0.0
      %1377 = vmatpush1.msra.mxu0 0.0
      %1378 = vmatprep.subr.mxu0 0.0
      %1379 = vmatpush1.msra.mxu0 0.0
      %1380 = vmatprep.subr.mxu0 0.0
      %1381 = vmatpush1.msra.mxu0 0.0
      %1382 = vmatprep.subr.mxu0 0.0
      %1383 = vmatpush1.msra.mxu0 0.0
      %1384 = vmatprep.subr.mxu0 0.0
      %1385 = vmatpush1.msra.mxu0 0.0
      %1386 = vmatprep.subr.mxu0 0.0
      %1387 = vmatpush1.msra.mxu0 0.0
      %1388 = vmatprep.subr.mxu0 0.0
      %1389 = vmatpush1.msra.mxu0 0.0
      %1390 = vmatprep.subr.mxu0 0.0
      %1391 = vmatpush1.msra.mxu0 0.0
      %1392 = vmatprep.subr.mxu0 0.0
      %1393 = vmatpush1.msra.mxu0 0.0
      %1394 = vmatprep.subr.mxu0 0.0
      %1395 = vmatpush1.msra.mxu0 0.0
      %1396 = vmatprep.subr.mxu0 0.0
      %1397 = vmatpush1.msra.mxu0 0.0
      %1398 = vmatprep.subr.mxu0 0.0
      %1399 = vmatpush1.msra.mxu0 0.0
      %1400 = vmatprep.subr.mxu0 0.0
      %1401 = vmatpush1.msra.mxu0 0.0
      %1402 = vmatprep.subr.mxu0 0.0
      %1403 = vmatpush1.msra.mxu0 0.0
      %1404 = vmatprep.subr.mxu0 0.0
      %1405 = vmatpush1.msra.mxu0 0.0
      %1406 = vmatprep.subr.mxu0 0.0
      %1407 = vmatpush1.msra.mxu0 0.0
      %1408 = vmatprep.subr.mxu0 0.0
      %1409 = vmatpush1.msra.mxu0 0.0
      %1410 = vmatprep.subr.mxu0 0.0
      %1411 = vmatpush1.msra.mxu0 0.0
      %1412 = vmatprep.subr.mxu0 0.0
      %1413 = vmatpush1.msra.mxu0 0.0
      %1414 = vmatprep.subr.mxu0 0.0
      %1415 = vmatpush1.msra.mxu0 0.0
      %1416 = vmatprep.subr.mxu0 0.0
      %1417 = vmatpush1.msra.mxu0 0.0
      %1418 = vmatprep.subr.mxu0 0.0
      %1419 = vmatpush1.msra.mxu0 0.0
      %1420 = vmatprep.subr.mxu0 0.0
      %1421 = vmatpush1.msra.mxu0 0.0
      %1422 = vmatprep.subr.mxu0 0.0
      %1423 = vmatpush1.msra.mxu0 0.0
      %1424 = vmatprep.mubr.f32.mxu0 0.0
      %1425 = vmatmul.mubr.f32.gmra.mrb[0].mxu0 %v1352
      %v1426 = vpop.f32.mrb[0].mxu0
      %v1427 = vadd.f32 0.0, %v1426
      %v1428 = vpop.f32.mrb[0].mxu0
      %v1429 = vadd.f32 0.0, %v1428
      %1430 = vdwg.mxu0
      %1431 = vmatprep.subr.mxu0 0.0
      %1432 = vmatpush1.msra.mxu0 %v1358
      %1433 = vmatprep.subr.mxu0 0.0
      %1434 = vmatpush1.msra.mxu0 0.0
      %1435 = vmatprep.subr.mxu0 0.0
      %1436 = vmatpush1.msra.mxu0 0.0
      %1437 = vmatprep.subr.mxu0 0.0
      %1438 = vmatpush1.msra.mxu0 0.0
      %1439 = vmatprep.subr.mxu0 0.0
      %1440 = vmatpush1.msra.mxu0 0.0
      %1441 = vmatprep.subr.mxu0 0.0
      %1442 = vmatpush1.msra.mxu0 0.0
      %1443 = vmatprep.subr.mxu0 0.0
      %1444 = vmatpush1.msra.mxu0 0.0
      %1445 = vmatprep.subr.mxu0 0.0
      %1446 = vmatpush1.msra.mxu0 0.0
      %1447 = vmatprep.subr.mxu0 0.0
      %1448 = vmatpush1.msra.mxu0 0.0
      %1449 = vmatprep.subr.mxu0 0.0
      %1450 = vmatpush1.msra.mxu0 0.0
      %1451 = vmatprep.subr.mxu0 0.0
      %1452 = vmatpush1.msra.mxu0 0.0
      %1453 = vmatprep.subr.mxu0 0.0
      %1454 = vmatpush1.msra.mxu0 0.0
      %1455 = vmatprep.subr.mxu0 0.0
      %1456 = vmatpush1.msra.mxu0 0.0
      %1457 = vmatprep.subr.mxu0 0.0
      %1458 = vmatpush1.msra.mxu0 0.0
      %1459 = vmatprep.subr.mxu0 0.0
      %1460 = vmatpush1.msra.mxu0 0.0
      %1461 = vmatprep.subr.mxu0 0.0
      %1462 = vmatpush1.msra.mxu0 0.0
      %1463 = vmatprep.subr.mxu0 0.0
      %1464 = vmatpush1.msra.mxu0 0.0
      %1465 = vmatprep.subr.mxu0 0.0
      %1466 = vmatpush1.msra.mxu0 0.0
      %1467 = vmatprep.subr.mxu0 0.0
      %1468 = vmatpush1.msra.mxu0 0.0
      %1469 = vmatprep.subr.mxu0 0.0
      %1470 = vmatpush1.msra.mxu0 0.0
      %1471 = vmatprep.subr.mxu0 0.0
      %1472 = vmatpush1.msra.mxu0 0.0
      %1473 = vmatprep.subr.mxu0 0.0
      %1474 = vmatpush1.msra.mxu0 0.0
      %1475 = vmatprep.subr.mxu0 0.0
      %1476 = vmatpush1.msra.mxu0 0.0
      %1477 = vmatprep.subr.mxu0 0.0
      %1478 = vmatpush1.msra.mxu0 0.0
      %1479 = vmatprep.subr.mxu0 0.0
      %1480 = vmatpush1.msra.mxu0 0.0
      %1481 = vmatprep.subr.mxu0 0.0
      %1482 = vmatpush1.msra.mxu0 0.0
      %1483 = vmatprep.subr.mxu0 0.0
      %1484 = vmatpush1.msra.mxu0 0.0
      %1485 = vmatprep.subr.mxu0 0.0
      %1486 = vmatpush1.msra.mxu0 0.0
      %1487 = vmatprep.subr.mxu0 0.0
      %1488 = vmatpush1.msra.mxu0 0.0
      %1489 = vmatprep.subr.mxu0 0.0
      %1490 = vmatpush1.msra.mxu0 0.0
      %1491 = vmatprep.subr.mxu0 0.0
      %1492 = vmatpush1.msra.mxu0 0.0
      %1493 = vmatprep.subr.mxu0 0.0
      %1494 = vmatpush1.msra.mxu0 0.0
      %1495 = vmatprep.mubr.f32.mxu0 0.0
      %1496 = vmatmul.mubr.f32.gmra.mrb[0].mxu0 %v1352
      %v1497 = vpop.f32.mrb[0].mxu0
      %v1498 = vadd.f32 0.0, %v1497
      %v1499 = vpop.f32.mrb[0].mxu0
      %1500 = vdwg.mxu0
      %v1501 = vadd.f32 %v1332, %v1427
      %v1502 = vadd.f32 %v1333, %v1429
      %v1503 = vadd.f32 %v1334, %v1498
      %v1504 = vld [vmem:[%s165] sm:$0xff]
      %v1505 = vld [vmem:[%s165 + $0x8] sm:$0xf]
      %s1506 = scalar_lea.vmem %s1, 32
      %v1507 = vld [vmem:[%s1506] sm:$0xf]
      %v1510 = vcombine.high %v1504, %v1504
      %1511 = vrot.lane.b32.xlu0 %v1504, 90
      %v1512 = vpop.permute.xlu0 %1511
      %1513 = vrot.lane.b32.xlu0 %v1510, 90
      %v1514 = vpop.permute.xlu0 %1513
      %1515 = vrot.lane.b32.xlu0 %v1505, 90
      %v1516 = vpop.permute.xlu0 %1515
      %vm1517 = vcmask 736256
      %v1518 = vsel %vm1517, %v1512, %v1514
      %v1519 = vsel %vm1517, %v1514, %v1516
      %v1521 = vsel %vm188, %v1507, 0
      %v1523 = vsel %vm192, %v1518, 0
      %v1525 = vsel %vm192, %v1519, 0
      %v1527 = vsel %vm192, %v1516, 0
      %1529 = vmatprep.subr.mxu0 %v1525
      %1530 = vmatpush1.msra.mxu0 %v1523
      %1531 = vmatprep.subr.mxu0 0.0
      %1532 = vmatpush1.msra.mxu0 0.0
      %1533 = vmatprep.subr.mxu0 0.0
      %1534 = vmatpush1.msra.mxu0 0.0
      %1535 = vmatprep.subr.mxu0 0.0
      %1536 = vmatpush1.msra.mxu0 0.0
      %1537 = vmatprep.subr.mxu0 0.0
      %1538 = vmatpush1.msra.mxu0 0.0
      %1539 = vmatprep.subr.mxu0 0.0
      %1540 = vmatpush1.msra.mxu0 0.0
      %1541 = vmatprep.subr.mxu0 0.0
      %1542 = vmatpush1.msra.mxu0 0.0
      %1543 = vmatprep.subr.mxu0 0.0
      %1544 = vmatpush1.msra.mxu0 0.0
      %1545 = vmatprep.subr.mxu0 0.0
      %1546 = vmatpush1.msra.mxu0 0.0
      %1547 = vmatprep.subr.mxu0 0.0
      %1548 = vmatpush1.msra.mxu0 0.0
      %1549 = vmatprep.subr.mxu0 0.0
      %1550 = vmatpush1.msra.mxu0 0.0
      %1551 = vmatprep.subr.mxu0 0.0
      %1552 = vmatpush1.msra.mxu0 0.0
      %1553 = vmatprep.subr.mxu0 0.0
      %1554 = vmatpush1.msra.mxu0 0.0
      %1555 = vmatprep.subr.mxu0 0.0
      %1556 = vmatpush1.msra.mxu0 0.0
      %1557 = vmatprep.subr.mxu0 0.0
      %1558 = vmatpush1.msra.mxu0 0.0
      %1559 = vmatprep.subr.mxu0 0.0
      %1560 = vmatpush1.msra.mxu0 0.0
      %1561 = vmatprep.subr.mxu0 0.0
      %1562 = vmatpush1.msra.mxu0 0.0
      %1563 = vmatprep.subr.mxu0 0.0
      %1564 = vmatpush1.msra.mxu0 0.0
      %1565 = vmatprep.subr.mxu0 0.0
      %1566 = vmatpush1.msra.mxu0 0.0
      %1567 = vmatprep.subr.mxu0 0.0
      %1568 = vmatpush1.msra.mxu0 0.0
      %1569 = vmatprep.subr.mxu0 0.0
      %1570 = vmatpush1.msra.mxu0 0.0
      %1571 = vmatprep.subr.mxu0 0.0
      %1572 = vmatpush1.msra.mxu0 0.0
      %1573 = vmatprep.subr.mxu0 0.0
      %1574 = vmatpush1.msra.mxu0 0.0
      %1575 = vmatprep.subr.mxu0 0.0
      %1576 = vmatpush1.msra.mxu0 0.0
      %1577 = vmatprep.subr.mxu0 0.0
      %1578 = vmatpush1.msra.mxu0 0.0
      %1579 = vmatprep.subr.mxu0 0.0
      %1580 = vmatpush1.msra.mxu0 0.0
      %1581 = vmatprep.subr.mxu0 0.0
      %1582 = vmatpush1.msra.mxu0 0.0
      %1583 = vmatprep.subr.mxu0 0.0
      %1584 = vmatpush1.msra.mxu0 0.0
      %1585 = vmatprep.subr.mxu0 0.0
      %1586 = vmatpush1.msra.mxu0 0.0
      %1587 = vmatprep.subr.mxu0 0.0
      %1588 = vmatpush1.msra.mxu0 0.0
      %1589 = vmatprep.subr.mxu0 0.0
      %1590 = vmatpush1.msra.mxu0 0.0
      %1591 = vmatprep.subr.mxu0 0.0
      %1592 = vmatpush1.msra.mxu0 0.0
      %1593 = vmatprep.mubr.f32.mxu0 0.0
      %1594 = vmatmul.mubr.f32.gmra.mrb[0].mxu0 %v1521
      %v1595 = vpop.f32.mrb[0].mxu0
      %v1596 = vadd.f32 0.0, %v1595
      %v1597 = vpop.f32.mrb[0].mxu0
      %v1598 = vadd.f32 0.0, %v1597
      %1599 = vdwg.mxu0
      %1600 = vmatprep.subr.mxu0 0.0
      %1601 = vmatpush1.msra.mxu0 %v1527
      %1602 = vmatprep.subr.mxu0 0.0
      %1603 = vmatpush1.msra.mxu0 0.0
      %1604 = vmatprep.subr.mxu0 0.0
      %1605 = vmatpush1.msra.mxu0 0.0
      %1606 = vmatprep.subr.mxu0 0.0
      %1607 = vmatpush1.msra.mxu0 0.0
      %1608 = vmatprep.subr.mxu0 0.0
      %1609 = vmatpush1.msra.mxu0 0.0
      %1610 = vmatprep.subr.mxu0 0.0
      %1611 = vmatpush1.msra.mxu0 0.0
      %1612 = vmatprep.subr.mxu0 0.0
      %1613 = vmatpush1.msra.mxu0 0.0
      %1614 = vmatprep.subr.mxu0 0.0
      %1615 = vmatpush1.msra.mxu0 0.0
      %1616 = vmatprep.subr.mxu0 0.0
      %1617 = vmatpush1.msra.mxu0 0.0
      %1618 = vmatprep.subr.mxu0 0.0
      %1619 = vmatpush1.msra.mxu0 0.0
      %1620 = vmatprep.subr.mxu0 0.0
      %1621 = vmatpush1.msra.mxu0 0.0
      %1622 = vmatprep.subr.mxu0 0.0
      %1623 = vmatpush1.msra.mxu0 0.0
      %1624 = vmatprep.subr.mxu0 0.0
      %1625 = vmatpush1.msra.mxu0 0.0
      %1626 = vmatprep.subr.mxu0 0.0
      %1627 = vmatpush1.msra.mxu0 0.0
      %1628 = vmatprep.subr.mxu0 0.0
      %1629 = vmatpush1.msra.mxu0 0.0
      %1630 = vmatprep.subr.mxu0 0.0
      %1631 = vmatpush1.msra.mxu0 0.0
      %1632 = vmatprep.subr.mxu0 0.0
      %1633 = vmatpush1.msra.mxu0 0.0
      %1634 = vmatprep.subr.mxu0 0.0
      %1635 = vmatpush1.msra.mxu0 0.0
      %1636 = vmatprep.subr.mxu0 0.0
      %1637 = vmatpush1.msra.mxu0 0.0
      %1638 = vmatprep.subr.mxu0 0.0
      %1639 = vmatpush1.msra.mxu0 0.0
      %1640 = vmatprep.subr.mxu0 0.0
      %1641 = vmatpush1.msra.mxu0 0.0
      %1642 = vmatprep.subr.mxu0 0.0
      %1643 = vmatpush1.msra.mxu0 0.0
      %1644 = vmatprep.subr.mxu0 0.0
      %1645 = vmatpush1.msra.mxu0 0.0
      %1646 = vmatprep.subr.mxu0 0.0
      %1647 = vmatpush1.msra.mxu0 0.0
      %1648 = vmatprep.subr.mxu0 0.0
      %1649 = vmatpush1.msra.mxu0 0.0
      %1650 = vmatprep.subr.mxu0 0.0
      %1651 = vmatpush1.msra.mxu0 0.0
      %1652 = vmatprep.subr.mxu0 0.0
      %1653 = vmatpush1.msra.mxu0 0.0
      %1654 = vmatprep.subr.mxu0 0.0
      %1655 = vmatpush1.msra.mxu0 0.0
      %1656 = vmatprep.subr.mxu0 0.0
      %1657 = vmatpush1.msra.mxu0 0.0
      %1658 = vmatprep.subr.mxu0 0.0
      %1659 = vmatpush1.msra.mxu0 0.0
      %1660 = vmatprep.subr.mxu0 0.0
      %1661 = vmatpush1.msra.mxu0 0.0
      %1662 = vmatprep.subr.mxu0 0.0
      %1663 = vmatpush1.msra.mxu0 0.0
      %1664 = vmatprep.mubr.f32.mxu0 0.0
      %1665 = vmatmul.mubr.f32.gmra.mrb[0].mxu0 %v1521
      %v1666 = vpop.f32.mrb[0].mxu0
      %v1667 = vadd.f32 0.0, %v1666
      %v1668 = vpop.f32.mrb[0].mxu0
      %1669 = vdwg.mxu0
      %v1670 = vadd.f32 %v1501, %v1596
      %v1671 = vadd.f32 %v1502, %v1598
      %v1672 = vadd.f32 %v1503, %v1667
      %v1673 = vld [vmem:[%s2] sm:$0xf]
      %1675 = vset.pattern.permute.xlu0 0
      %1676 = vperm.xlu0 %1675, %v1673
      %v1677 = vpop.permute.xlu0 %1676
      %v1679 = vadd.f32 %v1670, %v1677
      %v1680 = vadd.f32 %v1671, %v1677
      %v1681 = vadd.f32 %v1672, %v1677
      %v1682 = vmin.f32 %v1679, 0.0
      %v1683 = vmin.f32 %v1680, 0.0
      %v1684 = vmin.f32 %v1681, 0.0
      %v1685 = vmul.f32 %v1682, 1.442695
      %v1686 = vpow.pop %v1685
      %v1687 = vmul.f32 %v1683, 1.442695
      %v1688 = vpow.pop %v1687
      %v1689 = vmul.f32 %v1684, 1.442695
      %v1690 = vpow.pop %v1689
      %v1691 = vsub.f32 %v1686, 1.0
      %v1692 = vsub.f32 %v1688, 1.0
      %v1693 = vsub.f32 %v1690, 1.0
      %v1694 = vmul.f32 %v1691, 1.6732632
      %v1695 = vmul.f32 %v1692, 1.6732632
      %v1696 = vmul.f32 %v1693, 1.6732632
      %vm1697 = vcmp.gt.f32.partialorder %v1679, 0.0
      %vm1698 = vcmp.gt.f32.partialorder %v1680, 0.0
      %vm1699 = vcmp.gt.f32.partialorder %v1681, 0.0
      %v1700 = vsel %vm1697, %v1679, %v1694
      %v1701 = vsel %vm1698, %v1680, %v1695
      %v1702 = vsel %vm1699, %v1681, %v1696
      %v1703 = vmul.f32 %v1700, 1.050701
      %v1704 = vmul.f32 %v1701, 1.050701
      %v1705 = vmul.f32 %v1702, 1.050701
      %v1708 = vcombine.low %v1703, %v1704
      %1710 = vst [vmem:[%s170] sm:$0xff] %v1708
      %vm1711 = vcmask 551936
      %1712 = vst.msk [vmem:[%s170 + $0x8] sm:$0xf] %vm1711, %v1705
      %p1713 = scmp.lt.s32.totalorder %s14, 1
      %s1714 = scalar_select %p1713, %s14, 1
      %s1715 = smul.addr %s1714, 3
      %s1716 = smul.addr %s1715, 4
      %s1717 = scalar_lea.vmem %s3, %s1716
      // Predicated region
      $region33: #{sadenseblock_forward.4} parent=31 // pred_check
        %p1718 = pneg %p100
      $region34: #{sadenseblock_forward.4} parent=31 // pred_check_branch
        %1720 = sbr.rel (%p1718) target = $region36
      $region35: #{sadenseblock_forward.4} parent=31 // pred_region
        _
      $region36: #{sadenseblock_forward.4} parent=31 // pred_fallthru
        _
    $region32: #{sadenseblock_forward.4} parent=5 // pred_fallthru
      _
    %p1721 = scmp.le.s32.totalorder 2, %s9
    // Predicated region
    $region37: #{sadenseblock_forward.4} parent=5 // pred_check
      %p1722 = pneg %p1721
    $region38: #{sadenseblock_forward.4} parent=5 // pred_check_branch
      %1724 = sbr.rel (%p1722) target = $region40
    $region39: #{sadenseblock_forward.4} parent=5 // pred_region
      %s1725 = ssub.s32 %s9, 2
      // Predicated region
      $region41: #{sadenseblock_forward.4} parent=39 // pred_check
        %p1726 = pneg %p106
      $region42: #{sadenseblock_forward.4} parent=39 // pred_check_branch
        %1728 = sbr.rel (%p1726) target = $region44
      $region43: #{sadenseblock_forward.4} parent=39 // pred_region
        %p1729 = scmp.lt.s32.totalorder %s15, 1
        %s1730 = scalar_select %p1729, %s15, 1
        %s1731 = smul.addr %s1730, 3
        %s1732 = smul.addr %s1731, 4
        %s1733 = scalar_lea.vmem %s3, %s1732
      $region44: #{sadenseblock_forward.4} parent=39 // pred_fallthru
        _
    $region40: #{sadenseblock_forward.4} parent=5 // pred_fallthru
      _
  $region6: #{sadenseblock_forward.4} parent=0 // loop_footer
    %s13 = sadd.s32 1, %s9
  $region7: #{sadenseblock_forward.4} parent=0 // loop_footer_branch
    %8 = sbr.rel target = $region3
  $region8: #{sadenseblock_forward.4} parent=0 // loop_exit
    _

// kernel: sadenseblock_forward.5
$region0: #{sadenseblock_forward.5}
  #allocation0 [shape = 'u32[]', space=smem, size = 0x4, offset = 0x4, fixed_abs, tag = 'smem constant byte address 0x4 - core index']
  #allocation1 [shape = 'u32[144,128]{1,0:T(1,128)}', space=vmem, size = 0x12000, scoped, tag = 'internal scratch']
  %s0 = inlined_call_operand.vmem [shape: f32[2,8,362], index: 0, kind: input, shape index: {}]
  %s1 = inlined_call_operand.vmem [shape: f32[9,4,8], index: 1, kind: input, shape index: {}]
  %s2 = inlined_call_operand.vmem [shape: f32[4,1], index: 2, kind: input, shape index: {}]
  %s3 = inlined_call_operand.vmem [shape: f32[2,4,324], index: 3, kind: output, shape index: {}]
  %s4 = sld [smem:[#allocation0]]
  $region45: #{sadenseblock_forward.5} parent=0
    _
  %s6 = ssub.s32 1, %s4
  %s7 = scalar_select 0, %s6, %s4
  loop: start=0, step=1, limit=4
  $region2: #{sadenseblock_forward.5} parent=0 // loop_pre_header
    _
  $region3: #{sadenseblock_forward.5} parent=0 // loop_header
    %s9 = sphi 0, %s13
    %p10 = scmp.ge.s32.totalorder %s9, 4
    %s19 = sphi 0, %s21
    %s22 = sphi 0, %s19
    %s23 = sphi 0, %s22
    %s39 = sphi 0, %s23
    %s43 = sphi 0, %s43
    %s45 = sphi 0, %s43
    %s46 = sphi 0, %s45
    %s60 = sphi 0, %s46
    %s64 = sphi 0, %s64
    %s66 = sphi 0, %s64
    %s67 = sphi 0, %s66
    %s81 = sphi 0, %s67
    %s87 = sphi 0, %s89
    %s90 = sphi 0, %s87
    %s91 = sphi 0, %s90
    %s107 = sphi 0, %s91
  $region4: #{sadenseblock_forward.5} parent=0 // loop_header_branch
    %12 = sbr.rel (%p10) target = $region8
  $region5: #{sadenseblock_forward.5} parent=0 // loop_body
    %s14 = ssub.s32 %s9, 1
    %s15 = ssub.s32 %s9, 2
    %s16 = sadd.s32 %s9, 1
    %s17 = ssub.s32 %s9, %s16
    %p18 = scmp.eq.s32.totalorder %s17, 0
    %s20 = sadd.s32 %s19, 1
    %s21 = scalar_select %p18, %s19, %s20
    %p24 = pneg %p18
    %p25 = scmp.eq.s32.totalorder %s9, 1
    %p26 = por %p24, %p25
    %p27 = scmp.ne.s32.totalorder %s19, %s22
    %p28 = scmp.eq.s32.totalorder %s9, 0
    %p29 = por %p27, %p28
    %p30 = scmp.ne.s32.totalorder %s19, %s22
    %p31 = scmp.eq.s32.totalorder %s14, 1
    %p32 = por %p30, %p31
    %p33 = scmp.ne.s32.totalorder %s22, %s23
    %p34 = scmp.eq.s32.totalorder %s14, 0
    %p35 = por %p33, %p34
    %p36 = scmp.ne.s32.totalorder %s22, %s23
    %p37 = scmp.eq.s32.totalorder %s15, 1
    %p38 = por %p36, %p37
    %p40 = scmp.ne.s32.totalorder %s23, %s39
    %p41 = scmp.eq.s32.totalorder %s15, 0
    %p42 = por %p40, %p41
    %s44 = sadd.s32 %s43, 1
    %p47 = scmp.eq.s32.totalorder %s9, 1
    %p48 = scmp.ne.s32.totalorder %s43, %s45
    %p49 = scmp.eq.s32.totalorder %s9, 0
    %p50 = por %p48, %p49
    %p51 = scmp.ne.s32.totalorder %s43, %s45
    %p52 = scmp.eq.s32.totalorder %s14, 1
    %p53 = por %p51, %p52
    %p54 = scmp.ne.s32.totalorder %s45, %s46
    %p55 = scmp.eq.s32.totalorder %s14, 0
    %p56 = por %p54, %p55
    %p57 = scmp.ne.s32.totalorder %s45, %s46
    %p58 = scmp.eq.s32.totalorder %s15, 1
    %p59 = por %p57, %p58
    %p61 = scmp.ne.s32.totalorder %s46, %s60
    %p62 = scmp.eq.s32.totalorder %s15, 0
    %p63 = por %p61, %p62
    %s65 = sadd.s32 %s64, 1
    %p68 = scmp.eq.s32.totalorder %s9, 1
    %p69 = scmp.ne.s32.totalorder %s64, %s66
    %p70 = scmp.eq.s32.totalorder %s9, 0
    %p71 = por %p69, %p70
    %p72 = scmp.ne.s32.totalorder %s64, %s66
    %p73 = scmp.eq.s32.totalorder %s14, 1
    %p74 = por %p72, %p73
    %p75 = scmp.ne.s32.totalorder %s66, %s67
    %p76 = scmp.eq.s32.totalorder %s14, 0
    %p77 = por %p75, %p76
    %p78 = scmp.ne.s32.totalorder %s66, %s67
    %p79 = scmp.eq.s32.totalorder %s15, 1
    %p80 = por %p78, %p79
    %p82 = scmp.ne.s32.totalorder %s67, %s81
    %p83 = scmp.eq.s32.totalorder %s15, 0
    %p84 = por %p82, %p83
    %s85 = ssub.s32 %s9, %s16
    %p86 = scmp.eq.s32.totalorder %s85, 0
    %s88 = sadd.s32 %s87, 1
    %s89 = scalar_select %p86, %s87, %s88
    %p92 = pneg %p86
    %p93 = scmp.eq.s32.totalorder %s9, 1
    %p94 = por %p92, %p93
    %p95 = scmp.ne.s32.totalorder %s87, %s90
    %p96 = scmp.eq.s32.totalorder %s9, 0
    %p97 = por %p95, %p96
    %p98 = scmp.ne.s32.totalorder %s87, %s90
    %p99 = scmp.eq.s32.totalorder %s14, 1
    %p100 = por %p98, %p99
    %p101 = scmp.ne.s32.totalorder %s90, %s91
    %p102 = scmp.eq.s32.totalorder %s14, 0
    %p103 = por %p101, %p102
    %p104 = scmp.ne.s32.totalorder %s90, %s91
    %p105 = scmp.eq.s32.totalorder %s15, 1
    %p106 = por %p104, %p105
    %p108 = scmp.ne.s32.totalorder %s91, %s107
    %p109 = scmp.eq.s32.totalorder %s15, 0
    %p110 = por %p108, %p109
    %p111 = scmp.le.s32.totalorder 1, %s9
    %p112 = scmp.lt.s32.totalorder %s9, 3
    %p113 = pnand %p111, %p112
    %p114 = pneg %p113
    // Predicated region
    $region9: #{sadenseblock_forward.5} parent=5 // pred_check
      _
    $region10: #{sadenseblock_forward.5} parent=5 // pred_check_branch
      %116 = sbr.rel (%p113) target = $region12
    $region11: #{sadenseblock_forward.5} parent=5 // pred_region
      %s117 = ssub.s32 %s9, 1
      // Predicated region
      $region13: #{sadenseblock_forward.5} parent=11 // pred_check
        %p118 = pneg %p56
      $region14: #{sadenseblock_forward.5} parent=11 // pred_check_branch
        %120 = sbr.rel (%p118) target = $region16
      $region15: #{sadenseblock_forward.5} parent=11 // pred_region
        _
      $region16: #{sadenseblock_forward.5} parent=11 // pred_fallthru
        _
      // Predicated region
      $region17: #{sadenseblock_forward.5} parent=11 // pred_check
        %p121 = pneg %p77
      $region18: #{sadenseblock_forward.5} parent=11 // pred_check_branch
        %123 = sbr.rel (%p121) target = $region20
      $region19: #{sadenseblock_forward.5} parent=11 // pred_region
        _
      $region20: #{sadenseblock_forward.5} parent=11 // pred_fallthru
        _
    $region12: #{sadenseblock_forward.5} parent=5 // pred_fallthru
      _
    %p124 = scmp.lt.s32.totalorder %s9, 2
    // Predicated region
    $region21: #{sadenseblock_forward.5} parent=5 // pred_check
      %p125 = pneg %p124
    $region22: #{sadenseblock_forward.5} parent=5 // pred_check_branch
      %127 = sbr.rel (%p125) target = $region24
    $region23: #{sadenseblock_forward.5} parent=5 // pred_region
      // Predicated region
      $region25: #{sadenseblock_forward.5} parent=23 // pred_check
        %p128 = pneg %p29
      $region26: #{sadenseblock_forward.5} parent=23 // pred_check_branch
        %130 = sbr.rel (%p128) target = $region28
      $region27: #{sadenseblock_forward.5} parent=23 // pred_region
        %p131 = scmp.lt.s32.totalorder %s9, 1
        %s132 = scalar_select %p131, %s9, 1
        %s133 = smul.addr %s132, 3
        %s134 = smul.addr %s133, 8
        %s135 = scalar_lea.vmem %s0, %s134
      $region28: #{sadenseblock_forward.5} parent=23 // pred_fallthru
        _
    $region24: #{sadenseblock_forward.5} parent=5 // pred_fallthru
      _
    %p136 = scmp.le.s32.totalorder 1, %s9
    %p137 = scmp.lt.s32.totalorder %s9, 3
    %p138 = pnand %p136, %p137
    %p139 = pneg %p138
    // Predicated region
    $region29: #{sadenseblock_forward.5} parent=5 // pred_check
      _
    $region30: #{sadenseblock_forward.5} parent=5 // pred_check_branch
      %141 = sbr.rel (%p138) target = $region32
    $region31: #{sadenseblock_forward.5} parent=5 // pred_region
      %s142 = ssub.s32 %s9, 1
      %p143 = scmp.lt.s32.totalorder %s14, 1
      %s144 = scalar_select %p143, %s14, 1
      %s145 = smul.addr %s144, 3
      %s146 = smul.addr %s145, 8
      %s147 = scalar_lea.vmem %s0, %s146
      %p148 = pneg %p35
      %p149 = pneg %p32
      %p150 = pneg %p56
      %p151 = pneg %p53
      %p152 = pneg %p77
      %p153 = pneg %p74
      %p154 = pneg %p103
      %p155 = pneg %p100
      %p156 = scmp.lt.s32.totalorder %s14, 1
      %s157 = scalar_select %p156, %s14, 1
      %s158 = smul.addr %s157, 3
      %s159 = smul.addr %s158, 4
      %s160 = scalar_lea.vmem %s3, %s159
      %p161 = scmp.lt.s32.totalorder %s14, 1
      %s162 = scalar_select %p161, %s14, 1
      %s163 = smul.addr %s162, 3
      %s164 = smul.addr %s163, 8
      %s165 = scalar_lea.vmem %s0, %s164
      %p166 = scmp.lt.s32.totalorder %s14, 1
      %s167 = scalar_select %p166, %s14, 1
      %s168 = smul.addr %s167, 3
      %s169 = smul.addr %s168, 4
      %s170 = scalar_lea.vmem %s3, %s169
      %v171 = vld [vmem:[%s165] sm:$0xff]
      %v172 = vld [vmem:[%s165 + $0x8] sm:$0xff]
      %v173 = vld [vmem:[%s165 + $0x10] sm:$0xff]
      %v174 = vld [vmem:[%s1] sm:$0xf]
      %s175 = scalar_lea.vmem %s1, 4
      %v176 = vld [vmem:[%s175] sm:$0xf]
      %180 = vrot.lane.b32.xlu0 %v171, 127
      %v181 = vpop.permute.xlu0 %180
      %182 = vrot.lane.b32.xlu0 %v172, 127
      %v183 = vpop.permute.xlu0 %182
      %184 = vrot.lane.b32.xlu0 %v173, 127
      %v185 = vpop.permute.xlu0 %184
      %vm186 = vcmask 1039360
      %v187 = vsel %vm186, %v181, %v183
      %v188 = vsel %vm186, %v183, %v185
      %vm192 = vcmask 64512
      %v194 = vsel %vm192, %v176, 0
      %196 = vmatprep.subr.mxu0 %v188
      %197 = vmatpush1.msra.mxu0 %v187
      %198 = vmatprep.subr.mxu0 0.0
      %199 = vmatpush1.msra.mxu0 0.0
      %200 = vmatprep.subr.mxu0 0.0
      %201 = vmatpush1.msra.mxu0 0.0
      %202 = vmatprep.subr.mxu0 0.0
      %203 = vmatpush1.msra.mxu0 0.0
      %204 = vmatprep.subr.mxu0 0.0
      %205 = vmatpush1.msra.mxu0 0.0
      %206 = vmatprep.subr.mxu0 0.0
      %207 = vmatpush1.msra.mxu0 0.0
      %208 = vmatprep.subr.mxu0 0.0
      %209 = vmatpush1.msra.mxu0 0.0
      %210 = vmatprep.subr.mxu0 0.0
      %211 = vmatpush1.msra.mxu0 0.0
      %212 = vmatprep.subr.mxu0 0.0
      %213 = vmatpush1.msra.mxu0 0.0
      %214 = vmatprep.subr.mxu0 0.0
      %215 = vmatpush1.msra.mxu0 0.0
      %216 = vmatprep.subr.mxu0 0.0
      %217 = vmatpush1.msra.mxu0 0.0
      %218 = vmatprep.subr.mxu0 0.0
      %219 = vmatpush1.msra.mxu0 0.0
      %220 = vmatprep.subr.mxu0 0.0
      %221 = vmatpush1.msra.mxu0 0.0
      %222 = vmatprep.subr.mxu0 0.0
      %223 = vmatpush1.msra.mxu0 0.0
      %224 = vmatprep.subr.mxu0 0.0
      %225 = vmatpush1.msra.mxu0 0.0
      %226 = vmatprep.subr.mxu0 0.0
      %227 = vmatpush1.msra.mxu0 0.0
      %228 = vmatprep.subr.mxu0 0.0
      %229 = vmatpush1.msra.mxu0 0.0
      %230 = vmatprep.subr.mxu0 0.0
      %231 = vmatpush1.msra.mxu0 0.0
      %232 = vmatprep.subr.mxu0 0.0
      %233 = vmatpush1.msra.mxu0 0.0
      %234 = vmatprep.subr.mxu0 0.0
      %235 = vmatpush1.msra.mxu0 0.0
      %236 = vmatprep.subr.mxu0 0.0
      %237 = vmatpush1.msra.mxu0 0.0
      %238 = vmatprep.subr.mxu0 0.0
      %239 = vmatpush1.msra.mxu0 0.0
      %240 = vmatprep.subr.mxu0 0.0
      %241 = vmatpush1.msra.mxu0 0.0
      %242 = vmatprep.subr.mxu0 0.0
      %243 = vmatpush1.msra.mxu0 0.0
      %244 = vmatprep.subr.mxu0 0.0
      %245 = vmatpush1.msra.mxu0 0.0
      %246 = vmatprep.subr.mxu0 0.0
      %247 = vmatpush1.msra.mxu0 0.0
      %248 = vmatprep.subr.mxu0 0.0
      %249 = vmatpush1.msra.mxu0 0.0
      %250 = vmatprep.subr.mxu0 0.0
      %251 = vmatpush1.msra.mxu0 0.0
      %252 = vmatprep.subr.mxu0 0.0
      %253 = vmatpush1.msra.mxu0 0.0
      %254 = vmatprep.subr.mxu0 0.0
      %255 = vmatpush1.msra.mxu0 0.0
      %256 = vmatprep.subr.mxu0 0.0
      %257 = vmatpush1.msra.mxu0 0.0
      %258 = vmatprep.subr.mxu0 0.0
      %259 = vmatpush1.msra.mxu0 0.0
      %260 = vmatprep.mubr.f32.mxu0 0.0
      %261 = vmatmul.mubr.f32.gmra.mrb[0].mxu0 %v194
      %v262 = vpop.f32.mrb[0].mxu0
      %v263 = vadd.f32 0.0, %v262
      %v264 = vpop.f32.mrb[0].mxu0
      %v265 = vadd.f32 0.0, %v264
      %266 = vdwg.mxu0
      %267 = vmatprep.subr.mxu0 0.0
      %268 = vmatpush1.msra.mxu0 %v185
      %269 = vmatprep.subr.mxu0 0.0
      %270 = vmatpush1.msra.mxu0 0.0
      %271 = vmatprep.subr.mxu0 0.0
      %272 = vmatpush1.msra.mxu0 0.0
      %273 = vmatprep.subr.mxu0 0.0
      %274 = vmatpush1.msra.mxu0 0.0
      %275 = vmatprep.subr.mxu0 0.0
      %276 = vmatpush1.msra.mxu0 0.0
      %277 = vmatprep.subr.mxu0 0.0
      %278 = vmatpush1.msra.mxu0 0.0
      %279 = vmatprep.subr.mxu0 0.0
      %280 = vmatpush1.msra.mxu0 0.0
      %281 = vmatprep.subr.mxu0 0.0
      %282 = vmatpush1.msra.mxu0 0.0
      %283 = vmatprep.subr.mxu0 0.0
      %284 = vmatpush1.msra.mxu0 0.0
      %285 = vmatprep.subr.mxu0 0.0
      %286 = vmatpush1.msra.mxu0 0.0
      %287 = vmatprep.subr.mxu0 0.0
      %288 = vmatpush1.msra.mxu0 0.0
      %289 = vmatprep.subr.mxu0 0.0
      %290 = vmatpush1.msra.mxu0 0.0
      %291 = vmatprep.subr.mxu0 0.0
      %292 = vmatpush1.msra.mxu0 0.0
      %293 = vmatprep.subr.mxu0 0.0
      %294 = vmatpush1.msra.mxu0 0.0
      %295 = vmatprep.subr.mxu0 0.0
      %296 = vmatpush1.msra.mxu0 0.0
      %297 = vmatprep.subr.mxu0 0.0
      %298 = vmatpush1.msra.mxu0 0.0
      %299 = vmatprep.subr.mxu0 0.0
      %300 = vmatpush1.msra.mxu0 0.0
      %301 = vmatprep.subr.mxu0 0.0
      %302 = vmatpush1.msra.mxu0 0.0
      %303 = vmatprep.subr.mxu0 0.0
      %304 = vmatpush1.msra.mxu0 0.0
      %305 = vmatprep.subr.mxu0 0.0
      %306 = vmatpush1.msra.mxu0 0.0
      %307 = vmatprep.subr.mxu0 0.0
      %308 = vmatpush1.msra.mxu0 0.0
      %309 = vmatprep.subr.mxu0 0.0
      %310 = vmatpush1.msra.mxu0 0.0
      %311 = vmatprep.subr.mxu0 0.0
      %312 = vmatpush1.msra.mxu0 0.0
      %313 = vmatprep.subr.mxu0 0.0
      %314 = vmatpush1.msra.mxu0 0.0
      %315 = vmatprep.subr.mxu0 0.0
      %316 = vmatpush1.msra.mxu0 0.0
      %317 = vmatprep.subr.mxu0 0.0
      %318 = vmatpush1.msra.mxu0 0.0
      %319 = vmatprep.subr.mxu0 0.0
      %320 = vmatpush1.msra.mxu0 0.0
      %321 = vmatprep.subr.mxu0 0.0
      %322 = vmatpush1.msra.mxu0 0.0
      %323 = vmatprep.subr.mxu0 0.0
      %324 = vmatpush1.msra.mxu0 0.0
      %325 = vmatprep.subr.mxu0 0.0
      %326 = vmatpush1.msra.mxu0 0.0
      %327 = vmatprep.subr.mxu0 0.0
      %328 = vmatpush1.msra.mxu0 0.0
      %329 = vmatprep.subr.mxu0 0.0
      %330 = vmatpush1.msra.mxu0 0.0
      %331 = vmatprep.mubr.f32.mxu0 0.0
      %332 = vmatmul.mubr.f32.gmra.mrb[0].mxu0 %v194
      %v333 = vpop.f32.mrb[0].mxu0
      %v334 = vadd.f32 0.0, %v333
      %v335 = vpop.f32.mrb[0].mxu0
      %336 = vdwg.mxu0
      %v338 = vsel %vm192, %v174, 0
      %340 = vmatprep.subr.mxu0 %v172
      %341 = vmatpush1.msra.mxu0 %v171
      %342 = vmatprep.subr.mxu0 0.0
      %343 = vmatpush1.msra.mxu0 0.0
      %344 = vmatprep.subr.mxu0 0.0
      %345 = vmatpush1.msra.mxu0 0.0
      %346 = vmatprep.subr.mxu0 0.0
      %347 = vmatpush1.msra.mxu0 0.0
      %348 = vmatprep.subr.mxu0 0.0
      %349 = vmatpush1.msra.mxu0 0.0
      %350 = vmatprep.subr.mxu0 0.0
      %351 = vmatpush1.msra.mxu0 0.0
      %352 = vmatprep.subr.mxu0 0.0
      %353 = vmatpush1.msra.mxu0 0.0
      %354 = vmatprep.subr.mxu0 0.0
      %355 = vmatpush1.msra.mxu0 0.0
      %356 = vmatprep.subr.mxu0 0.0
      %357 = vmatpush1.msra.mxu0 0.0
      %358 = vmatprep.subr.mxu0 0.0
      %359 = vmatpush1.msra.mxu0 0.0
      %360 = vmatprep.subr.mxu0 0.0
      %361 = vmatpush1.msra.mxu0 0.0
      %362 = vmatprep.subr.mxu0 0.0
      %363 = vmatpush1.msra.mxu0 0.0
      %364 = vmatprep.subr.mxu0 0.0
      %365 = vmatpush1.msra.mxu0 0.0
      %366 = vmatprep.subr.mxu0 0.0
      %367 = vmatpush1.msra.mxu0 0.0
      %368 = vmatprep.subr.mxu0 0.0
      %369 = vmatpush1.msra.mxu0 0.0
      %370 = vmatprep.subr.mxu0 0.0
      %371 = vmatpush1.msra.mxu0 0.0
      %372 = vmatprep.subr.mxu0 0.0
      %373 = vmatpush1.msra.mxu0 0.0
      %374 = vmatprep.subr.mxu0 0.0
      %375 = vmatpush1.msra.mxu0 0.0
      %376 = vmatprep.subr.mxu0 0.0
      %377 = vmatpush1.msra.mxu0 0.0
      %378 = vmatprep.subr.mxu0 0.0
      %379 = vmatpush1.msra.mxu0 0.0
      %380 = vmatprep.subr.mxu0 0.0
      %381 = vmatpush1.msra.mxu0 0.0
      %382 = vmatprep.subr.mxu0 0.0
      %383 = vmatpush1.msra.mxu0 0.0
      %384 = vmatprep.subr.mxu0 0.0
      %385 = vmatpush1.msra.mxu0 0.0
      %386 = vmatprep.subr.mxu0 0.0
      %387 = vmatpush1.msra.mxu0 0.0
      %388 = vmatprep.subr.mxu0 0.0
      %389 = vmatpush1.msra.mxu0 0.0
      %390 = vmatprep.subr.mxu0 0.0
      %391 = vmatpush1.msra.mxu0 0.0
      %392 = vmatprep.subr.mxu0 0.0
      %393 = vmatpush1.msra.mxu0 0.0
      %394 = vmatprep.subr.mxu0 0.0
      %395 = vmatpush1.msra.mxu0 0.0
      %396 = vmatprep.subr.mxu0 0.0
      %397 = vmatpush1.msra.mxu0 0.0
      %398 = vmatprep.subr.mxu0 0.0
      %399 = vmatpush1.msra.mxu0 0.0
      %400 = vmatprep.subr.mxu0 0.0
      %401 = vmatpush1.msra.mxu0 0.0
      %402 = vmatprep.subr.mxu0 0.0
      %403 = vmatpush1.msra.mxu0 0.0
      %404 = vmatprep.mubr.f32.mxu0 0.0
      %405 = vmatmul.mubr.f32.gmra.mrb[0].mxu0 %v338
      %v406 = vpop.f32.mrb[0].mxu0
      %v407 = vadd.f32 %v263, %v406
      %v408 = vpop.f32.mrb[0].mxu0
      %v409 = vadd.f32 %v265, %v408
      %410 = vdwg.mxu0
      %411 = vmatprep.subr.mxu0 0.0
      %412 = vmatpush1.msra.mxu0 %v173
      %413 = vmatprep.subr.mxu0 0.0
      %414 = vmatpush1.msra.mxu0 0.0
      %415 = vmatprep.subr.mxu0 0.0
      %416 = vmatpush1.msra.mxu0 0.0
      %417 = vmatprep.subr.mxu0 0.0
      %418 = vmatpush1.msra.mxu0 0.0
      %419 = vmatprep.subr.mxu0 0.0
      %420 = vmatpush1.msra.mxu0 0.0
      %421 = vmatprep.subr.mxu0 0.0
      %422 = vmatpush1.msra.mxu0 0.0
      %423 = vmatprep.subr.mxu0 0.0
      %424 = vmatpush1.msra.mxu0 0.0
      %425 = vmatprep.subr.mxu0 0.0
      %426 = vmatpush1.msra.mxu0 0.0
      %427 = vmatprep.subr.mxu0 0.0
      %428 = vmatpush1.msra.mxu0 0.0
      %429 = vmatprep.subr.mxu0 0.0
      %430 = vmatpush1.msra.mxu0 0.0
      %431 = vmatprep.subr.mxu0 0.0
      %432 = vmatpush1.msra.mxu0 0.0
      %433 = vmatprep.subr.mxu0 0.0
      %434 = vmatpush1.msra.mxu0 0.0
      %435 = vmatprep.subr.mxu0 0.0
      %436 = vmatpush1.msra.mxu0 0.0
      %437 = vmatprep.subr.mxu0 0.0
      %438 = vmatpush1.msra.mxu0 0.0
      %439 = vmatprep.subr.mxu0 0.0
      %440 = vmatpush1.msra.mxu0 0.0
      %441 = vmatprep.subr.mxu0 0.0
      %442 = vmatpush1.msra.mxu0 0.0
      %443 = vmatprep.subr.mxu0 0.0
      %444 = vmatpush1.msra.mxu0 0.0
      %445 = vmatprep.subr.mxu0 0.0
      %446 = vmatpush1.msra.mxu0 0.0
      %447 = vmatprep.subr.mxu0 0.0
      %448 = vmatpush1.msra.mxu0 0.0
      %449 = vmatprep.subr.mxu0 0.0
      %450 = vmatpush1.msra.mxu0 0.0
      %451 = vmatprep.subr.mxu0 0.0
      %452 = vmatpush1.msra.mxu0 0.0
      %453 = vmatprep.subr.mxu0 0.0
      %454 = vmatpush1.msra.mxu0 0.0
      %455 = vmatprep.subr.mxu0 0.0
      %456 = vmatpush1.msra.mxu0 0.0
      %457 = vmatprep.subr.mxu0 0.0
      %458 = vmatpush1.msra.mxu0 0.0
      %459 = vmatprep.subr.mxu0 0.0
      %460 = vmatpush1.msra.mxu0 0.0
      %461 = vmatprep.subr.mxu0 0.0
      %462 = vmatpush1.msra.mxu0 0.0
      %463 = vmatprep.subr.mxu0 0.0
      %464 = vmatpush1.msra.mxu0 0.0
      %465 = vmatprep.subr.mxu0 0.0
      %466 = vmatpush1.msra.mxu0 0.0
      %467 = vmatprep.subr.mxu0 0.0
      %468 = vmatpush1.msra.mxu0 0.0
      %469 = vmatprep.subr.mxu0 0.0
      %470 = vmatpush1.msra.mxu0 0.0
      %471 = vmatprep.subr.mxu0 0.0
      %472 = vmatpush1.msra.mxu0 0.0
      %473 = vmatprep.subr.mxu0 0.0
      %474 = vmatpush1.msra.mxu0 0.0
      %475 = vmatprep.mubr.f32.mxu0 0.0
      %476 = vmatmul.mubr.f32.gmra.mrb[0].mxu0 %v338
      %v477 = vpop.f32.mrb[0].mxu0
      %v478 = vadd.f32 %v334, %v477
      %v479 = vpop.f32.mrb[0].mxu0
      %480 = vdwg.mxu0
      %s481 = scalar_lea.vmem %s1, 8
      %v482 = vld [vmem:[%s481] sm:$0xf]
      %483 = vrot.lane.b32.xlu0 %v171, 126
      %v484 = vpop.permute.xlu0 %483
      %485 = vrot.lane.b32.xlu0 %v172, 126
      %v486 = vpop.permute.xlu0 %485
      %487 = vrot.lane.b32.xlu0 %v173, 126
      %v488 = vpop.permute.xlu0 %487
      %vm489 = vcmask 1031168
      %v490 = vsel %vm489, %v484, %v486
      %v491 = vsel %vm489, %v486, %v488
      %v496 = vsel %vm192, %v482, 0
      %498 = vmatprep.subr.mxu0 %v491
      %499 = vmatpush1.msra.mxu0 %v490
      %500 = vmatprep.subr.mxu0 0.0
      %501 = vmatpush1.msra.mxu0 0.0
      %502 = vmatprep.subr.mxu0 0.0
      %503 = vmatpush1.msra.mxu0 0.0
      %504 = vmatprep.subr.mxu0 0.0
      %505 = vmatpush1.msra.mxu0 0.0
      %506 = vmatprep.subr.mxu0 0.0
      %507 = vmatpush1.msra.mxu0 0.0
      %508 = vmatprep.subr.mxu0 0.0
      %509 = vmatpush1.msra.mxu0 0.0
      %510 = vmatprep.subr.mxu0 0.0
      %511 = vmatpush1.msra.mxu0 0.0
      %512 = vmatprep.subr.mxu0 0.0
      %513 = vmatpush1.msra.mxu0 0.0
      %514 = vmatprep.subr.mxu0 0.0
      %515 = vmatpush1.msra.mxu0 0.0
      %516 = vmatprep.subr.mxu0 0.0
      %517 = vmatpush1.msra.mxu0 0.0
      %518 = vmatprep.subr.mxu0 0.0
      %519 = vmatpush1.msra.mxu0 0.0
      %520 = vmatprep.subr.mxu0 0.0
      %521 = vmatpush1.msra.mxu0 0.0
      %522 = vmatprep.subr.mxu0 0.0
      %523 = vmatpush1.msra.mxu0 0.0
      %524 = vmatprep.subr.mxu0 0.0
      %525 = vmatpush1.msra.mxu0 0.0
      %526 = vmatprep.subr.mxu0 0.0
      %527 = vmatpush1.msra.mxu0 0.0
      %528 = vmatprep.subr.mxu0 0.0
      %529 = vmatpush1.msra.mxu0 0.0
      %530 = vmatprep.subr.mxu0 0.0
      %531 = vmatpush1.msra.mxu0 0.0
      %532 = vmatprep.subr.mxu0 0.0
      %533 = vmatpush1.msra.mxu0 0.0
      %534 = vmatprep.subr.mxu0 0.0
      %535 = vmatpush1.msra.mxu0 0.0
      %536 = vmatprep.subr.mxu0 0.0
      %537 = vmatpush1.msra.mxu0 0.0
      %538 = vmatprep.subr.mxu0 0.0
      %539 = vmatpush1.msra.mxu0 0.0
      %540 = vmatprep.subr.mxu0 0.0
      %541 = vmatpush1.msra.mxu0 0.0
      %542 = vmatprep.subr.mxu0 0.0
      %543 = vmatpush1.msra.mxu0 0.0
      %544 = vmatprep.subr.mxu0 0.0
      %545 = vmatpush1.msra.mxu0 0.0
      %546 = vmatprep.subr.mxu0 0.0
      %547 = vmatpush1.msra.mxu0 0.0
      %548 = vmatprep.subr.mxu0 0.0
      %549 = vmatpush1.msra.mxu0 0.0
      %550 = vmatprep.subr.mxu0 0.0
      %551 = vmatpush1.msra.mxu0 0.0
      %552 = vmatprep.subr.mxu0 0.0
      %553 = vmatpush1.msra.mxu0 0.0
      %554 = vmatprep.subr.mxu0 0.0
      %555 = vmatpush1.msra.mxu0 0.0
      %556 = vmatprep.subr.mxu0 0.0
      %557 = vmatpush1.msra.mxu0 0.0
      %558 = vmatprep.subr.mxu0 0.0
      %559 = vmatpush1.msra.mxu0 0.0
      %560 = vmatprep.subr.mxu0 0.0
      %561 = vmatpush1.msra.mxu0 0.0
      %562 = vmatprep.mubr.f32.mxu0 0.0
      %563 = vmatmul.mubr.f32.gmra.mrb[0].mxu0 %v496
      %v564 = vpop.f32.mrb[0].mxu0
      %v565 = vadd.f32 0.0, %v564
      %v566 = vpop.f32.mrb[0].mxu0
      %v567 = vadd.f32 0.0, %v566
      %568 = vdwg.mxu0
      %569 = vmatprep.subr.mxu0 0.0
      %570 = vmatpush1.msra.mxu0 %v488
      %571 = vmatprep.subr.mxu0 0.0
      %572 = vmatpush1.msra.mxu0 0.0
      %573 = vmatprep.subr.mxu0 0.0
      %574 = vmatpush1.msra.mxu0 0.0
      %575 = vmatprep.subr.mxu0 0.0
      %576 = vmatpush1.msra.mxu0 0.0
      %577 = vmatprep.subr.mxu0 0.0
      %578 = vmatpush1.msra.mxu0 0.0
      %579 = vmatprep.subr.mxu0 0.0
      %580 = vmatpush1.msra.mxu0 0.0
      %581 = vmatprep.subr.mxu0 0.0
      %582 = vmatpush1.msra.mxu0 0.0
      %583 = vmatprep.subr.mxu0 0.0
      %584 = vmatpush1.msra.mxu0 0.0
      %585 = vmatprep.subr.mxu0 0.0
      %586 = vmatpush1.msra.mxu0 0.0
      %587 = vmatprep.subr.mxu0 0.0
      %588 = vmatpush1.msra.mxu0 0.0
      %589 = vmatprep.subr.mxu0 0.0
      %590 = vmatpush1.msra.mxu0 0.0
      %591 = vmatprep.subr.mxu0 0.0
      %592 = vmatpush1.msra.mxu0 0.0
      %593 = vmatprep.subr.mxu0 0.0
      %594 = vmatpush1.msra.mxu0 0.0
      %595 = vmatprep.subr.mxu0 0.0
      %596 = vmatpush1.msra.mxu0 0.0
      %597 = vmatprep.subr.mxu0 0.0
      %598 = vmatpush1.msra.mxu0 0.0
      %599 = vmatprep.subr.mxu0 0.0
      %600 = vmatpush1.msra.mxu0 0.0
      %601 = vmatprep.subr.mxu0 0.0
      %602 = vmatpush1.msra.mxu0 0.0
      %603 = vmatprep.subr.mxu0 0.0
      %604 = vmatpush1.msra.mxu0 0.0
      %605 = vmatprep.subr.mxu0 0.0
      %606 = vmatpush1.msra.mxu0 0.0
      %607 = vmatprep.subr.mxu0 0.0
      %608 = vmatpush1.msra.mxu0 0.0
      %609 = vmatprep.subr.mxu0 0.0
      %610 = vmatpush1.msra.mxu0 0.0
      %611 = vmatprep.subr.mxu0 0.0
      %612 = vmatpush1.msra.mxu0 0.0
      %613 = vmatprep.subr.mxu0 0.0
      %614 = vmatpush1.msra.mxu0 0.0
      %615 = vmatprep.subr.mxu0 0.0
      %616 = vmatpush1.msra.mxu0 0.0
      %617 = vmatprep.subr.mxu0 0.0
      %618 = vmatpush1.msra.mxu0 0.0
      %619 = vmatprep.subr.mxu0 0.0
      %620 = vmatpush1.msra.mxu0 0.0
      %621 = vmatprep.subr.mxu0 0.0
      %622 = vmatpush1.msra.mxu0 0.0
      %623 = vmatprep.subr.mxu0 0.0
      %624 = vmatpush1.msra.mxu0 0.0
      %625 = vmatprep.subr.mxu0 0.0
      %626 = vmatpush1.msra.mxu0 0.0
      %627 = vmatprep.subr.mxu0 0.0
      %628 = vmatpush1.msra.mxu0 0.0
      %629 = vmatprep.subr.mxu0 0.0
      %630 = vmatpush1.msra.mxu0 0.0
      %631 = vmatprep.subr.mxu0 0.0
      %632 = vmatpush1.msra.mxu0 0.0
      %633 = vmatprep.mubr.f32.mxu0 0.0
      %634 = vmatmul.mubr.f32.gmra.mrb[0].mxu0 %v496
      %v635 = vpop.f32.mrb[0].mxu0
      %v636 = vadd.f32 0.0, %v635
      %v637 = vpop.f32.mrb[0].mxu0
      %638 = vdwg.mxu0
      %v639 = vadd.f32 %v407, %v565
      %v640 = vadd.f32 %v409, %v567
      %v641 = vadd.f32 %v478, %v636
      %s642 = scalar_lea.vmem %s1, 12
      %v643 = vld [vmem:[%s642] sm:$0xf]
      %644 = vrot.lane.b32.xlu0 %v171, 110
      %v645 = vpop.permute.xlu0 %644
      %646 = vrot.lane.b32.xlu0 %v172, 110
      %v647 = vpop.permute.xlu0 %646
      %648 = vrot.lane.b32.xlu0 %v173, 110
      %v649 = vpop.permute.xlu0 %648
      %vm650 = vcmask 900096
      %v651 = vsel %vm650, %v645, %v647
      %v652 = vsel %vm650, %v647, %v649
      %v657 = vsel %vm192, %v643, 0
      %659 = vmatprep.subr.mxu0 %v652
      %660 = vmatpush1.msra.mxu0 %v651
      %661 = vmatprep.subr.mxu0 0.0
      %662 = vmatpush1.msra.mxu0 0.0
      %663 = vmatprep.subr.mxu0 0.0
      %664 = vmatpush1.msra.mxu0 0.0
      %665 = vmatprep.subr.mxu0 0.0
      %666 = vmatpush1.msra.mxu0 0.0
      %667 = vmatprep.subr.mxu0 0.0
      %668 = vmatpush1.msra.mxu0 0.0
      %669 = vmatprep.subr.mxu0 0.0
      %670 = vmatpush1.msra.mxu0 0.0
      %671 = vmatprep.subr.mxu0 0.0
      %672 = vmatpush1.msra.mxu0 0.0
      %673 = vmatprep.subr.mxu0 0.0
      %674 = vmatpush1.msra.mxu0 0.0
      %675 = vmatprep.subr.mxu0 0.0
      %676 = vmatpush1.msra.mxu0 0.0
      %677 = vmatprep.subr.mxu0 0.0
      %678 = vmatpush1.msra.mxu0 0.0
      %679 = vmatprep.subr.mxu0 0.0
      %680 = vmatpush1.msra.mxu0 0.0
      %681 = vmatprep.subr.mxu0 0.0
      %682 = vmatpush1.msra.mxu0 0.0
      %683 = vmatprep.subr.mxu0 0.0
      %684 = vmatpush1.msra.mxu0 0.0
      %685 = vmatprep.subr.mxu0 0.0
      %686 = vmatpush1.msra.mxu0 0.0
      %687 = vmatprep.subr.mxu0 0.0
      %688 = vmatpush1.msra.mxu0 0.0
      %689 = vmatprep.subr.mxu0 0.0
      %690 = vmatpush1.msra.mxu0 0.0
      %691 = vmatprep.subr.mxu0 0.0
      %692 = vmatpush1.msra.mxu0 0.0
      %693 = vmatprep.subr.mxu0 0.0
      %694 = vmatpush1.msra.mxu0 0.0
      %695 = vmatprep.subr.mxu0 0.0
      %696 = vmatpush1.msra.mxu0 0.0
      %697 = vmatprep.subr.mxu0 0.0
      %698 = vmatpush1.msra.mxu0 0.0
      %699 = vmatprep.subr.mxu0 0.0
      %700 = vmatpush1.msra.mxu0 0.0
      %701 = vmatprep.subr.mxu0 0.0
      %702 = vmatpush1.msra.mxu0 0.0
      %703 = vmatprep.subr.mxu0 0.0
      %704 = vmatpush1.msra.mxu0 0.0
      %705 = vmatprep.subr.mxu0 0.0
      %706 = vmatpush1.msra.mxu0 0.0
      %707 = vmatprep.subr.mxu0 0.0
      %708 = vmatpush1.msra.mxu0 0.0
      %709 = vmatprep.subr.mxu0 0.0
      %710 = vmatpush1.msra.mxu0 0.0
      %711 = vmatprep.subr.mxu0 0.0
      %712 = vmatpush1.msra.mxu0 0.0
      %713 = vmatprep.subr.mxu0 0.0
      %714 = vmatpush1.msra.mxu0 0.0
      %715 = vmatprep.subr.mxu0 0.0
      %716 = vmatpush1.msra.mxu0 0.0
      %717 = vmatprep.subr.mxu0 0.0
      %718 = vmatpush1.msra.mxu0 0.0
      %719 = vmatprep.subr.mxu0 0.0
      %720 = vmatpush1.msra.mxu0 0.0
      %721 = vmatprep.subr.mxu0 0.0
      %722 = vmatpush1.msra.mxu0 0.0
      %723 = vmatprep.mubr.f32.mxu0 0.0
      %724 = vmatmul.mubr.f32.gmra.mrb[0].mxu0 %v657
      %v725 = vpop.f32.mrb[0].mxu0
      %v726 = vadd.f32 0.0, %v725
      %v727 = vpop.f32.mrb[0].mxu0
      %v728 = vadd.f32 0.0, %v727
      %729 = vdwg.mxu0
      %730 = vmatprep.subr.mxu0 0.0
      %731 = vmatpush1.msra.mxu0 %v649
      %732 = vmatprep.subr.mxu0 0.0
      %733 = vmatpush1.msra.mxu0 0.0
      %734 = vmatprep.subr.mxu0 0.0
      %735 = vmatpush1.msra.mxu0 0.0
      %736 = vmatprep.subr.mxu0 0.0
      %737 = vmatpush1.msra.mxu0 0.0
      %738 = vmatprep.subr.mxu0 0.0
      %739 = vmatpush1.msra.mxu0 0.0
      %740 = vmatprep.subr.mxu0 0.0
      %741 = vmatpush1.msra.mxu0 0.0
      %742 = vmatprep.subr.mxu0 0.0
      %743 = vmatpush1.msra.mxu0 0.0
      %744 = vmatprep.subr.mxu0 0.0
      %745 = vmatpush1.msra.mxu0 0.0
      %746 = vmatprep.subr.mxu0 0.0
      %747 = vmatpush1.msra.mxu0 0.0
      %748 = vmatprep.subr.mxu0 0.0
      %749 = vmatpush1.msra.mxu0 0.0
      %750 = vmatprep.subr.mxu0 0.0
      %751 = vmatpush1.msra.mxu0 0.0
      %752 = vmatprep.subr.mxu0 0.0
      %753 = vmatpush1.msra.mxu0 0.0
      %754 = vmatprep.subr.mxu0 0.0
      %755 = vmatpush1.msra.mxu0 0.0
      %756 = vmatprep.subr.mxu0 0.0
      %757 = vmatpush1.msra.mxu0 0.0
      %758 = vmatprep.subr.mxu0 0.0
      %759 = vmatpush1.msra.mxu0 0.0
      %760 = vmatprep.subr.mxu0 0.0
      %761 = vmatpush1.msra.mxu0 0.0
      %762 = vmatprep.subr.mxu0 0.0
      %763 = vmatpush1.msra.mxu0 0.0
      %764 = vmatprep.subr.mxu0 0.0
      %765 = vmatpush1.msra.mxu0 0.0
      %766 = vmatprep.subr.mxu0 0.0
      %767 = vmatpush1.msra.mxu0 0.0
      %768 = vmatprep.subr.mxu0 0.0
      %769 = vmatpush1.msra.mxu0 0.0
      %770 = vmatprep.subr.mxu0 0.0
      %771 = vmatpush1.msra.mxu0 0.0
      %772 = vmatprep.subr.mxu0 0.0
      %773 = vmatpush1.msra.mxu0 0.0
      %774 = vmatprep.subr.mxu0 0.0
      %775 = vmatpush1.msra.mxu0 0.0
      %776 = vmatprep.subr.mxu0 0.0
      %777 = vmatpush1.msra.mxu0 0.0
      %778 = vmatprep.subr.mxu0 0.0
      %779 = vmatpush1.msra.mxu0 0.0
      %780 = vmatprep.subr.mxu0 0.0
      %781 = vmatpush1.msra.mxu0 0.0
      %782 = vmatprep.subr.mxu0 0.0
      %783 = vmatpush1.msra.mxu0 0.0
      %784 = vmatprep.subr.mxu0 0.0
      %785 = vmatpush1.msra.mxu0 0.0
      %786 = vmatprep.subr.mxu0 0.0
      %787 = vmatpush1.msra.mxu0 0.0
      %788 = vmatprep.subr.mxu0 0.0
      %789 = vmatpush1.msra.mxu0 0.0
      %790 = vmatprep.subr.mxu0 0.0
      %791 = vmatpush1.msra.mxu0 0.0
      %792 = vmatprep.subr.mxu0 0.0
      %793 = vmatpush1.msra.mxu0 0.0
      %794 = vmatprep.mubr.f32.mxu0 0.0
      %795 = vmatmul.mubr.f32.gmra.mrb[0].mxu0 %v657
      %v796 = vpop.f32.mrb[0].mxu0
      %v797 = vadd.f32 0.0, %v796
      %v798 = vpop.f32.mrb[0].mxu0
      %799 = vdwg.mxu0
      %v800 = vadd.f32 %v639, %v726
      %v801 = vadd.f32 %v640, %v728
      %v802 = vadd.f32 %v641, %v797
      %s803 = scalar_lea.vmem %s1, 16
      %v804 = vld [vmem:[%s803] sm:$0xf]
      %805 = vrot.lane.b32.xlu0 %v171, 109
      %v806 = vpop.permute.xlu0 %805
      %807 = vrot.lane.b32.xlu0 %v172, 109
      %v808 = vpop.permute.xlu0 %807
      %809 = vrot.lane.b32.xlu0 %v173, 109
      %v810 = vpop.permute.xlu0 %809
      %vm811 = vcmask 891904
      %v812 = vsel %vm811, %v806, %v808
      %v813 = vsel %vm811, %v808, %v810
      %v818 = vsel %vm192, %v804, 0
      %820 = vmatprep.subr.mxu0 %v813
      %821 = vmatpush1.msra.mxu0 %v812
      %822 = vmatprep.subr.mxu0 0.0
      %823 = vmatpush1.msra.mxu0 0.0
      %824 = vmatprep.subr.mxu0 0.0
      %825 = vmatpush1.msra.mxu0 0.0
      %826 = vmatprep.subr.mxu0 0.0
      %827 = vmatpush1.msra.mxu0 0.0
      %828 = vmatprep.subr.mxu0 0.0
      %829 = vmatpush1.msra.mxu0 0.0
      %830 = vmatprep.subr.mxu0 0.0
      %831 = vmatpush1.msra.mxu0 0.0
      %832 = vmatprep.subr.mxu0 0.0
      %833 = vmatpush1.msra.mxu0 0.0
      %834 = vmatprep.subr.mxu0 0.0
      %835 = vmatpush1.msra.mxu0 0.0
      %836 = vmatprep.subr.mxu0 0.0
      %837 = vmatpush1.msra.mxu0 0.0
      %838 = vmatprep.subr.mxu0 0.0
      %839 = vmatpush1.msra.mxu0 0.0
      %840 = vmatprep.subr.mxu0 0.0
      %841 = vmatpush1.msra.mxu0 0.0
      %842 = vmatprep.subr.mxu0 0.0
      %843 = vmatpush1.msra.mxu0 0.0
      %844 = vmatprep.subr.mxu0 0.0
      %845 = vmatpush1.msra.mxu0 0.0
      %846 = vmatprep.subr.mxu0 0.0
      %847 = vmatpush1.msra.mxu0 0.0
      %848 = vmatprep.subr.mxu0 0.0
      %849 = vmatpush1.msra.mxu0 0.0
      %850 = vmatprep.subr.mxu0 0.0
      %851 = vmatpush1.msra.mxu0 0.0
      %852 = vmatprep.subr.mxu0 0.0
      %853 = vmatpush1.msra.mxu0 0.0
      %854 = vmatprep.subr.mxu0 0.0
      %855 = vmatpush1.msra.mxu0 0.0
      %856 = vmatprep.subr.mxu0 0.0
      %857 = vmatpush1.msra.mxu0 0.0
      %858 = vmatprep.subr.mxu0 0.0
      %859 = vmatpush1.msra.mxu0 0.0
      %860 = vmatprep.subr.mxu0 0.0
      %861 = vmatpush1.msra.mxu0 0.0
      %862 = vmatprep.subr.mxu0 0.0
      %863 = vmatpush1.msra.mxu0 0.0
      %864 = vmatprep.subr.mxu0 0.0
      %865 = vmatpush1.msra.mxu0 0.0
      %866 = vmatprep.subr.mxu0 0.0
      %867 = vmatpush1.msra.mxu0 0.0
      %868 = vmatprep.subr.mxu0 0.0
      %869 = vmatpush1.msra.mxu0 0.0
      %870 = vmatprep.subr.mxu0 0.0
      %871 = vmatpush1.msra.mxu0 0.0
      %872 = vmatprep.subr.mxu0 0.0
      %873 = vmatpush1.msra.mxu0 0.0
      %874 = vmatprep.subr.mxu0 0.0
      %875 = vmatpush1.msra.mxu0 0.0
      %876 = vmatprep.subr.mxu0 0.0
      %877 = vmatpush1.msra.mxu0 0.0
      %878 = vmatprep.subr.mxu0 0.0
      %879 = vmatpush1.msra.mxu0 0.0
      %880 = vmatprep.subr.mxu0 0.0
      %881 = vmatpush1.msra.mxu0 0.0
      %882 = vmatprep.subr.mxu0 0.0
      %883 = vmatpush1.msra.mxu0 0.0
      %884 = vmatprep.mubr.f32.mxu0 0.0
      %885 = vmatmul.mubr.f32.gmra.mrb[0].mxu0 %v818
      %v886 = vpop.f32.mrb[0].mxu0
      %v887 = vadd.f32 0.0, %v886
      %v888 = vpop.f32.mrb[0].mxu0
      %v889 = vadd.f32 0.0, %v888
      %890 = vdwg.mxu0
      %891 = vmatprep.subr.mxu0 0.0
      %892 = vmatpush1.msra.mxu0 %v810
      %893 = vmatprep.subr.mxu0 0.0
      %894 = vmatpush1.msra.mxu0 0.0
      %895 = vmatprep.subr.mxu0 0.0
      %896 = vmatpush1.msra.mxu0 0.0
      %897 = vmatprep.subr.mxu0 0.0
      %898 = vmatpush1.msra.mxu0 0.0
      %899 = vmatprep.subr.mxu0 0.0
      %900 = vmatpush1.msra.mxu0 0.0
      %901 = vmatprep.subr.mxu0 0.0
      %902 = vmatpush1.msra.mxu0 0.0
      %903 = vmatprep.subr.mxu0 0.0
      %904 = vmatpush1.msra.mxu0 0.0
      %905 = vmatprep.subr.mxu0 0.0
      %906 = vmatpush1.msra.mxu0 0.0
      %907 = vmatprep.subr.mxu0 0.0
      %908 = vmatpush1.msra.mxu0 0.0
      %909 = vmatprep.subr.mxu0 0.0
      %910 = vmatpush1.msra.mxu0 0.0
      %911 = vmatprep.subr.mxu0 0.0
      %912 = vmatpush1.msra.mxu0 0.0
      %913 = vmatprep.subr.mxu0 0.0
      %914 = vmatpush1.msra.mxu0 0.0
      %915 = vmatprep.subr.mxu0 0.0
      %916 = vmatpush1.msra.mxu0 0.0
      %917 = vmatprep.subr.mxu0 0.0
      %918 = vmatpush1.msra.mxu0 0.0
      %919 = vmatprep.subr.mxu0 0.0
      %920 = vmatpush1.msra.mxu0 0.0
      %921 = vmatprep.subr.mxu0 0.0
      %922 = vmatpush1.msra.mxu0 0.0
      %923 = vmatprep.subr.mxu0 0.0
      %924 = vmatpush1.msra.mxu0 0.0
      %925 = vmatprep.subr.mxu0 0.0
      %926 = vmatpush1.msra.mxu0 0.0
      %927 = vmatprep.subr.mxu0 0.0
      %928 = vmatpush1.msra.mxu0 0.0
      %929 = vmatprep.subr.mxu0 0.0
      %930 = vmatpush1.msra.mxu0 0.0
      %931 = vmatprep.subr.mxu0 0.0
      %932 = vmatpush1.msra.mxu0 0.0
      %933 = vmatprep.subr.mxu0 0.0
      %934 = vmatpush1.msra.mxu0 0.0
      %935 = vmatprep.subr.mxu0 0.0
      %936 = vmatpush1.msra.mxu0 0.0
      %937 = vmatprep.subr.mxu0 0.0
      %938 = vmatpush1.msra.mxu0 0.0
      %939 = vmatprep.subr.mxu0 0.0
      %940 = vmatpush1.msra.mxu0 0.0
      %941 = vmatprep.subr.mxu0 0.0
      %942 = vmatpush1.msra.mxu0 0.0
      %943 = vmatprep.subr.mxu0 0.0
      %944 = vmatpush1.msra.mxu0 0.0
      %945 = vmatprep.subr.mxu0 0.0
      %946 = vmatpush1.msra.mxu0 0.0
      %947 = vmatprep.subr.mxu0 0.0
      %948 = vmatpush1.msra.mxu0 0.0
      %949 = vmatprep.subr.mxu0 0.0
      %950 = vmatpush1.msra.mxu0 0.0
      %951 = vmatprep.subr.mxu0 0.0
      %952 = vmatpush1.msra.mxu0 0.0
      %953 = vmatprep.subr.mxu0 0.0
      %954 = vmatpush1.msra.mxu0 0.0
      %955 = vmatprep.mubr.f32.mxu0 0.0
      %956 = vmatmul.mubr.f32.gmra.mrb[0].mxu0 %v818
      %v957 = vpop.f32.mrb[0].mxu0
      %v958 = vadd.f32 0.0, %v957
      %v959 = vpop.f32.mrb[0].mxu0
      %960 = vdwg.mxu0
      %v961 = vadd.f32 %v800, %v887
      %v962 = vadd.f32 %v801, %v889
      %v963 = vadd.f32 %v802, %v958
      %s964 = scalar_lea.vmem %s1, 20
      %v965 = vld [vmem:[%s964] sm:$0xf]
      %966 = vrot.lane.b32.xlu0 %v171, 108
      %v967 = vpop.permute.xlu0 %966
      %968 = vrot.lane.b32.xlu0 %v172, 108
      %v969 = vpop.permute.xlu0 %968
      %970 = vrot.lane.b32.xlu0 %v173, 108
      %v971 = vpop.permute.xlu0 %970
      %vm972 = vcmask 883712
      %v973 = vsel %vm972, %v967, %v969
      %v974 = vsel %vm972, %v969, %v971
      %v979 = vsel %vm192, %v965, 0
      %981 = vmatprep.subr.mxu0 %v974
      %982 = vmatpush1.msra.mxu0 %v973
      %983 = vmatprep.subr.mxu0 0.0
      %984 = vmatpush1.msra.mxu0 0.0
      %985 = vmatprep.subr.mxu0 0.0
      %986 = vmatpush1.msra.mxu0 0.0
      %987 = vmatprep.subr.mxu0 0.0
      %988 = vmatpush1.msra.mxu0 0.0
      %989 = vmatprep.subr.mxu0 0.0
      %990 = vmatpush1.msra.mxu0 0.0
      %991 = vmatprep.subr.mxu0 0.0
      %992 = vmatpush1.msra.mxu0 0.0
      %993 = vmatprep.subr.mxu0 0.0
      %994 = vmatpush1.msra.mxu0 0.0
      %995 = vmatprep.subr.mxu0 0.0
      %996 = vmatpush1.msra.mxu0 0.0
      %997 = vmatprep.subr.mxu0 0.0
      %998 = vmatpush1.msra.mxu0 0.0
      %999 = vmatprep.subr.mxu0 0.0
      %1000 = vmatpush1.msra.mxu0 0.0
      %1001 = vmatprep.subr.mxu0 0.0
      %1002 = vmatpush1.msra.mxu0 0.0
      %1003 = vmatprep.subr.mxu0 0.0
      %1004 = vmatpush1.msra.mxu0 0.0
      %1005 = vmatprep.subr.mxu0 0.0
      %1006 = vmatpush1.msra.mxu0 0.0
      %1007 = vmatprep.subr.mxu0 0.0
      %1008 = vmatpush1.msra.mxu0 0.0
      %1009 = vmatprep.subr.mxu0 0.0
      %1010 = vmatpush1.msra.mxu0 0.0
      %1011 = vmatprep.subr.mxu0 0.0
      %1012 = vmatpush1.msra.mxu0 0.0
      %1013 = vmatprep.subr.mxu0 0.0
      %1014 = vmatpush1.msra.mxu0 0.0
      %1015 = vmatprep.subr.mxu0 0.0
      %1016 = vmatpush1.msra.mxu0 0.0
      %1017 = vmatprep.subr.mxu0 0.0
      %1018 = vmatpush1.msra.mxu0 0.0
      %1019 = vmatprep.subr.mxu0 0.0
      %1020 = vmatpush1.msra.mxu0 0.0
      %1021 = vmatprep.subr.mxu0 0.0
      %1022 = vmatpush1.msra.mxu0 0.0
      %1023 = vmatprep.subr.mxu0 0.0
      %1024 = vmatpush1.msra.mxu0 0.0
      %1025 = vmatprep.subr.mxu0 0.0
      %1026 = vmatpush1.msra.mxu0 0.0
      %1027 = vmatprep.subr.mxu0 0.0
      %1028 = vmatpush1.msra.mxu0 0.0
      %1029 = vmatprep.subr.mxu0 0.0
      %1030 = vmatpush1.msra.mxu0 0.0
      %1031 = vmatprep.subr.mxu0 0.0
      %1032 = vmatpush1.msra.mxu0 0.0
      %1033 = vmatprep.subr.mxu0 0.0
      %1034 = vmatpush1.msra.mxu0 0.0
      %1035 = vmatprep.subr.mxu0 0.0
      %1036 = vmatpush1.msra.mxu0 0.0
      %1037 = vmatprep.subr.mxu0 0.0
      %1038 = vmatpush1.msra.mxu0 0.0
      %1039 = vmatprep.subr.mxu0 0.0
      %1040 = vmatpush1.msra.mxu0 0.0
      %1041 = vmatprep.subr.mxu0 0.0
      %1042 = vmatpush1.msra.mxu0 0.0
      %1043 = vmatprep.subr.mxu0 0.0
      %1044 = vmatpush1.msra.mxu0 0.0
      %1045 = vmatprep.mubr.f32.mxu0 0.0
      %1046 = vmatmul.mubr.f32.gmra.mrb[0].mxu0 %v979
      %v1047 = vpop.f32.mrb[0].mxu0
      %v1048 = vadd.f32 0.0, %v1047
      %v1049 = vpop.f32.mrb[0].mxu0
      %v1050 = vadd.f32 0.0, %v1049
      %1051 = vdwg.mxu0
      %1052 = vmatprep.subr.mxu0 0.0
      %1053 = vmatpush1.msra.mxu0 %v971
      %1054 = vmatprep.subr.mxu0 0.0
      %1055 = vmatpush1.msra.mxu0 0.0
      %1056 = vmatprep.subr.mxu0 0.0
      %1057 = vmatpush1.msra.mxu0 0.0
      %1058 = vmatprep.subr.mxu0 0.0
      %1059 = vmatpush1.msra.mxu0 0.0
      %1060 = vmatprep.subr.mxu0 0.0
      %1061 = vmatpush1.msra.mxu0 0.0
      %1062 = vmatprep.subr.mxu0 0.0
      %1063 = vmatpush1.msra.mxu0 0.0
      %1064 = vmatprep.subr.mxu0 0.0
      %1065 = vmatpush1.msra.mxu0 0.0
      %1066 = vmatprep.subr.mxu0 0.0
      %1067 = vmatpush1.msra.mxu0 0.0
      %1068 = vmatprep.subr.mxu0 0.0
      %1069 = vmatpush1.msra.mxu0 0.0
      %1070 = vmatprep.subr.mxu0 0.0
      %1071 = vmatpush1.msra.mxu0 0.0
      %1072 = vmatprep.subr.mxu0 0.0
      %1073 = vmatpush1.msra.mxu0 0.0
      %1074 = vmatprep.subr.mxu0 0.0
      %1075 = vmatpush1.msra.mxu0 0.0
      %1076 = vmatprep.subr.mxu0 0.0
      %1077 = vmatpush1.msra.mxu0 0.0
      %1078 = vmatprep.subr.mxu0 0.0
      %1079 = vmatpush1.msra.mxu0 0.0
      %1080 = vmatprep.subr.mxu0 0.0
      %1081 = vmatpush1.msra.mxu0 0.0
      %1082 = vmatprep.subr.mxu0 0.0
      %1083 = vmatpush1.msra.mxu0 0.0
      %1084 = vmatprep.subr.mxu0 0.0
      %1085 = vmatpush1.msra.mxu0 0.0
      %1086 = vmatprep.subr.mxu0 0.0
      %1087 = vmatpush1.msra.mxu0 0.0
      %1088 = vmatprep.subr.mxu0 0.0
      %1089 = vmatpush1.msra.mxu0 0.0
      %1090 = vmatprep.subr.mxu0 0.0
      %1091 = vmatpush1.msra.mxu0 0.0
      %1092 = vmatprep.subr.mxu0 0.0
      %1093 = vmatpush1.msra.mxu0 0.0
      %1094 = vmatprep.subr.mxu0 0.0
      %1095 = vmatpush1.msra.mxu0 0.0
      %1096 = vmatprep.subr.mxu0 0.0
      %1097 = vmatpush1.msra.mxu0 0.0
      %1098 = vmatprep.subr.mxu0 0.0
      %1099 = vmatpush1.msra.mxu0 0.0
      %1100 = vmatprep.subr.mxu0 0.0
      %1101 = vmatpush1.msra.mxu0 0.0
      %1102 = vmatprep.subr.mxu0 0.0
      %1103 = vmatpush1.msra.mxu0 0.0
      %1104 = vmatprep.subr.mxu0 0.0
      %1105 = vmatpush1.msra.mxu0 0.0
      %1106 = vmatprep.subr.mxu0 0.0
      %1107 = vmatpush1.msra.mxu0 0.0
      %1108 = vmatprep.subr.mxu0 0.0
      %1109 = vmatpush1.msra.mxu0 0.0
      %1110 = vmatprep.subr.mxu0 0.0
      %1111 = vmatpush1.msra.mxu0 0.0
      %1112 = vmatprep.subr.mxu0 0.0
      %1113 = vmatpush1.msra.mxu0 0.0
      %1114 = vmatprep.subr.mxu0 0.0
      %1115 = vmatpush1.msra.mxu0 0.0
      %1116 = vmatprep.mubr.f32.mxu0 0.0
      %1117 = vmatmul.mubr.f32.gmra.mrb[0].mxu0 %v979
      %v1118 = vpop.f32.mrb[0].mxu0
      %v1119 = vadd.f32 0.0, %v1118
      %v1120 = vpop.f32.mrb[0].mxu0
      %1121 = vdwg.mxu0
      %v1122 = vadd.f32 %v961, %v1048
      %v1123 = vadd.f32 %v962, %v1050
      %v1124 = vadd.f32 %v963, %v1119
      %s1125 = scalar_lea.vmem %s1, 24
      %v1126 = vld [vmem:[%s1125] sm:$0xf]
      %1127 = vrot.lane.b32.xlu0 %v171, 92
      %v1128 = vpop.permute.xlu0 %1127
      %1129 = vrot.lane.b32.xlu0 %v172, 92
      %v1130 = vpop.permute.xlu0 %1129
      %1131 = vrot.lane.b32.xlu0 %v173, 92
      %v1132 = vpop.permute.xlu0 %1131
      %vm1133 = vcmask 752640
      %v1134 = vsel %vm1133, %v1128, %v1130
      %v1135 = vsel %vm1133, %v1130, %v1132
      %v1140 = vsel %vm192, %v1126, 0
      %1142 = vmatprep.subr.mxu0 %v1135
      %1143 = vmatpush1.msra.mxu0 %v1134
      %1144 = vmatprep.subr.mxu0 0.0
      %1145 = vmatpush1.msra.mxu0 0.0
      %1146 = vmatprep.subr.mxu0 0.0
      %1147 = vmatpush1.msra.mxu0 0.0
      %1148 = vmatprep.subr.mxu0 0.0
      %1149 = vmatpush1.msra.mxu0 0.0
      %1150 = vmatprep.subr.mxu0 0.0
      %1151 = vmatpush1.msra.mxu0 0.0
      %1152 = vmatprep.subr.mxu0 0.0
      %1153 = vmatpush1.msra.mxu0 0.0
      %1154 = vmatprep.subr.mxu0 0.0
      %1155 = vmatpush1.msra.mxu0 0.0
      %1156 = vmatprep.subr.mxu0 0.0
      %1157 = vmatpush1.msra.mxu0 0.0
      %1158 = vmatprep.subr.mxu0 0.0
      %1159 = vmatpush1.msra.mxu0 0.0
      %1160 = vmatprep.subr.mxu0 0.0
      %1161 = vmatpush1.msra.mxu0 0.0
      %1162 = vmatprep.subr.mxu0 0.0
      %1163 = vmatpush1.msra.mxu0 0.0
      %1164 = vmatprep.subr.mxu0 0.0
      %1165 = vmatpush1.msra.mxu0 0.0
      %1166 = vmatprep.subr.mxu0 0.0
      %1167 = vmatpush1.msra.mxu0 0.0
      %1168 = vmatprep.subr.mxu0 0.0
      %1169 = vmatpush1.msra.mxu0 0.0
      %1170 = vmatprep.subr.mxu0 0.0
      %1171 = vmatpush1.msra.mxu0 0.0
      %1172 = vmatprep.subr.mxu0 0.0
      %1173 = vmatpush1.msra.mxu0 0.0
      %1174 = vmatprep.subr.mxu0 0.0
      %1175 = vmatpush1.msra.mxu0 0.0
      %1176 = vmatprep.subr.mxu0 0.0
      %1177 = vmatpush1.msra.mxu0 0.0
      %1178 = vmatprep.subr.mxu0 0.0
      %1179 = vmatpush1.msra.mxu0 0.0
      %1180 = vmatprep.subr.mxu0 0.0
      %1181 = vmatpush1.msra.mxu0 0.0
      %1182 = vmatprep.subr.mxu0 0.0
      %1183 = vmatpush1.msra.mxu0 0.0
      %1184 = vmatprep.subr.mxu0 0.0
      %1185 = vmatpush1.msra.mxu0 0.0
      %1186 = vmatprep.subr.mxu0 0.0
      %1187 = vmatpush1.msra.mxu0 0.0
      %1188 = vmatprep.subr.mxu0 0.0
      %1189 = vmatpush1.msra.mxu0 0.0
      %1190 = vmatprep.subr.mxu0 0.0
      %1191 = vmatpush1.msra.mxu0 0.0
      %1192 = vmatprep.subr.mxu0 0.0
      %1193 = vmatpush1.msra.mxu0 0.0
      %1194 = vmatprep.subr.mxu0 0.0
      %1195 = vmatpush1.msra.mxu0 0.0
      %1196 = vmatprep.subr.mxu0 0.0
      %1197 = vmatpush1.msra.mxu0 0.0
      %1198 = vmatprep.subr.mxu0 0.0
      %1199 = vmatpush1.msra.mxu0 0.0
      %1200 = vmatprep.subr.mxu0 0.0
      %1201 = vmatpush1.msra.mxu0 0.0
      %1202 = vmatprep.subr.mxu0 0.0
      %1203 = vmatpush1.msra.mxu0 0.0
      %1204 = vmatprep.subr.mxu0 0.0
      %1205 = vmatpush1.msra.mxu0 0.0
      %1206 = vmatprep.mubr.f32.mxu0 0.0
      %1207 = vmatmul.mubr.f32.gmra.mrb[0].mxu0 %v1140
      %v1208 = vpop.f32.mrb[0].mxu0
      %v1209 = vadd.f32 0.0, %v1208
      %v1210 = vpop.f32.mrb[0].mxu0
      %v1211 = vadd.f32 0.0, %v1210
      %1212 = vdwg.mxu0
      %1213 = vmatprep.subr.mxu0 0.0
      %1214 = vmatpush1.msra.mxu0 %v1132
      %1215 = vmatprep.subr.mxu0 0.0
      %1216 = vmatpush1.msra.mxu0 0.0
      %1217 = vmatprep.subr.mxu0 0.0
      %1218 = vmatpush1.msra.mxu0 0.0
      %1219 = vmatprep.subr.mxu0 0.0
      %1220 = vmatpush1.msra.mxu0 0.0
      %1221 = vmatprep.subr.mxu0 0.0
      %1222 = vmatpush1.msra.mxu0 0.0
      %1223 = vmatprep.subr.mxu0 0.0
      %1224 = vmatpush1.msra.mxu0 0.0
      %1225 = vmatprep.subr.mxu0 0.0
      %1226 = vmatpush1.msra.mxu0 0.0
      %1227 = vmatprep.subr.mxu0 0.0
      %1228 = vmatpush1.msra.mxu0 0.0
      %1229 = vmatprep.subr.mxu0 0.0
      %1230 = vmatpush1.msra.mxu0 0.0
      %1231 = vmatprep.subr.mxu0 0.0
      %1232 = vmatpush1.msra.mxu0 0.0
      %1233 = vmatprep.subr.mxu0 0.0
      %1234 = vmatpush1.msra.mxu0 0.0
      %1235 = vmatprep.subr.mxu0 0.0
      %1236 = vmatpush1.msra.mxu0 0.0
      %1237 = vmatprep.subr.mxu0 0.0
      %1238 = vmatpush1.msra.mxu0 0.0
      %1239 = vmatprep.subr.mxu0 0.0
      %1240 = vmatpush1.msra.mxu0 0.0
      %1241 = vmatprep.subr.mxu0 0.0
      %1242 = vmatpush1.msra.mxu0 0.0
      %1243 = vmatprep.subr.mxu0 0.0
      %1244 = vmatpush1.msra.mxu0 0.0
      %1245 = vmatprep.subr.mxu0 0.0
      %1246 = vmatpush1.msra.mxu0 0.0
      %1247 = vmatprep.subr.mxu0 0.0
      %1248 = vmatpush1.msra.mxu0 0.0
      %1249 = vmatprep.subr.mxu0 0.0
      %1250 = vmatpush1.msra.mxu0 0.0
      %1251 = vmatprep.subr.mxu0 0.0
      %1252 = vmatpush1.msra.mxu0 0.0
      %1253 = vmatprep.subr.mxu0 0.0
      %1254 = vmatpush1.msra.mxu0 0.0
      %1255 = vmatprep.subr.mxu0 0.0
      %1256 = vmatpush1.msra.mxu0 0.0
      %1257 = vmatprep.subr.mxu0 0.0
      %1258 = vmatpush1.msra.mxu0 0.0
      %1259 = vmatprep.subr.mxu0 0.0
      %1260 = vmatpush1.msra.mxu0 0.0
      %1261 = vmatprep.subr.mxu0 0.0
      %1262 = vmatpush1.msra.mxu0 0.0
      %1263 = vmatprep.subr.mxu0 0.0
      %1264 = vmatpush1.msra.mxu0 0.0
      %1265 = vmatprep.subr.mxu0 0.0
      %1266 = vmatpush1.msra.mxu0 0.0
      %1267 = vmatprep.subr.mxu0 0.0
      %1268 = vmatpush1.msra.mxu0 0.0
      %1269 = vmatprep.subr.mxu0 0.0
      %1270 = vmatpush1.msra.mxu0 0.0
      %1271 = vmatprep.subr.mxu0 0.0
      %1272 = vmatpush1.msra.mxu0 0.0
      %1273 = vmatprep.subr.mxu0 0.0
      %1274 = vmatpush1.msra.mxu0 0.0
      %1275 = vmatprep.subr.mxu0 0.0
      %1276 = vmatpush1.msra.mxu0 0.0
      %1277 = vmatprep.mubr.f32.mxu0 0.0
      %1278 = vmatmul.mubr.f32.gmra.mrb[0].mxu0 %v1140
      %v1279 = vpop.f32.mrb[0].mxu0
      %v1280 = vadd.f32 0.0, %v1279
      %v1281 = vpop.f32.mrb[0].mxu0
      %1282 = vdwg.mxu0
      %v1283 = vadd.f32 %v1122, %v1209
      %v1284 = vadd.f32 %v1123, %v1211
      %v1285 = vadd.f32 %v1124, %v1280
      %s1286 = scalar_lea.vmem %s1, 28
      %v1287 = vld [vmem:[%s1286] sm:$0xf]
      %1288 = vrot.lane.b32.xlu0 %v171, 91
      %v1289 = vpop.permute.xlu0 %1288
      %1290 = vrot.lane.b32.xlu0 %v172, 91
      %v1291 = vpop.permute.xlu0 %1290
      %1292 = vrot.lane.b32.xlu0 %v173, 91
      %v1293 = vpop.permute.xlu0 %1292
      %vm1294 = vcmask 744448
      %v1295 = vsel %vm1294, %v1289, %v1291
      %v1296 = vsel %vm1294, %v1291, %v1293
      %v1301 = vsel %vm192, %v1287, 0
      %1303 = vmatprep.subr.mxu0 %v1296
      %1304 = vmatpush1.msra.mxu0 %v1295
      %1305 = vmatprep.subr.mxu0 0.0
      %1306 = vmatpush1.msra.mxu0 0.0
      %1307 = vmatprep.subr.mxu0 0.0
      %1308 = vmatpush1.msra.mxu0 0.0
      %1309 = vmatprep.subr.mxu0 0.0
      %1310 = vmatpush1.msra.mxu0 0.0
      %1311 = vmatprep.subr.mxu0 0.0
      %1312 = vmatpush1.msra.mxu0 0.0
      %1313 = vmatprep.subr.mxu0 0.0
      %1314 = vmatpush1.msra.mxu0 0.0
      %1315 = vmatprep.subr.mxu0 0.0
      %1316 = vmatpush1.msra.mxu0 0.0
      %1317 = vmatprep.subr.mxu0 0.0
      %1318 = vmatpush1.msra.mxu0 0.0
      %1319 = vmatprep.subr.mxu0 0.0
      %1320 = vmatpush1.msra.mxu0 0.0
      %1321 = vmatprep.subr.mxu0 0.0
      %1322 = vmatpush1.msra.mxu0 0.0
      %1323 = vmatprep.subr.mxu0 0.0
      %1324 = vmatpush1.msra.mxu0 0.0
      %1325 = vmatprep.subr.mxu0 0.0
      %1326 = vmatpush1.msra.mxu0 0.0
      %1327 = vmatprep.subr.mxu0 0.0
      %1328 = vmatpush1.msra.mxu0 0.0
      %1329 = vmatprep.subr.mxu0 0.0
      %1330 = vmatpush1.msra.mxu0 0.0
      %1331 = vmatprep.subr.mxu0 0.0
      %1332 = vmatpush1.msra.mxu0 0.0
      %1333 = vmatprep.subr.mxu0 0.0
      %1334 = vmatpush1.msra.mxu0 0.0
      %1335 = vmatprep.subr.mxu0 0.0
      %1336 = vmatpush1.msra.mxu0 0.0
      %1337 = vmatprep.subr.mxu0 0.0
      %1338 = vmatpush1.msra.mxu0 0.0
      %1339 = vmatprep.subr.mxu0 0.0
      %1340 = vmatpush1.msra.mxu0 0.0
      %1341 = vmatprep.subr.mxu0 0.0
      %1342 = vmatpush1.msra.mxu0 0.0
      %1343 = vmatprep.subr.mxu0 0.0
      %1344 = vmatpush1.msra.mxu0 0.0
      %1345 = vmatprep.subr.mxu0 0.0
      %1346 = vmatpush1.msra.mxu0 0.0
      %1347 = vmatprep.subr.mxu0 0.0
      %1348 = vmatpush1.msra.mxu0 0.0
      %1349 = vmatprep.subr.mxu0 0.0
      %1350 = vmatpush1.msra.mxu0 0.0
      %1351 = vmatprep.subr.mxu0 0.0
      %1352 = vmatpush1.msra.mxu0 0.0
      %1353 = vmatprep.subr.mxu0 0.0
      %1354 = vmatpush1.msra.mxu0 0.0
      %1355 = vmatprep.subr.mxu0 0.0
      %1356 = vmatpush1.msra.mxu0 0.0
      %1357 = vmatprep.subr.mxu0 0.0
      %1358 = vmatpush1.msra.mxu0 0.0
      %1359 = vmatprep.subr.mxu0 0.0
      %1360 = vmatpush1.msra.mxu0 0.0
      %1361 = vmatprep.subr.mxu0 0.0
      %1362 = vmatpush1.msra.mxu0 0.0
      %1363 = vmatprep.subr.mxu0 0.0
      %1364 = vmatpush1.msra.mxu0 0.0
      %1365 = vmatprep.subr.mxu0 0.0
      %1366 = vmatpush1.msra.mxu0 0.0
      %1367 = vmatprep.mubr.f32.mxu0 0.0
      %1368 = vmatmul.mubr.f32.gmra.mrb[0].mxu0 %v1301
      %v1369 = vpop.f32.mrb[0].mxu0
      %v1370 = vadd.f32 0.0, %v1369
      %v1371 = vpop.f32.mrb[0].mxu0
      %v1372 = vadd.f32 0.0, %v1371
      %1373 = vdwg.mxu0
      %1374 = vmatprep.subr.mxu0 0.0
      %1375 = vmatpush1.msra.mxu0 %v1293
      %1376 = vmatprep.subr.mxu0 0.0
      %1377 = vmatpush1.msra.mxu0 0.0
      %1378 = vmatprep.subr.mxu0 0.0
      %1379 = vmatpush1.msra.mxu0 0.0
      %1380 = vmatprep.subr.mxu0 0.0
      %1381 = vmatpush1.msra.mxu0 0.0
      %1382 = vmatprep.subr.mxu0 0.0
      %1383 = vmatpush1.msra.mxu0 0.0
      %1384 = vmatprep.subr.mxu0 0.0
      %1385 = vmatpush1.msra.mxu0 0.0
      %1386 = vmatprep.subr.mxu0 0.0
      %1387 = vmatpush1.msra.mxu0 0.0
      %1388 = vmatprep.subr.mxu0 0.0
      %1389 = vmatpush1.msra.mxu0 0.0
      %1390 = vmatprep.subr.mxu0 0.0
      %1391 = vmatpush1.msra.mxu0 0.0
      %1392 = vmatprep.subr.mxu0 0.0
      %1393 = vmatpush1.msra.mxu0 0.0
      %1394 = vmatprep.subr.mxu0 0.0
      %1395 = vmatpush1.msra.mxu0 0.0
      %1396 = vmatprep.subr.mxu0 0.0
      %1397 = vmatpush1.msra.mxu0 0.0
      %1398 = vmatprep.subr.mxu0 0.0
      %1399 = vmatpush1.msra.mxu0 0.0
      %1400 = vmatprep.subr.mxu0 0.0
      %1401 = vmatpush1.msra.mxu0 0.0
      %1402 = vmatprep.subr.mxu0 0.0
      %1403 = vmatpush1.msra.mxu0 0.0
      %1404 = vmatprep.subr.mxu0 0.0
      %1405 = vmatpush1.msra.mxu0 0.0
      %1406 = vmatprep.subr.mxu0 0.0
      %1407 = vmatpush1.msra.mxu0 0.0
      %1408 = vmatprep.subr.mxu0 0.0
      %1409 = vmatpush1.msra.mxu0 0.0
      %1410 = vmatprep.subr.mxu0 0.0
      %1411 = vmatpush1.msra.mxu0 0.0
      %1412 = vmatprep.subr.mxu0 0.0
      %1413 = vmatpush1.msra.mxu0 0.0
      %1414 = vmatprep.subr.mxu0 0.0
      %1415 = vmatpush1.msra.mxu0 0.0
      %1416 = vmatprep.subr.mxu0 0.0
      %1417 = vmatpush1.msra.mxu0 0.0
      %1418 = vmatprep.subr.mxu0 0.0
      %1419 = vmatpush1.msra.mxu0 0.0
      %1420 = vmatprep.subr.mxu0 0.0
      %1421 = vmatpush1.msra.mxu0 0.0
      %1422 = vmatprep.subr.mxu0 0.0
      %1423 = vmatpush1.msra.mxu0 0.0
      %1424 = vmatprep.subr.mxu0 0.0
      %1425 = vmatpush1.msra.mxu0 0.0
      %1426 = vmatprep.subr.mxu0 0.0
      %1427 = vmatpush1.msra.mxu0 0.0
      %1428 = vmatprep.subr.mxu0 0.0
      %1429 = vmatpush1.msra.mxu0 0.0
      %1430 = vmatprep.subr.mxu0 0.0
      %1431 = vmatpush1.msra.mxu0 0.0
      %1432 = vmatprep.subr.mxu0 0.0
      %1433 = vmatpush1.msra.mxu0 0.0
      %1434 = vmatprep.subr.mxu0 0.0
      %1435 = vmatpush1.msra.mxu0 0.0
      %1436 = vmatprep.subr.mxu0 0.0
      %1437 = vmatpush1.msra.mxu0 0.0
      %1438 = vmatprep.mubr.f32.mxu0 0.0
      %1439 = vmatmul.mubr.f32.gmra.mrb[0].mxu0 %v1301
      %v1440 = vpop.f32.mrb[0].mxu0
      %v1441 = vadd.f32 0.0, %v1440
      %v1442 = vpop.f32.mrb[0].mxu0
      %1443 = vdwg.mxu0
      %v1444 = vadd.f32 %v1283, %v1370
      %v1445 = vadd.f32 %v1284, %v1372
      %v1446 = vadd.f32 %v1285, %v1441
      %s1447 = scalar_lea.vmem %s1, 32
      %v1448 = vld [vmem:[%s1447] sm:$0xf]
      %1449 = vrot.lane.b32.xlu0 %v171, 90
      %v1450 = vpop.permute.xlu0 %1449
      %1451 = vrot.lane.b32.xlu0 %v172, 90
      %v1452 = vpop.permute.xlu0 %1451
      %1453 = vrot.lane.b32.xlu0 %v173, 90
      %v1454 = vpop.permute.xlu0 %1453
      %vm1455 = vcmask 736256
      %v1456 = vsel %vm1455, %v1450, %v1452
      %v1457 = vsel %vm1455, %v1452, %v1454
      %v1462 = vsel %vm192, %v1448, 0
      %1464 = vmatprep.subr.mxu0 %v1457
      %1465 = vmatpush1.msra.mxu0 %v1456
      %1466 = vmatprep.subr.mxu0 0.0
      %1467 = vmatpush1.msra.mxu0 0.0
      %1468 = vmatprep.subr.mxu0 0.0
      %1469 = vmatpush1.msra.mxu0 0.0
      %1470 = vmatprep.subr.mxu0 0.0
      %1471 = vmatpush1.msra.mxu0 0.0
      %1472 = vmatprep.subr.mxu0 0.0
      %1473 = vmatpush1.msra.mxu0 0.0
      %1474 = vmatprep.subr.mxu0 0.0
      %1475 = vmatpush1.msra.mxu0 0.0
      %1476 = vmatprep.subr.mxu0 0.0
      %1477 = vmatpush1.msra.mxu0 0.0
      %1478 = vmatprep.subr.mxu0 0.0
      %1479 = vmatpush1.msra.mxu0 0.0
      %1480 = vmatprep.subr.mxu0 0.0
      %1481 = vmatpush1.msra.mxu0 0.0
      %1482 = vmatprep.subr.mxu0 0.0
      %1483 = vmatpush1.msra.mxu0 0.0
      %1484 = vmatprep.subr.mxu0 0.0
      %1485 = vmatpush1.msra.mxu0 0.0
      %1486 = vmatprep.subr.mxu0 0.0
      %1487 = vmatpush1.msra.mxu0 0.0
      %1488 = vmatprep.subr.mxu0 0.0
      %1489 = vmatpush1.msra.mxu0 0.0
      %1490 = vmatprep.subr.mxu0 0.0
      %1491 = vmatpush1.msra.mxu0 0.0
      %1492 = vmatprep.subr.mxu0 0.0
      %1493 = vmatpush1.msra.mxu0 0.0
      %1494 = vmatprep.subr.mxu0 0.0
      %1495 = vmatpush1.msra.mxu0 0.0
      %1496 = vmatprep.subr.mxu0 0.0
      %1497 = vmatpush1.msra.mxu0 0.0
      %1498 = vmatprep.subr.mxu0 0.0
      %1499 = vmatpush1.msra.mxu0 0.0
      %1500 = vmatprep.subr.mxu0 0.0
      %1501 = vmatpush1.msra.mxu0 0.0
      %1502 = vmatprep.subr.mxu0 0.0
      %1503 = vmatpush1.msra.mxu0 0.0
      %1504 = vmatprep.subr.mxu0 0.0
      %1505 = vmatpush1.msra.mxu0 0.0
      %1506 = vmatprep.subr.mxu0 0.0
      %1507 = vmatpush1.msra.mxu0 0.0
      %1508 = vmatprep.subr.mxu0 0.0
      %1509 = vmatpush1.msra.mxu0 0.0
      %1510 = vmatprep.subr.mxu0 0.0
      %1511 = vmatpush1.msra.mxu0 0.0
      %1512 = vmatprep.subr.mxu0 0.0
      %1513 = vmatpush1.msra.mxu0 0.0
      %1514 = vmatprep.subr.mxu0 0.0
      %1515 = vmatpush1.msra.mxu0 0.0
      %1516 = vmatprep.subr.mxu0 0.0
      %1517 = vmatpush1.msra.mxu0 0.0
      %1518 = vmatprep.subr.mxu0 0.0
      %1519 = vmatpush1.msra.mxu0 0.0
      %1520 = vmatprep.subr.mxu0 0.0
      %1521 = vmatpush1.msra.mxu0 0.0
      %1522 = vmatprep.subr.mxu0 0.0
      %1523 = vmatpush1.msra.mxu0 0.0
      %1524 = vmatprep.subr.mxu0 0.0
      %1525 = vmatpush1.msra.mxu0 0.0
      %1526 = vmatprep.subr.mxu0 0.0
      %1527 = vmatpush1.msra.mxu0 0.0
      %1528 = vmatprep.mubr.f32.mxu0 0.0
      %1529 = vmatmul.mubr.f32.gmra.mrb[0].mxu0 %v1462
      %v1530 = vpop.f32.mrb[0].mxu0
      %v1531 = vadd.f32 0.0, %v1530
      %v1532 = vpop.f32.mrb[0].mxu0
      %v1533 = vadd.f32 0.0, %v1532
      %1534 = vdwg.mxu0
      %1535 = vmatprep.subr.mxu0 0.0
      %1536 = vmatpush1.msra.mxu0 %v1454
      %1537 = vmatprep.subr.mxu0 0.0
      %1538 = vmatpush1.msra.mxu0 0.0
      %1539 = vmatprep.subr.mxu0 0.0
      %1540 = vmatpush1.msra.mxu0 0.0
      %1541 = vmatprep.subr.mxu0 0.0
      %1542 = vmatpush1.msra.mxu0 0.0
      %1543 = vmatprep.subr.mxu0 0.0
      %1544 = vmatpush1.msra.mxu0 0.0
      %1545 = vmatprep.subr.mxu0 0.0
      %1546 = vmatpush1.msra.mxu0 0.0
      %1547 = vmatprep.subr.mxu0 0.0
      %1548 = vmatpush1.msra.mxu0 0.0
      %1549 = vmatprep.subr.mxu0 0.0
      %1550 = vmatpush1.msra.mxu0 0.0
      %1551 = vmatprep.subr.mxu0 0.0
      %1552 = vmatpush1.msra.mxu0 0.0
      %1553 = vmatprep.subr.mxu0 0.0
      %1554 = vmatpush1.msra.mxu0 0.0
      %1555 = vmatprep.subr.mxu0 0.0
      %1556 = vmatpush1.msra.mxu0 0.0
      %1557 = vmatprep.subr.mxu0 0.0
      %1558 = vmatpush1.msra.mxu0 0.0
      %1559 = vmatprep.subr.mxu0 0.0
      %1560 = vmatpush1.msra.mxu0 0.0
      %1561 = vmatprep.subr.mxu0 0.0
      %1562 = vmatpush1.msra.mxu0 0.0
      %1563 = vmatprep.subr.mxu0 0.0
      %1564 = vmatpush1.msra.mxu0 0.0
      %1565 = vmatprep.subr.mxu0 0.0
      %1566 = vmatpush1.msra.mxu0 0.0
      %1567 = vmatprep.subr.mxu0 0.0
      %1568 = vmatpush1.msra.mxu0 0.0
      %1569 = vmatprep.subr.mxu0 0.0
      %1570 = vmatpush1.msra.mxu0 0.0
      %1571 = vmatprep.subr.mxu0 0.0
      %1572 = vmatpush1.msra.mxu0 0.0
      %1573 = vmatprep.subr.mxu0 0.0
      %1574 = vmatpush1.msra.mxu0 0.0
      %1575 = vmatprep.subr.mxu0 0.0
      %1576 = vmatpush1.msra.mxu0 0.0
      %1577 = vmatprep.subr.mxu0 0.0
      %1578 = vmatpush1.msra.mxu0 0.0
      %1579 = vmatprep.subr.mxu0 0.0
      %1580 = vmatpush1.msra.mxu0 0.0
      %1581 = vmatprep.subr.mxu0 0.0
      %1582 = vmatpush1.msra.mxu0 0.0
      %1583 = vmatprep.subr.mxu0 0.0
      %1584 = vmatpush1.msra.mxu0 0.0
      %1585 = vmatprep.subr.mxu0 0.0
      %1586 = vmatpush1.msra.mxu0 0.0
      %1587 = vmatprep.subr.mxu0 0.0
      %1588 = vmatpush1.msra.mxu0 0.0
      %1589 = vmatprep.subr.mxu0 0.0
      %1590 = vmatpush1.msra.mxu0 0.0
      %1591 = vmatprep.subr.mxu0 0.0
      %1592 = vmatpush1.msra.mxu0 0.0
      %1593 = vmatprep.subr.mxu0 0.0
      %1594 = vmatpush1.msra.mxu0 0.0
      %1595 = vmatprep.subr.mxu0 0.0
      %1596 = vmatpush1.msra.mxu0 0.0
      %1597 = vmatprep.subr.mxu0 0.0
      %1598 = vmatpush1.msra.mxu0 0.0
      %1599 = vmatprep.mubr.f32.mxu0 0.0
      %1600 = vmatmul.mubr.f32.gmra.mrb[0].mxu0 %v1462
      %v1601 = vpop.f32.mrb[0].mxu0
      %v1602 = vadd.f32 0.0, %v1601
      %v1603 = vpop.f32.mrb[0].mxu0
      %1604 = vdwg.mxu0
      %v1605 = vadd.f32 %v1444, %v1531
      %v1606 = vadd.f32 %v1445, %v1533
      %v1607 = vadd.f32 %v1446, %v1602
      %v1608 = vld [vmem:[%s2] sm:$0xf]
      %1610 = vset.pattern.permute.xlu0 0
      %1611 = vperm.xlu0 %1610, %v1608
      %v1612 = vpop.permute.xlu0 %1611
      %v1614 = vadd.f32 %v1605, %v1612
      %v1615 = vadd.f32 %v1606, %v1612
      %v1616 = vadd.f32 %v1607, %v1612
      %v1617 = vmin.f32 %v1614, 0.0
      %v1618 = vmin.f32 %v1615, 0.0
      %v1619 = vmin.f32 %v1616, 0.0
      %v1620 = vmul.f32 %v1617, 1.442695
      %v1621 = vpow.pop %v1620
      %v1622 = vmul.f32 %v1618, 1.442695
      %v1623 = vpow.pop %v1622
      %v1624 = vmul.f32 %v1619, 1.442695
      %v1625 = vpow.pop %v1624
      %v1626 = vsub.f32 %v1621, 1.0
      %v1627 = vsub.f32 %v1623, 1.0
      %v1628 = vsub.f32 %v1625, 1.0
      %v1629 = vmul.f32 %v1626, 1.6732632
      %v1630 = vmul.f32 %v1627, 1.6732632
      %v1631 = vmul.f32 %v1628, 1.6732632
      %vm1632 = vcmp.gt.f32.partialorder %v1614, 0.0
      %vm1633 = vcmp.gt.f32.partialorder %v1615, 0.0
      %vm1634 = vcmp.gt.f32.partialorder %v1616, 0.0
      %v1635 = vsel %vm1632, %v1614, %v1629
      %v1636 = vsel %vm1633, %v1615, %v1630
      %v1637 = vsel %vm1634, %v1616, %v1631
      %v1638 = vmul.f32 %v1635, 1.050701
      %v1639 = vmul.f32 %v1636, 1.050701
      %v1640 = vmul.f32 %v1637, 1.050701
      %v1643 = vcombine.low %v1638, %v1639
      %1645 = vst [vmem:[%s170] sm:$0xff] %v1643
      %vm1646 = vcmask 551936
      %1647 = vst.msk [vmem:[%s170 + $0x8] sm:$0xf] %vm1646, %v1640
      %p1648 = scmp.lt.s32.totalorder %s14, 1
      %s1649 = scalar_select %p1648, %s14, 1
      %s1650 = smul.addr %s1649, 3
      %s1651 = smul.addr %s1650, 4
      %s1652 = scalar_lea.vmem %s3, %s1651
      // Predicated region
      $region33: #{sadenseblock_forward.5} parent=31 // pred_check
        %p1653 = pneg %p100
      $region34: #{sadenseblock_forward.5} parent=31 // pred_check_branch
        %1655 = sbr.rel (%p1653) target = $region36
      $region35: #{sadenseblock_forward.5} parent=31 // pred_region
        _
      $region36: #{sadenseblock_forward.5} parent=31 // pred_fallthru
        _
    $region32: #{sadenseblock_forward.5} parent=5 // pred_fallthru
      _
    %p1656 = scmp.le.s32.totalorder 2, %s9
    // Predicated region
    $region37: #{sadenseblock_forward.5} parent=5 // pred_check
      %p1657 = pneg %p1656
    $region38: #{sadenseblock_forward.5} parent=5 // pred_check_branch
      %1659 = sbr.rel (%p1657) target = $region40
    $region39: #{sadenseblock_forward.5} parent=5 // pred_region
      %s1660 = ssub.s32 %s9, 2
      // Predicated region
      $region41: #{sadenseblock_forward.5} parent=39 // pred_check
        %p1661 = pneg %p106
      $region42: #{sadenseblock_forward.5} parent=39 // pred_check_branch
        %1663 = sbr.rel (%p1661) target = $region44
      $region43: #{sadenseblock_forward.5} parent=39 // pred_region
        %p1664 = scmp.lt.s32.totalorder %s15, 1
        %s1665 = scalar_select %p1664, %s15, 1
        %s1666 = smul.addr %s1665, 3
        %s1667 = smul.addr %s1666, 4
        %s1668 = scalar_lea.vmem %s3, %s1667
      $region44: #{sadenseblock_forward.5} parent=39 // pred_fallthru
        _
    $region40: #{sadenseblock_forward.5} parent=5 // pred_fallthru
      _
  $region6: #{sadenseblock_forward.5} parent=0 // loop_footer
    %s13 = sadd.s32 1, %s9
  $region7: #{sadenseblock_forward.5} parent=0 // loop_footer_branch
    %8 = sbr.rel target = $region3
  $region8: #{sadenseblock_forward.5} parent=0 // loop_exit
    _

// kernel: sadenseblock_forward.7
$region0: #{sadenseblock_forward.7}
  #allocation0 [shape = 'u32[]', space=smem, size = 0x4, offset = 0x4, fixed_abs, tag = 'smem constant byte address 0x4 - core index']
  #allocation1 [shape = 'u32[144,128]{1,0:T(1,128)}', space=vmem, size = 0x12000, scoped, tag = 'internal scratch']
  %s0 = inlined_call_operand.vmem [shape: f32[2,16,256], index: 0, kind: input, shape index: {}]
  %s1 = inlined_call_operand.vmem [shape: f32[4,16], index: 1, kind: input, shape index: {}]
  %s2 = inlined_call_operand.vmem [shape: f32[4,1], index: 2, kind: input, shape index: {}]
  %s3 = inlined_call_operand.vmem [shape: f32[2,4,256], index: 3, kind: output, shape index: {}]
  %s4 = sld [smem:[#allocation0]]
  $region45: #{sadenseblock_forward.7} parent=0
    _
  %s6 = ssub.s32 1, %s4
  %s7 = scalar_select 0, %s6, %s4
  loop: start=0, step=1, limit=4
  $region2: #{sadenseblock_forward.7} parent=0 // loop_pre_header
    _
  $region3: #{sadenseblock_forward.7} parent=0 // loop_header
    %s9 = sphi 0, %s13
    %p10 = scmp.ge.s32.totalorder %s9, 4
    %s19 = sphi 0, %s21
    %s22 = sphi 0, %s19
    %s23 = sphi 0, %s22
    %s39 = sphi 0, %s23
    %s43 = sphi 0, %s43
    %s45 = sphi 0, %s43
    %s46 = sphi 0, %s45
    %s60 = sphi 0, %s46
    %s64 = sphi 0, %s64
    %s66 = sphi 0, %s64
    %s67 = sphi 0, %s66
    %s81 = sphi 0, %s67
    %s87 = sphi 0, %s89
    %s90 = sphi 0, %s87
    %s91 = sphi 0, %s90
    %s107 = sphi 0, %s91
  $region4: #{sadenseblock_forward.7} parent=0 // loop_header_branch
    %12 = sbr.rel (%p10) target = $region8
  $region5: #{sadenseblock_forward.7} parent=0 // loop_body
    %s14 = ssub.s32 %s9, 1
    %s15 = ssub.s32 %s9, 2
    %s16 = sadd.s32 %s9, 1
    %s17 = ssub.s32 %s9, %s16
    %p18 = scmp.eq.s32.totalorder %s17, 0
    %s20 = sadd.s32 %s19, 1
    %s21 = scalar_select %p18, %s19, %s20
    %p24 = pneg %p18
    %p25 = scmp.eq.s32.totalorder %s9, 1
    %p26 = por %p24, %p25
    %p27 = scmp.ne.s32.totalorder %s19, %s22
    %p28 = scmp.eq.s32.totalorder %s9, 0
    %p29 = por %p27, %p28
    %p30 = scmp.ne.s32.totalorder %s19, %s22
    %p31 = scmp.eq.s32.totalorder %s14, 1
    %p32 = por %p30, %p31
    %p33 = scmp.ne.s32.totalorder %s22, %s23
    %p34 = scmp.eq.s32.totalorder %s14, 0
    %p35 = por %p33, %p34
    %p36 = scmp.ne.s32.totalorder %s22, %s23
    %p37 = scmp.eq.s32.totalorder %s15, 1
    %p38 = por %p36, %p37
    %p40 = scmp.ne.s32.totalorder %s23, %s39
    %p41 = scmp.eq.s32.totalorder %s15, 0
    %p42 = por %p40, %p41
    %s44 = sadd.s32 %s43, 1
    %p47 = scmp.eq.s32.totalorder %s9, 1
    %p48 = scmp.ne.s32.totalorder %s43, %s45
    %p49 = scmp.eq.s32.totalorder %s9, 0
    %p50 = por %p48, %p49
    %p51 = scmp.ne.s32.totalorder %s43, %s45
    %p52 = scmp.eq.s32.totalorder %s14, 1
    %p53 = por %p51, %p52
    %p54 = scmp.ne.s32.totalorder %s45, %s46
    %p55 = scmp.eq.s32.totalorder %s14, 0
    %p56 = por %p54, %p55
    %p57 = scmp.ne.s32.totalorder %s45, %s46
    %p58 = scmp.eq.s32.totalorder %s15, 1
    %p59 = por %p57, %p58
    %p61 = scmp.ne.s32.totalorder %s46, %s60
    %p62 = scmp.eq.s32.totalorder %s15, 0
    %p63 = por %p61, %p62
    %s65 = sadd.s32 %s64, 1
    %p68 = scmp.eq.s32.totalorder %s9, 1
    %p69 = scmp.ne.s32.totalorder %s64, %s66
    %p70 = scmp.eq.s32.totalorder %s9, 0
    %p71 = por %p69, %p70
    %p72 = scmp.ne.s32.totalorder %s64, %s66
    %p73 = scmp.eq.s32.totalorder %s14, 1
    %p74 = por %p72, %p73
    %p75 = scmp.ne.s32.totalorder %s66, %s67
    %p76 = scmp.eq.s32.totalorder %s14, 0
    %p77 = por %p75, %p76
    %p78 = scmp.ne.s32.totalorder %s66, %s67
    %p79 = scmp.eq.s32.totalorder %s15, 1
    %p80 = por %p78, %p79
    %p82 = scmp.ne.s32.totalorder %s67, %s81
    %p83 = scmp.eq.s32.totalorder %s15, 0
    %p84 = por %p82, %p83
    %s85 = ssub.s32 %s9, %s16
    %p86 = scmp.eq.s32.totalorder %s85, 0
    %s88 = sadd.s32 %s87, 1
    %s89 = scalar_select %p86, %s87, %s88
    %p92 = pneg %p86
    %p93 = scmp.eq.s32.totalorder %s9, 1
    %p94 = por %p92, %p93
    %p95 = scmp.ne.s32.totalorder %s87, %s90
    %p96 = scmp.eq.s32.totalorder %s9, 0
    %p97 = por %p95, %p96
    %p98 = scmp.ne.s32.totalorder %s87, %s90
    %p99 = scmp.eq.s32.totalorder %s14, 1
    %p100 = por %p98, %p99
    %p101 = scmp.ne.s32.totalorder %s90, %s91
    %p102 = scmp.eq.s32.totalorder %s14, 0
    %p103 = por %p101, %p102
    %p104 = scmp.ne.s32.totalorder %s90, %s91
    %p105 = scmp.eq.s32.totalorder %s15, 1
    %p106 = por %p104, %p105
    %p108 = scmp.ne.s32.totalorder %s91, %s107
    %p109 = scmp.eq.s32.totalorder %s15, 0
    %p110 = por %p108, %p109
    %p111 = scmp.le.s32.totalorder 1, %s9
    %p112 = scmp.lt.s32.totalorder %s9, 3
    %p113 = pnand %p111, %p112
    %p114 = pneg %p113
    // Predicated region
    $region9: #{sadenseblock_forward.7} parent=5 // pred_check
      _
    $region10: #{sadenseblock_forward.7} parent=5 // pred_check_branch
      %116 = sbr.rel (%p113) target = $region12
    $region11: #{sadenseblock_forward.7} parent=5 // pred_region
      %s117 = ssub.s32 %s9, 1
      // Predicated region
      $region13: #{sadenseblock_forward.7} parent=11 // pred_check
        %p118 = pneg %p56
      $region14: #{sadenseblock_forward.7} parent=11 // pred_check_branch
        %120 = sbr.rel (%p118) target = $region16
      $region15: #{sadenseblock_forward.7} parent=11 // pred_region
        _
      $region16: #{sadenseblock_forward.7} parent=11 // pred_fallthru
        _
      // Predicated region
      $region17: #{sadenseblock_forward.7} parent=11 // pred_check
        %p121 = pneg %p77
      $region18: #{sadenseblock_forward.7} parent=11 // pred_check_branch
        %123 = sbr.rel (%p121) target = $region20
      $region19: #{sadenseblock_forward.7} parent=11 // pred_region
        _
      $region20: #{sadenseblock_forward.7} parent=11 // pred_fallthru
        _
    $region12: #{sadenseblock_forward.7} parent=5 // pred_fallthru
      _
    %p124 = scmp.lt.s32.totalorder %s9, 2
    // Predicated region
    $region21: #{sadenseblock_forward.7} parent=5 // pred_check
      %p125 = pneg %p124
    $region22: #{sadenseblock_forward.7} parent=5 // pred_check_branch
      %127 = sbr.rel (%p125) target = $region24
    $region23: #{sadenseblock_forward.7} parent=5 // pred_region
      // Predicated region
      $region25: #{sadenseblock_forward.7} parent=23 // pred_check
        %p128 = pneg %p29
      $region26: #{sadenseblock_forward.7} parent=23 // pred_check_branch
        %130 = sbr.rel (%p128) target = $region28
      $region27: #{sadenseblock_forward.7} parent=23 // pred_region
        %p131 = scmp.lt.s32.totalorder %s9, 1
        %s132 = scalar_select %p131, %s9, 1
        %s133 = smul.addr %s132, 4
        %s134 = smul.addr %s133, 8
        %s135 = scalar_lea.vmem %s0, %s134
      $region28: #{sadenseblock_forward.7} parent=23 // pred_fallthru
        _
    $region24: #{sadenseblock_forward.7} parent=5 // pred_fallthru
      _
    %p136 = scmp.le.s32.totalorder 1, %s9
    %p137 = scmp.lt.s32.totalorder %s9, 3
    %p138 = pnand %p136, %p137
    %p139 = pneg %p138
    // Predicated region
    $region29: #{sadenseblock_forward.7} parent=5 // pred_check
      _
    $region30: #{sadenseblock_forward.7} parent=5 // pred_check_branch
      %141 = sbr.rel (%p138) target = $region32
    $region31: #{sadenseblock_forward.7} parent=5 // pred_region
      %s142 = ssub.s32 %s9, 1
      %p143 = scmp.lt.s32.totalorder %s14, 1
      %s144 = scalar_select %p143, %s14, 1
      %s145 = smul.addr %s144, 4
      %s146 = smul.addr %s145, 8
      %s147 = scalar_lea.vmem %s0, %s146
      %p148 = pneg %p35
      %p149 = pneg %p32
      %p150 = pneg %p56
      %p151 = pneg %p53
      %p152 = pneg %p77
      %p153 = pneg %p74
      %p154 = pneg %p103
      %p155 = pneg %p100
      %p156 = scmp.lt.s32.totalorder %s14, 1
      %s157 = scalar_select %p156, %s14, 1
      %s158 = smul.addr %s157, 2
      %s159 = smul.addr %s158, 4
      %s160 = scalar_lea.vmem %s3, %s159
      %p161 = scmp.lt.s32.totalorder %s14, 1
      %s162 = scalar_select %p161, %s14, 1
      %s163 = smul.addr %s162, 4
      %s164 = smul.addr %s163, 8
      %s165 = scalar_lea.vmem %s0, %s164
      %p166 = scmp.lt.s32.totalorder %s14, 1
      %s167 = scalar_select %p166, %s14, 1
      %s168 = smul.addr %s167, 2
      %s169 = smul.addr %s168, 4
      %s170 = scalar_lea.vmem %s3, %s169
      %v171 = vld [vmem:[%s1] sm:$0xf]
      %v172 = vld [vmem:[%s165] sm:$0xff]
      %v173 = vld [vmem:[%s165 + $0x8] sm:$0xff]
      %v174 = vld [vmem:[%s165 + $0x10] sm:$0xff]
      %v175 = vld [vmem:[%s165 + $0x18] sm:$0xff]
      %v176 = vld [vmem:[%s2] sm:$0xf]
      %178 = vset.pattern.permute.xlu0 0
      %179 = vperm.xlu0 %178, %v176
      %v180 = vpop.permute.xlu0 %179
      %vm182 = vcmask 130048
      %v184 = vsel %vm182, %v171, 0
      %186 = vmatprep.subr.mxu0 %v173
      %187 = vmatpush1.msra.mxu0 %v172
      %188 = vmatprep.subr.mxu0 %v175
      %189 = vmatpush1.msra.mxu0 %v174
      %190 = vmatprep.subr.mxu0 0.0
      %191 = vmatpush1.msra.mxu0 0.0
      %192 = vmatprep.subr.mxu0 0.0
      %193 = vmatpush1.msra.mxu0 0.0
      %194 = vmatprep.subr.mxu0 0.0
      %195 = vmatpush1.msra.mxu0 0.0
      %196 = vmatprep.subr.mxu0 0.0
      %197 = vmatpush1.msra.mxu0 0.0
      %198 = vmatprep.subr.mxu0 0.0
      %199 = vmatpush1.msra.mxu0 0.0
      %200 = vmatprep.subr.mxu0 0.0
      %201 = vmatpush1.msra.mxu0 0.0
      %202 = vmatprep.subr.mxu0 0.0
      %203 = vmatpush1.msra.mxu0 0.0
      %204 = vmatprep.subr.mxu0 0.0
      %205 = vmatpush1.msra.mxu0 0.0
      %206 = vmatprep.subr.mxu0 0.0
      %207 = vmatpush1.msra.mxu0 0.0
      %208 = vmatprep.subr.mxu0 0.0
      %209 = vmatpush1.msra.mxu0 0.0
      %210 = vmatprep.subr.mxu0 0.0
      %211 = vmatpush1.msra.mxu0 0.0
      %212 = vmatprep.subr.mxu0 0.0
      %213 = vmatpush1.msra.mxu0 0.0
      %214 = vmatprep.subr.mxu0 0.0
      %215 = vmatpush1.msra.mxu0 0.0
      %216 = vmatprep.subr.mxu0 0.0
      %217 = vmatpush1.msra.mxu0 0.0
      %218 = vmatprep.subr.mxu0 0.0
      %219 = vmatpush1.msra.mxu0 0.0
      %220 = vmatprep.subr.mxu0 0.0
      %221 = vmatpush1.msra.mxu0 0.0
      %222 = vmatprep.subr.mxu0 0.0
      %223 = vmatpush1.msra.mxu0 0.0
      %224 = vmatprep.subr.mxu0 0.0
      %225 = vmatpush1.msra.mxu0 0.0
      %226 = vmatprep.subr.mxu0 0.0
      %227 = vmatpush1.msra.mxu0 0.0
      %228 = vmatprep.subr.mxu0 0.0
      %229 = vmatpush1.msra.mxu0 0.0
      %230 = vmatprep.subr.mxu0 0.0
      %231 = vmatpush1.msra.mxu0 0.0
      %232 = vmatprep.subr.mxu0 0.0
      %233 = vmatpush1.msra.mxu0 0.0
      %234 = vmatprep.subr.mxu0 0.0
      %235 = vmatpush1.msra.mxu0 0.0
      %236 = vmatprep.subr.mxu0 0.0
      %237 = vmatpush1.msra.mxu0 0.0
      %238 = vmatprep.subr.mxu0 0.0
      %239 = vmatpush1.msra.mxu0 0.0
      %240 = vmatprep.subr.mxu0 0.0
      %241 = vmatpush1.msra.mxu0 0.0
      %242 = vmatprep.subr.mxu0 0.0
      %243 = vmatpush1.msra.mxu0 0.0
      %244 = vmatprep.subr.mxu0 0.0
      %245 = vmatpush1.msra.mxu0 0.0
      %246 = vmatprep.subr.mxu0 0.0
      %247 = vmatpush1.msra.mxu0 0.0
      %248 = vmatprep.subr.mxu0 0.0
      %249 = vmatpush1.msra.mxu0 0.0
      %250 = vmatprep.mubr.f32.mxu0 0.0
      %251 = vmatmul.mubr.f32.gmra.mrb[0].mxu0 %v184
      %v252 = vpop.f32.mrb[0].mxu0
      %v253 = vadd.f32 %v180, %v252
      %v254 = vpop.f32.mrb[0].mxu0
      %v255 = vadd.f32 %v180, %v254
      %256 = vdwg.mxu0
      %v257 = vmin.f32 %v253, 0.0
      %v258 = vmin.f32 %v255, 0.0
      %v259 = vmul.f32 %v257, 1.442695
      %v260 = vpow.pop %v259
      %v261 = vmul.f32 %v258, 1.442695
      %v262 = vpow.pop %v261
      %v263 = vsub.f32 %v260, 1.0
      %v264 = vsub.f32 %v262, 1.0
      %v265 = vmul.f32 %v263, 1.6732632
      %v266 = vmul.f32 %v264, 1.6732632
      %vm267 = vcmp.gt.f32.partialorder %v253, 0.0
      %vm268 = vcmp.gt.f32.partialorder %v255, 0.0
      %v269 = vsel %vm267, %v253, %v265
      %v270 = vsel %vm268, %v255, %v266
      %v271 = vmul.f32 %v269, 1.050701
      %v272 = vmul.f32 %v270, 1.050701
      %v275 = vcombine.low %v271, %v272
      %277 = vst [vmem:[%s170] sm:$0xff] %v275
      %p278 = scmp.lt.s32.totalorder %s14, 1
      %s279 = scalar_select %p278, %s14, 1
      %s280 = smul.addr %s279, 2
      %s281 = smul.addr %s280, 4
      %s282 = scalar_lea.vmem %s3, %s281
      // Predicated region
      $region33: #{sadenseblock_forward.7} parent=31 // pred_check
        %p283 = pneg %p100
      $region34: #{sadenseblock_forward.7} parent=31 // pred_check_branch
        %285 = sbr.rel (%p283) target = $region36
      $region35: #{sadenseblock_forward.7} parent=31 // pred_region
        _
      $region36: #{sadenseblock_forward.7} parent=31 // pred_fallthru
        _
    $region32: #{sadenseblock_forward.7} parent=5 // pred_fallthru
      _
    %p286 = scmp.le.s32.totalorder 2, %s9
    // Predicated region
    $region37: #{sadenseblock_forward.7} parent=5 // pred_check
      %p287 = pneg %p286
    $region38: #{sadenseblock_forward.7} parent=5 // pred_check_branch
      %289 = sbr.rel (%p287) target = $region40
    $region39: #{sadenseblock_forward.7} parent=5 // pred_region
      %s290 = ssub.s32 %s9, 2
      // Predicated region
      $region41: #{sadenseblock_forward.7} parent=39 // pred_check
        %p291 = pneg %p106
      $region42: #{sadenseblock_forward.7} parent=39 // pred_check_branch
        %293 = sbr.rel (%p291) target = $region44
      $region43: #{sadenseblock_forward.7} parent=39 // pred_region
        %p294 = scmp.lt.s32.totalorder %s15, 1
        %s295 = scalar_select %p294, %s15, 1
        %s296 = smul.addr %s295, 2
        %s297 = smul.addr %s296, 4
        %s298 = scalar_lea.vmem %s3, %s297
      $region44: #{sadenseblock_forward.7} parent=39 // pred_fallthru
        _
    $region40: #{sadenseblock_forward.7} parent=5 // pred_fallthru
      _
  $region6: #{sadenseblock_forward.7} parent=0 // loop_footer
    %s13 = sadd.s32 1, %s9
  $region7: #{sadenseblock_forward.7} parent=0 // loop_footer_branch
    %8 = sbr.rel target = $region3
  $region8: #{sadenseblock_forward.7} parent=0 // loop_exit
    _

// kernel: sadenseblock_forward.6
$region0: #{sadenseblock_forward.6}
  #allocation0 [shape = 'u32[]', space=smem, size = 0x4, offset = 0x4, fixed_abs, tag = 'smem constant byte address 0x4 - core index']
  #allocation1 [shape = 'u32[144,128]{1,0:T(1,128)}', space=vmem, size = 0x12000, scoped, tag = 'internal scratch']
  %s0 = inlined_call_operand.vmem [shape: f32[2,12,362], index: 0, kind: input, shape index: {}]
  %s1 = inlined_call_operand.vmem [shape: f32[9,4,12], index: 1, kind: input, shape index: {}]
  %s2 = inlined_call_operand.vmem [shape: f32[4,1], index: 2, kind: input, shape index: {}]
  %s3 = inlined_call_operand.vmem [shape: f32[2,4,324], index: 3, kind: output, shape index: {}]
  %s4 = sld [smem:[#allocation0]]
  $region45: #{sadenseblock_forward.6} parent=0
    _
  %s6 = ssub.s32 1, %s4
  %s7 = scalar_select 0, %s6, %s4
  loop: start=0, step=1, limit=4
  $region2: #{sadenseblock_forward.6} parent=0 // loop_pre_header
    _
  $region3: #{sadenseblock_forward.6} parent=0 // loop_header
    %s9 = sphi 0, %s13
    %p10 = scmp.ge.s32.totalorder %s9, 4
    %s19 = sphi 0, %s21
    %s22 = sphi 0, %s19
    %s23 = sphi 0, %s22
    %s39 = sphi 0, %s23
    %s43 = sphi 0, %s43
    %s45 = sphi 0, %s43
    %s46 = sphi 0, %s45
    %s60 = sphi 0, %s46
    %s64 = sphi 0, %s64
    %s66 = sphi 0, %s64
    %s67 = sphi 0, %s66
    %s81 = sphi 0, %s67
    %s87 = sphi 0, %s89
    %s90 = sphi 0, %s87
    %s91 = sphi 0, %s90
    %s107 = sphi 0, %s91
  $region4: #{sadenseblock_forward.6} parent=0 // loop_header_branch
    %12 = sbr.rel (%p10) target = $region8
  $region5: #{sadenseblock_forward.6} parent=0 // loop_body
    %s14 = ssub.s32 %s9, 1
    %s15 = ssub.s32 %s9, 2
    %s16 = sadd.s32 %s9, 1
    %s17 = ssub.s32 %s9, %s16
    %p18 = scmp.eq.s32.totalorder %s17, 0
    %s20 = sadd.s32 %s19, 1
    %s21 = scalar_select %p18, %s19, %s20
    %p24 = pneg %p18
    %p25 = scmp.eq.s32.totalorder %s9, 1
    %p26 = por %p24, %p25
    %p27 = scmp.ne.s32.totalorder %s19, %s22
    %p28 = scmp.eq.s32.totalorder %s9, 0
    %p29 = por %p27, %p28
    %p30 = scmp.ne.s32.totalorder %s19, %s22
    %p31 = scmp.eq.s32.totalorder %s14, 1
    %p32 = por %p30, %p31
    %p33 = scmp.ne.s32.totalorder %s22, %s23
    %p34 = scmp.eq.s32.totalorder %s14, 0
    %p35 = por %p33, %p34
    %p36 = scmp.ne.s32.totalorder %s22, %s23
    %p37 = scmp.eq.s32.totalorder %s15, 1
    %p38 = por %p36, %p37
    %p40 = scmp.ne.s32.totalorder %s23, %s39
    %p41 = scmp.eq.s32.totalorder %s15, 0
    %p42 = por %p40, %p41
    %s44 = sadd.s32 %s43, 1
    %p47 = scmp.eq.s32.totalorder %s9, 1
    %p48 = scmp.ne.s32.totalorder %s43, %s45
    %p49 = scmp.eq.s32.totalorder %s9, 0
    %p50 = por %p48, %p49
    %p51 = scmp.ne.s32.totalorder %s43, %s45
    %p52 = scmp.eq.s32.totalorder %s14, 1
    %p53 = por %p51, %p52
    %p54 = scmp.ne.s32.totalorder %s45, %s46
    %p55 = scmp.eq.s32.totalorder %s14, 0
    %p56 = por %p54, %p55
    %p57 = scmp.ne.s32.totalorder %s45, %s46
    %p58 = scmp.eq.s32.totalorder %s15, 1
    %p59 = por %p57, %p58
    %p61 = scmp.ne.s32.totalorder %s46, %s60
    %p62 = scmp.eq.s32.totalorder %s15, 0
    %p63 = por %p61, %p62
    %s65 = sadd.s32 %s64, 1
    %p68 = scmp.eq.s32.totalorder %s9, 1
    %p69 = scmp.ne.s32.totalorder %s64, %s66
    %p70 = scmp.eq.s32.totalorder %s9, 0
    %p71 = por %p69, %p70
    %p72 = scmp.ne.s32.totalorder %s64, %s66
    %p73 = scmp.eq.s32.totalorder %s14, 1
    %p74 = por %p72, %p73
    %p75 = scmp.ne.s32.totalorder %s66, %s67
    %p76 = scmp.eq.s32.totalorder %s14, 0
    %p77 = por %p75, %p76
    %p78 = scmp.ne.s32.totalorder %s66, %s67
    %p79 = scmp.eq.s32.totalorder %s15, 1
    %p80 = por %p78, %p79
    %p82 = scmp.ne.s32.totalorder %s67, %s81
    %p83 = scmp.eq.s32.totalorder %s15, 0
    %p84 = por %p82, %p83
    %s85 = ssub.s32 %s9, %s16
    %p86 = scmp.eq.s32.totalorder %s85, 0
    %s88 = sadd.s32 %s87, 1
    %s89 = scalar_select %p86, %s87, %s88
    %p92 = pneg %p86
    %p93 = scmp.eq.s32.totalorder %s9, 1
    %p94 = por %p92, %p93
    %p95 = scmp.ne.s32.totalorder %s87, %s90
    %p96 = scmp.eq.s32.totalorder %s9, 0
    %p97 = por %p95, %p96
    %p98 = scmp.ne.s32.totalorder %s87, %s90
    %p99 = scmp.eq.s32.totalorder %s14, 1
    %p100 = por %p98, %p99
    %p101 = scmp.ne.s32.totalorder %s90, %s91
    %p102 = scmp.eq.s32.totalorder %s14, 0
    %p103 = por %p101, %p102
    %p104 = scmp.ne.s32.totalorder %s90, %s91
    %p105 = scmp.eq.s32.totalorder %s15, 1
    %p106 = por %p104, %p105
    %p108 = scmp.ne.s32.totalorder %s91, %s107
    %p109 = scmp.eq.s32.totalorder %s15, 0
    %p110 = por %p108, %p109
    %p111 = scmp.le.s32.totalorder 1, %s9
    %p112 = scmp.lt.s32.totalorder %s9, 3
    %p113 = pnand %p111, %p112
    %p114 = pneg %p113
    // Predicated region
    $region9: #{sadenseblock_forward.6} parent=5 // pred_check
      _
    $region10: #{sadenseblock_forward.6} parent=5 // pred_check_branch
      %116 = sbr.rel (%p113) target = $region12
    $region11: #{sadenseblock_forward.6} parent=5 // pred_region
      %s117 = ssub.s32 %s9, 1
      // Predicated region
      $region13: #{sadenseblock_forward.6} parent=11 // pred_check
        %p118 = pneg %p56
      $region14: #{sadenseblock_forward.6} parent=11 // pred_check_branch
        %120 = sbr.rel (%p118) target = $region16
      $region15: #{sadenseblock_forward.6} parent=11 // pred_region
        _
      $region16: #{sadenseblock_forward.6} parent=11 // pred_fallthru
        _
      // Predicated region
      $region17: #{sadenseblock_forward.6} parent=11 // pred_check
        %p121 = pneg %p77
      $region18: #{sadenseblock_forward.6} parent=11 // pred_check_branch
        %123 = sbr.rel (%p121) target = $region20
      $region19: #{sadenseblock_forward.6} parent=11 // pred_region
        _
      $region20: #{sadenseblock_forward.6} parent=11 // pred_fallthru
        _
    $region12: #{sadenseblock_forward.6} parent=5 // pred_fallthru
      _
    %p124 = scmp.lt.s32.totalorder %s9, 2
    // Predicated region
    $region21: #{sadenseblock_forward.6} parent=5 // pred_check
      %p125 = pneg %p124
    $region22: #{sadenseblock_forward.6} parent=5 // pred_check_branch
      %127 = sbr.rel (%p125) target = $region24
    $region23: #{sadenseblock_forward.6} parent=5 // pred_region
      // Predicated region
      $region25: #{sadenseblock_forward.6} parent=23 // pred_check
        %p128 = pneg %p29
      $region26: #{sadenseblock_forward.6} parent=23 // pred_check_branch
        %130 = sbr.rel (%p128) target = $region28
      $region27: #{sadenseblock_forward.6} parent=23 // pred_region
        %p131 = scmp.lt.s32.totalorder %s9, 1
        %s132 = scalar_select %p131, %s9, 1
        %s133 = smul.addr %s132, 6
        %s134 = smul.addr %s133, 8
        %s135 = scalar_lea.vmem %s0, %s134
      $region28: #{sadenseblock_forward.6} parent=23 // pred_fallthru
        _
    $region24: #{sadenseblock_forward.6} parent=5 // pred_fallthru
      _
    %p136 = scmp.le.s32.totalorder 1, %s9
    %p137 = scmp.lt.s32.totalorder %s9, 3
    %p138 = pnand %p136, %p137
    %p139 = pneg %p138
    // Predicated region
    $region29: #{sadenseblock_forward.6} parent=5 // pred_check
      _
    $region30: #{sadenseblock_forward.6} parent=5 // pred_check_branch
      %141 = sbr.rel (%p138) target = $region32
    $region31: #{sadenseblock_forward.6} parent=5 // pred_region
      %s142 = ssub.s32 %s9, 1
      %p143 = scmp.lt.s32.totalorder %s14, 1
      %s144 = scalar_select %p143, %s14, 1
      %s145 = smul.addr %s144, 6
      %s146 = smul.addr %s145, 8
      %s147 = scalar_lea.vmem %s0, %s146
      %p148 = pneg %p35
      %p149 = pneg %p32
      %p150 = pneg %p56
      %p151 = pneg %p53
      %p152 = pneg %p77
      %p153 = pneg %p74
      %p154 = pneg %p103
      %p155 = pneg %p100
      %p156 = scmp.lt.s32.totalorder %s14, 1
      %s157 = scalar_select %p156, %s14, 1
      %s158 = smul.addr %s157, 3
      %s159 = smul.addr %s158, 4
      %s160 = scalar_lea.vmem %s3, %s159
      %p161 = scmp.lt.s32.totalorder %s14, 1
      %s162 = scalar_select %p161, %s14, 1
      %s163 = smul.addr %s162, 6
      %s164 = smul.addr %s163, 8
      %s165 = scalar_lea.vmem %s0, %s164
      %p166 = scmp.lt.s32.totalorder %s14, 1
      %s167 = scalar_select %p166, %s14, 1
      %s168 = smul.addr %s167, 3
      %s169 = smul.addr %s168, 4
      %s170 = scalar_lea.vmem %s3, %s169
      %v171 = vld [vmem:[%s165] sm:$0xff]
      %v172 = vld [vmem:[%s165 + $0x8] sm:$0xff]
      %v173 = vld [vmem:[%s165 + $0x10] sm:$0xff]
      %v174 = vld [vmem:[%s165 + $0x18] sm:$0xf]
      %v175 = vld [vmem:[%s165 + $0x20] sm:$0xf]
      %v176 = vld [vmem:[%s165 + $0x28] sm:$0xf]
      %v177 = vld [vmem:[%s1] sm:$0xf]
      %s178 = scalar_lea.vmem %s1, 4
      %v179 = vld [vmem:[%s178] sm:$0xf]
      %186 = vrot.lane.b32.xlu0 %v171, 127
      %v187 = vpop.permute.xlu0 %186
      %188 = vrot.lane.b32.xlu0 %v172, 127
      %v189 = vpop.permute.xlu0 %188
      %190 = vrot.lane.b32.xlu0 %v173, 127
      %v191 = vpop.permute.xlu0 %190
      %192 = vrot.lane.b32.xlu0 %v174, 127
      %v193 = vpop.permute.xlu0 %192
      %194 = vrot.lane.b32.xlu0 %v175, 127
      %v195 = vpop.permute.xlu0 %194
      %196 = vrot.lane.b32.xlu0 %v176, 127
      %v197 = vpop.permute.xlu0 %196
      %vm198 = vcmask 1039360
      %v199 = vsel %vm198, %v187, %v189
      %v200 = vsel %vm198, %v189, %v191
      %v201 = vsel %vm198, %v193, %v195
      %v202 = vsel %vm198, %v195, %v197
      %vm206 = vcmask 97280
      %v208 = vsel %vm206, %v179, 0
      %vm210 = vcmask 1043456
      %v211 = vsel %vm210, %v201, 0
      %v213 = vsel %vm210, %v202, 0
      %v215 = vsel %vm210, %v197, 0
      %217 = vmatprep.subr.mxu0 %v200
      %218 = vmatpush1.msra.mxu0 %v199
      %219 = vmatprep.subr.mxu0 %v213
      %220 = vmatpush1.msra.mxu0 %v211
      %221 = vmatprep.subr.mxu0 0.0
      %222 = vmatpush1.msra.mxu0 0.0
      %223 = vmatprep.subr.mxu0 0.0
      %224 = vmatpush1.msra.mxu0 0.0
      %225 = vmatprep.subr.mxu0 0.0
      %226 = vmatpush1.msra.mxu0 0.0
      %227 = vmatprep.subr.mxu0 0.0
      %228 = vmatpush1.msra.mxu0 0.0
      %229 = vmatprep.subr.mxu0 0.0
      %230 = vmatpush1.msra.mxu0 0.0
      %231 = vmatprep.subr.mxu0 0.0
      %232 = vmatpush1.msra.mxu0 0.0
      %233 = vmatprep.subr.mxu0 0.0
      %234 = vmatpush1.msra.mxu0 0.0
      %235 = vmatprep.subr.mxu0 0.0
      %236 = vmatpush1.msra.mxu0 0.0
      %237 = vmatprep.subr.mxu0 0.0
      %238 = vmatpush1.msra.mxu0 0.0
      %239 = vmatprep.subr.mxu0 0.0
      %240 = vmatpush1.msra.mxu0 0.0
      %241 = vmatprep.subr.mxu0 0.0
      %242 = vmatpush1.msra.mxu0 0.0
      %243 = vmatprep.subr.mxu0 0.0
      %244 = vmatpush1.msra.mxu0 0.0
      %245 = vmatprep.subr.mxu0 0.0
      %246 = vmatpush1.msra.mxu0 0.0
      %247 = vmatprep.subr.mxu0 0.0
      %248 = vmatpush1.msra.mxu0 0.0
      %249 = vmatprep.subr.mxu0 0.0
      %250 = vmatpush1.msra.mxu0 0.0
      %251 = vmatprep.subr.mxu0 0.0
      %252 = vmatpush1.msra.mxu0 0.0
      %253 = vmatprep.subr.mxu0 0.0
      %254 = vmatpush1.msra.mxu0 0.0
      %255 = vmatprep.subr.mxu0 0.0
      %256 = vmatpush1.msra.mxu0 0.0
      %257 = vmatprep.subr.mxu0 0.0
      %258 = vmatpush1.msra.mxu0 0.0
      %259 = vmatprep.subr.mxu0 0.0
      %260 = vmatpush1.msra.mxu0 0.0
      %261 = vmatprep.subr.mxu0 0.0
      %262 = vmatpush1.msra.mxu0 0.0
      %263 = vmatprep.subr.mxu0 0.0
      %264 = vmatpush1.msra.mxu0 0.0
      %265 = vmatprep.subr.mxu0 0.0
      %266 = vmatpush1.msra.mxu0 0.0
      %267 = vmatprep.subr.mxu0 0.0
      %268 = vmatpush1.msra.mxu0 0.0
      %269 = vmatprep.subr.mxu0 0.0
      %270 = vmatpush1.msra.mxu0 0.0
      %271 = vmatprep.subr.mxu0 0.0
      %272 = vmatpush1.msra.mxu0 0.0
      %273 = vmatprep.subr.mxu0 0.0
      %274 = vmatpush1.msra.mxu0 0.0
      %275 = vmatprep.subr.mxu0 0.0
      %276 = vmatpush1.msra.mxu0 0.0
      %277 = vmatprep.subr.mxu0 0.0
      %278 = vmatpush1.msra.mxu0 0.0
      %279 = vmatprep.subr.mxu0 0.0
      %280 = vmatpush1.msra.mxu0 0.0
      %281 = vmatprep.mubr.f32.mxu0 0.0
      %282 = vmatmul.mubr.f32.gmra.mrb[0].mxu0 %v208
      %v283 = vpop.f32.mrb[0].mxu0
      %v284 = vadd.f32 0.0, %v283
      %v285 = vpop.f32.mrb[0].mxu0
      %v286 = vadd.f32 0.0, %v285
      %287 = vdwg.mxu0
      %288 = vmatprep.subr.mxu0 0.0
      %289 = vmatpush1.msra.mxu0 %v191
      %290 = vmatprep.subr.mxu0 0.0
      %291 = vmatpush1.msra.mxu0 %v215
      %292 = vmatprep.subr.mxu0 0.0
      %293 = vmatpush1.msra.mxu0 0.0
      %294 = vmatprep.subr.mxu0 0.0
      %295 = vmatpush1.msra.mxu0 0.0
      %296 = vmatprep.subr.mxu0 0.0
      %297 = vmatpush1.msra.mxu0 0.0
      %298 = vmatprep.subr.mxu0 0.0
      %299 = vmatpush1.msra.mxu0 0.0
      %300 = vmatprep.subr.mxu0 0.0
      %301 = vmatpush1.msra.mxu0 0.0
      %302 = vmatprep.subr.mxu0 0.0
      %303 = vmatpush1.msra.mxu0 0.0
      %304 = vmatprep.subr.mxu0 0.0
      %305 = vmatpush1.msra.mxu0 0.0
      %306 = vmatprep.subr.mxu0 0.0
      %307 = vmatpush1.msra.mxu0 0.0
      %308 = vmatprep.subr.mxu0 0.0
      %309 = vmatpush1.msra.mxu0 0.0
      %310 = vmatprep.subr.mxu0 0.0
      %311 = vmatpush1.msra.mxu0 0.0
      %312 = vmatprep.subr.mxu0 0.0
      %313 = vmatpush1.msra.mxu0 0.0
      %314 = vmatprep.subr.mxu0 0.0
      %315 = vmatpush1.msra.mxu0 0.0
      %316 = vmatprep.subr.mxu0 0.0
      %317 = vmatpush1.msra.mxu0 0.0
      %318 = vmatprep.subr.mxu0 0.0
      %319 = vmatpush1.msra.mxu0 0.0
      %320 = vmatprep.subr.mxu0 0.0
      %321 = vmatpush1.msra.mxu0 0.0
      %322 = vmatprep.subr.mxu0 0.0
      %323 = vmatpush1.msra.mxu0 0.0
      %324 = vmatprep.subr.mxu0 0.0
      %325 = vmatpush1.msra.mxu0 0.0
      %326 = vmatprep.subr.mxu0 0.0
      %327 = vmatpush1.msra.mxu0 0.0
      %328 = vmatprep.subr.mxu0 0.0
      %329 = vmatpush1.msra.mxu0 0.0
      %330 = vmatprep.subr.mxu0 0.0
      %331 = vmatpush1.msra.mxu0 0.0
      %332 = vmatprep.subr.mxu0 0.0
      %333 = vmatpush1.msra.mxu0 0.0
      %334 = vmatprep.subr.mxu0 0.0
      %335 = vmatpush1.msra.mxu0 0.0
      %336 = vmatprep.subr.mxu0 0.0
      %337 = vmatpush1.msra.mxu0 0.0
      %338 = vmatprep.subr.mxu0 0.0
      %339 = vmatpush1.msra.mxu0 0.0
      %340 = vmatprep.subr.mxu0 0.0
      %341 = vmatpush1.msra.mxu0 0.0
      %342 = vmatprep.subr.mxu0 0.0
      %343 = vmatpush1.msra.mxu0 0.0
      %344 = vmatprep.subr.mxu0 0.0
      %345 = vmatpush1.msra.mxu0 0.0
      %346 = vmatprep.subr.mxu0 0.0
      %347 = vmatpush1.msra.mxu0 0.0
      %348 = vmatprep.subr.mxu0 0.0
      %349 = vmatpush1.msra.mxu0 0.0
      %350 = vmatprep.subr.mxu0 0.0
      %351 = vmatpush1.msra.mxu0 0.0
      %352 = vmatprep.mubr.f32.mxu0 0.0
      %353 = vmatmul.mubr.f32.gmra.mrb[0].mxu0 %v208
      %v354 = vpop.f32.mrb[0].mxu0
      %v355 = vadd.f32 0.0, %v354
      %v356 = vpop.f32.mrb[0].mxu0
      %357 = vdwg.mxu0
      %v359 = vsel %vm206, %v177, 0
      %v361 = vsel %vm210, %v174, 0
      %v363 = vsel %vm210, %v175, 0
      %v365 = vsel %vm210, %v176, 0
      %367 = vmatprep.subr.mxu0 %v172
      %368 = vmatpush1.msra.mxu0 %v171
      %369 = vmatprep.subr.mxu0 %v363
      %370 = vmatpush1.msra.mxu0 %v361
      %371 = vmatprep.subr.mxu0 0.0
      %372 = vmatpush1.msra.mxu0 0.0
      %373 = vmatprep.subr.mxu0 0.0
      %374 = vmatpush1.msra.mxu0 0.0
      %375 = vmatprep.subr.mxu0 0.0
      %376 = vmatpush1.msra.mxu0 0.0
      %377 = vmatprep.subr.mxu0 0.0
      %378 = vmatpush1.msra.mxu0 0.0
      %379 = vmatprep.subr.mxu0 0.0
      %380 = vmatpush1.msra.mxu0 0.0
      %381 = vmatprep.subr.mxu0 0.0
      %382 = vmatpush1.msra.mxu0 0.0
      %383 = vmatprep.subr.mxu0 0.0
      %384 = vmatpush1.msra.mxu0 0.0
      %385 = vmatprep.subr.mxu0 0.0
      %386 = vmatpush1.msra.mxu0 0.0
      %387 = vmatprep.subr.mxu0 0.0
      %388 = vmatpush1.msra.mxu0 0.0
      %389 = vmatprep.subr.mxu0 0.0
      %390 = vmatpush1.msra.mxu0 0.0
      %391 = vmatprep.subr.mxu0 0.0
      %392 = vmatpush1.msra.mxu0 0.0
      %393 = vmatprep.subr.mxu0 0.0
      %394 = vmatpush1.msra.mxu0 0.0
      %395 = vmatprep.subr.mxu0 0.0
      %396 = vmatpush1.msra.mxu0 0.0
      %397 = vmatprep.subr.mxu0 0.0
      %398 = vmatpush1.msra.mxu0 0.0
      %399 = vmatprep.subr.mxu0 0.0
      %400 = vmatpush1.msra.mxu0 0.0
      %401 = vmatprep.subr.mxu0 0.0
      %402 = vmatpush1.msra.mxu0 0.0
      %403 = vmatprep.subr.mxu0 0.0
      %404 = vmatpush1.msra.mxu0 0.0
      %405 = vmatprep.subr.mxu0 0.0
      %406 = vmatpush1.msra.mxu0 0.0
      %407 = vmatprep.subr.mxu0 0.0
      %408 = vmatpush1.msra.mxu0 0.0
      %409 = vmatprep.subr.mxu0 0.0
      %410 = vmatpush1.msra.mxu0 0.0
      %411 = vmatprep.subr.mxu0 0.0
      %412 = vmatpush1.msra.mxu0 0.0
      %413 = vmatprep.subr.mxu0 0.0
      %414 = vmatpush1.msra.mxu0 0.0
      %415 = vmatprep.subr.mxu0 0.0
      %416 = vmatpush1.msra.mxu0 0.0
      %417 = vmatprep.subr.mxu0 0.0
      %418 = vmatpush1.msra.mxu0 0.0
      %419 = vmatprep.subr.mxu0 0.0
      %420 = vmatpush1.msra.mxu0 0.0
      %421 = vmatprep.subr.mxu0 0.0
      %422 = vmatpush1.msra.mxu0 0.0
      %423 = vmatprep.subr.mxu0 0.0
      %424 = vmatpush1.msra.mxu0 0.0
      %425 = vmatprep.subr.mxu0 0.0
      %426 = vmatpush1.msra.mxu0 0.0
      %427 = vmatprep.subr.mxu0 0.0
      %428 = vmatpush1.msra.mxu0 0.0
      %429 = vmatprep.subr.mxu0 0.0
      %430 = vmatpush1.msra.mxu0 0.0
      %431 = vmatprep.mubr.f32.mxu0 0.0
      %432 = vmatmul.mubr.f32.gmra.mrb[0].mxu0 %v359
      %v433 = vpop.f32.mrb[0].mxu0
      %v434 = vadd.f32 %v284, %v433
      %v435 = vpop.f32.mrb[0].mxu0
      %v436 = vadd.f32 %v286, %v435
      %437 = vdwg.mxu0
      %438 = vmatprep.subr.mxu0 0.0
      %439 = vmatpush1.msra.mxu0 %v173
      %440 = vmatprep.subr.mxu0 0.0
      %441 = vmatpush1.msra.mxu0 %v365
      %442 = vmatprep.subr.mxu0 0.0
      %443 = vmatpush1.msra.mxu0 0.0
      %444 = vmatprep.subr.mxu0 0.0
      %445 = vmatpush1.msra.mxu0 0.0
      %446 = vmatprep.subr.mxu0 0.0
      %447 = vmatpush1.msra.mxu0 0.0
      %448 = vmatprep.subr.mxu0 0.0
      %449 = vmatpush1.msra.mxu0 0.0
      %450 = vmatprep.subr.mxu0 0.0
      %451 = vmatpush1.msra.mxu0 0.0
      %452 = vmatprep.subr.mxu0 0.0
      %453 = vmatpush1.msra.mxu0 0.0
      %454 = vmatprep.subr.mxu0 0.0
      %455 = vmatpush1.msra.mxu0 0.0
      %456 = vmatprep.subr.mxu0 0.0
      %457 = vmatpush1.msra.mxu0 0.0
      %458 = vmatprep.subr.mxu0 0.0
      %459 = vmatpush1.msra.mxu0 0.0
      %460 = vmatprep.subr.mxu0 0.0
      %461 = vmatpush1.msra.mxu0 0.0
      %462 = vmatprep.subr.mxu0 0.0
      %463 = vmatpush1.msra.mxu0 0.0
      %464 = vmatprep.subr.mxu0 0.0
      %465 = vmatpush1.msra.mxu0 0.0
      %466 = vmatprep.subr.mxu0 0.0
      %467 = vmatpush1.msra.mxu0 0.0
      %468 = vmatprep.subr.mxu0 0.0
      %469 = vmatpush1.msra.mxu0 0.0
      %470 = vmatprep.subr.mxu0 0.0
      %471 = vmatpush1.msra.mxu0 0.0
      %472 = vmatprep.subr.mxu0 0.0
      %473 = vmatpush1.msra.mxu0 0.0
      %474 = vmatprep.subr.mxu0 0.0
      %475 = vmatpush1.msra.mxu0 0.0
      %476 = vmatprep.subr.mxu0 0.0
      %477 = vmatpush1.msra.mxu0 0.0
      %478 = vmatprep.subr.mxu0 0.0
      %479 = vmatpush1.msra.mxu0 0.0
      %480 = vmatprep.subr.mxu0 0.0
      %481 = vmatpush1.msra.mxu0 0.0
      %482 = vmatprep.subr.mxu0 0.0
      %483 = vmatpush1.msra.mxu0 0.0
      %484 = vmatprep.subr.mxu0 0.0
      %485 = vmatpush1.msra.mxu0 0.0
      %486 = vmatprep.subr.mxu0 0.0
      %487 = vmatpush1.msra.mxu0 0.0
      %488 = vmatprep.subr.mxu0 0.0
      %489 = vmatpush1.msra.mxu0 0.0
      %490 = vmatprep.subr.mxu0 0.0
      %491 = vmatpush1.msra.mxu0 0.0
      %492 = vmatprep.subr.mxu0 0.0
      %493 = vmatpush1.msra.mxu0 0.0
      %494 = vmatprep.subr.mxu0 0.0
      %495 = vmatpush1.msra.mxu0 0.0
      %496 = vmatprep.subr.mxu0 0.0
      %497 = vmatpush1.msra.mxu0 0.0
      %498 = vmatprep.subr.mxu0 0.0
      %499 = vmatpush1.msra.mxu0 0.0
      %500 = vmatprep.subr.mxu0 0.0
      %501 = vmatpush1.msra.mxu0 0.0
      %502 = vmatprep.mubr.f32.mxu0 0.0
      %503 = vmatmul.mubr.f32.gmra.mrb[0].mxu0 %v359
      %v504 = vpop.f32.mrb[0].mxu0
      %v505 = vadd.f32 %v355, %v504
      %v506 = vpop.f32.mrb[0].mxu0
      %507 = vdwg.mxu0
      %s508 = scalar_lea.vmem %s1, 8
      %v509 = vld [vmem:[%s508] sm:$0xf]
      %510 = vrot.lane.b32.xlu0 %v171, 126
      %v511 = vpop.permute.xlu0 %510
      %512 = vrot.lane.b32.xlu0 %v172, 126
      %v513 = vpop.permute.xlu0 %512
      %514 = vrot.lane.b32.xlu0 %v173, 126
      %v515 = vpop.permute.xlu0 %514
      %516 = vrot.lane.b32.xlu0 %v174, 126
      %v517 = vpop.permute.xlu0 %516
      %518 = vrot.lane.b32.xlu0 %v175, 126
      %v519 = vpop.permute.xlu0 %518
      %520 = vrot.lane.b32.xlu0 %v176, 126
      %v521 = vpop.permute.xlu0 %520
      %vm522 = vcmask 1031168
      %v523 = vsel %vm522, %v511, %v513
      %v524 = vsel %vm522, %v513, %v515
      %v525 = vsel %vm522, %v517, %v519
      %v526 = vsel %vm522, %v519, %v521
      %v531 = vsel %vm206, %v509, 0
      %v533 = vsel %vm210, %v525, 0
      %v535 = vsel %vm210, %v526, 0
      %v537 = vsel %vm210, %v521, 0
      %539 = vmatprep.subr.mxu0 %v524
      %540 = vmatpush1.msra.mxu0 %v523
      %541 = vmatprep.subr.mxu0 %v535
      %542 = vmatpush1.msra.mxu0 %v533
      %543 = vmatprep.subr.mxu0 0.0
      %544 = vmatpush1.msra.mxu0 0.0
      %545 = vmatprep.subr.mxu0 0.0
      %546 = vmatpush1.msra.mxu0 0.0
      %547 = vmatprep.subr.mxu0 0.0
      %548 = vmatpush1.msra.mxu0 0.0
      %549 = vmatprep.subr.mxu0 0.0
      %550 = vmatpush1.msra.mxu0 0.0
      %551 = vmatprep.subr.mxu0 0.0
      %552 = vmatpush1.msra.mxu0 0.0
      %553 = vmatprep.subr.mxu0 0.0
      %554 = vmatpush1.msra.mxu0 0.0
      %555 = vmatprep.subr.mxu0 0.0
      %556 = vmatpush1.msra.mxu0 0.0
      %557 = vmatprep.subr.mxu0 0.0
      %558 = vmatpush1.msra.mxu0 0.0
      %559 = vmatprep.subr.mxu0 0.0
      %560 = vmatpush1.msra.mxu0 0.0
      %561 = vmatprep.subr.mxu0 0.0
      %562 = vmatpush1.msra.mxu0 0.0
      %563 = vmatprep.subr.mxu0 0.0
      %564 = vmatpush1.msra.mxu0 0.0
      %565 = vmatprep.subr.mxu0 0.0
      %566 = vmatpush1.msra.mxu0 0.0
      %567 = vmatprep.subr.mxu0 0.0
      %568 = vmatpush1.msra.mxu0 0.0
      %569 = vmatprep.subr.mxu0 0.0
      %570 = vmatpush1.msra.mxu0 0.0
      %571 = vmatprep.subr.mxu0 0.0
      %572 = vmatpush1.msra.mxu0 0.0
      %573 = vmatprep.subr.mxu0 0.0
      %574 = vmatpush1.msra.mxu0 0.0
      %575 = vmatprep.subr.mxu0 0.0
      %576 = vmatpush1.msra.mxu0 0.0
      %577 = vmatprep.subr.mxu0 0.0
      %578 = vmatpush1.msra.mxu0 0.0
      %579 = vmatprep.subr.mxu0 0.0
      %580 = vmatpush1.msra.mxu0 0.0
      %581 = vmatprep.subr.mxu0 0.0
      %582 = vmatpush1.msra.mxu0 0.0
      %583 = vmatprep.subr.mxu0 0.0
      %584 = vmatpush1.msra.mxu0 0.0
      %585 = vmatprep.subr.mxu0 0.0
      %586 = vmatpush1.msra.mxu0 0.0
      %587 = vmatprep.subr.mxu0 0.0
      %588 = vmatpush1.msra.mxu0 0.0
      %589 = vmatprep.subr.mxu0 0.0
      %590 = vmatpush1.msra.mxu0 0.0
      %591 = vmatprep.subr.mxu0 0.0
      %592 = vmatpush1.msra.mxu0 0.0
      %593 = vmatprep.subr.mxu0 0.0
      %594 = vmatpush1.msra.mxu0 0.0
      %595 = vmatprep.subr.mxu0 0.0
      %596 = vmatpush1.msra.mxu0 0.0
      %597 = vmatprep.subr.mxu0 0.0
      %598 = vmatpush1.msra.mxu0 0.0
      %599 = vmatprep.subr.mxu0 0.0
      %600 = vmatpush1.msra.mxu0 0.0
      %601 = vmatprep.subr.mxu0 0.0
      %602 = vmatpush1.msra.mxu0 0.0
      %603 = vmatprep.mubr.f32.mxu0 0.0
      %604 = vmatmul.mubr.f32.gmra.mrb[0].mxu0 %v531
      %v605 = vpop.f32.mrb[0].mxu0
      %v606 = vadd.f32 0.0, %v605
      %v607 = vpop.f32.mrb[0].mxu0
      %v608 = vadd.f32 0.0, %v607
      %609 = vdwg.mxu0
      %610 = vmatprep.subr.mxu0 0.0
      %611 = vmatpush1.msra.mxu0 %v515
      %612 = vmatprep.subr.mxu0 0.0
      %613 = vmatpush1.msra.mxu0 %v537
      %614 = vmatprep.subr.mxu0 0.0
      %615 = vmatpush1.msra.mxu0 0.0
      %616 = vmatprep.subr.mxu0 0.0
      %617 = vmatpush1.msra.mxu0 0.0
      %618 = vmatprep.subr.mxu0 0.0
      %619 = vmatpush1.msra.mxu0 0.0
      %620 = vmatprep.subr.mxu0 0.0
      %621 = vmatpush1.msra.mxu0 0.0
      %622 = vmatprep.subr.mxu0 0.0
      %623 = vmatpush1.msra.mxu0 0.0
      %624 = vmatprep.subr.mxu0 0.0
      %625 = vmatpush1.msra.mxu0 0.0
      %626 = vmatprep.subr.mxu0 0.0
      %627 = vmatpush1.msra.mxu0 0.0
      %628 = vmatprep.subr.mxu0 0.0
      %629 = vmatpush1.msra.mxu0 0.0
      %630 = vmatprep.subr.mxu0 0.0
      %631 = vmatpush1.msra.mxu0 0.0
      %632 = vmatprep.subr.mxu0 0.0
      %633 = vmatpush1.msra.mxu0 0.0
      %634 = vmatprep.subr.mxu0 0.0
      %635 = vmatpush1.msra.mxu0 0.0
      %636 = vmatprep.subr.mxu0 0.0
      %637 = vmatpush1.msra.mxu0 0.0
      %638 = vmatprep.subr.mxu0 0.0
      %639 = vmatpush1.msra.mxu0 0.0
      %640 = vmatprep.subr.mxu0 0.0
      %641 = vmatpush1.msra.mxu0 0.0
      %642 = vmatprep.subr.mxu0 0.0
      %643 = vmatpush1.msra.mxu0 0.0
      %644 = vmatprep.subr.mxu0 0.0
      %645 = vmatpush1.msra.mxu0 0.0
      %646 = vmatprep.subr.mxu0 0.0
      %647 = vmatpush1.msra.mxu0 0.0
      %648 = vmatprep.subr.mxu0 0.0
      %649 = vmatpush1.msra.mxu0 0.0
      %650 = vmatprep.subr.mxu0 0.0
      %651 = vmatpush1.msra.mxu0 0.0
      %652 = vmatprep.subr.mxu0 0.0
      %653 = vmatpush1.msra.mxu0 0.0
      %654 = vmatprep.subr.mxu0 0.0
      %655 = vmatpush1.msra.mxu0 0.0
      %656 = vmatprep.subr.mxu0 0.0
      %657 = vmatpush1.msra.mxu0 0.0
      %658 = vmatprep.subr.mxu0 0.0
      %659 = vmatpush1.msra.mxu0 0.0
      %660 = vmatprep.subr.mxu0 0.0
      %661 = vmatpush1.msra.mxu0 0.0
      %662 = vmatprep.subr.mxu0 0.0
      %663 = vmatpush1.msra.mxu0 0.0
      %664 = vmatprep.subr.mxu0 0.0
      %665 = vmatpush1.msra.mxu0 0.0
      %666 = vmatprep.subr.mxu0 0.0
      %667 = vmatpush1.msra.mxu0 0.0
      %668 = vmatprep.subr.mxu0 0.0
      %669 = vmatpush1.msra.mxu0 0.0
      %670 = vmatprep.subr.mxu0 0.0
      %671 = vmatpush1.msra.mxu0 0.0
      %672 = vmatprep.subr.mxu0 0.0
      %673 = vmatpush1.msra.mxu0 0.0
      %674 = vmatprep.mubr.f32.mxu0 0.0
      %675 = vmatmul.mubr.f32.gmra.mrb[0].mxu0 %v531
      %v676 = vpop.f32.mrb[0].mxu0
      %v677 = vadd.f32 0.0, %v676
      %v678 = vpop.f32.mrb[0].mxu0
      %679 = vdwg.mxu0
      %v680 = vadd.f32 %v434, %v606
      %v681 = vadd.f32 %v436, %v608
      %v682 = vadd.f32 %v505, %v677
      %s683 = scalar_lea.vmem %s1, 12
      %v684 = vld [vmem:[%s683] sm:$0xf]
      %685 = vrot.lane.b32.xlu0 %v171, 110
      %v686 = vpop.permute.xlu0 %685
      %687 = vrot.lane.b32.xlu0 %v172, 110
      %v688 = vpop.permute.xlu0 %687
      %689 = vrot.lane.b32.xlu0 %v173, 110
      %v690 = vpop.permute.xlu0 %689
      %691 = vrot.lane.b32.xlu0 %v174, 110
      %v692 = vpop.permute.xlu0 %691
      %693 = vrot.lane.b32.xlu0 %v175, 110
      %v694 = vpop.permute.xlu0 %693
      %695 = vrot.lane.b32.xlu0 %v176, 110
      %v696 = vpop.permute.xlu0 %695
      %vm697 = vcmask 900096
      %v698 = vsel %vm697, %v686, %v688
      %v699 = vsel %vm697, %v688, %v690
      %v700 = vsel %vm697, %v692, %v694
      %v701 = vsel %vm697, %v694, %v696
      %v706 = vsel %vm206, %v684, 0
      %v708 = vsel %vm210, %v700, 0
      %v710 = vsel %vm210, %v701, 0
      %v712 = vsel %vm210, %v696, 0
      %714 = vmatprep.subr.mxu0 %v699
      %715 = vmatpush1.msra.mxu0 %v698
      %716 = vmatprep.subr.mxu0 %v710
      %717 = vmatpush1.msra.mxu0 %v708
      %718 = vmatprep.subr.mxu0 0.0
      %719 = vmatpush1.msra.mxu0 0.0
      %720 = vmatprep.subr.mxu0 0.0
      %721 = vmatpush1.msra.mxu0 0.0
      %722 = vmatprep.subr.mxu0 0.0
      %723 = vmatpush1.msra.mxu0 0.0
      %724 = vmatprep.subr.mxu0 0.0
      %725 = vmatpush1.msra.mxu0 0.0
      %726 = vmatprep.subr.mxu0 0.0
      %727 = vmatpush1.msra.mxu0 0.0
      %728 = vmatprep.subr.mxu0 0.0
      %729 = vmatpush1.msra.mxu0 0.0
      %730 = vmatprep.subr.mxu0 0.0
      %731 = vmatpush1.msra.mxu0 0.0
      %732 = vmatprep.subr.mxu0 0.0
      %733 = vmatpush1.msra.mxu0 0.0
      %734 = vmatprep.subr.mxu0 0.0
      %735 = vmatpush1.msra.mxu0 0.0
      %736 = vmatprep.subr.mxu0 0.0
      %737 = vmatpush1.msra.mxu0 0.0
      %738 = vmatprep.subr.mxu0 0.0
      %739 = vmatpush1.msra.mxu0 0.0
      %740 = vmatprep.subr.mxu0 0.0
      %741 = vmatpush1.msra.mxu0 0.0
      %742 = vmatprep.subr.mxu0 0.0
      %743 = vmatpush1.msra.mxu0 0.0
      %744 = vmatprep.subr.mxu0 0.0
      %745 = vmatpush1.msra.mxu0 0.0
      %746 = vmatprep.subr.mxu0 0.0
      %747 = vmatpush1.msra.mxu0 0.0
      %748 = vmatprep.subr.mxu0 0.0
      %749 = vmatpush1.msra.mxu0 0.0
      %750 = vmatprep.subr.mxu0 0.0
      %751 = vmatpush1.msra.mxu0 0.0
      %752 = vmatprep.subr.mxu0 0.0
      %753 = vmatpush1.msra.mxu0 0.0
      %754 = vmatprep.subr.mxu0 0.0
      %755 = vmatpush1.msra.mxu0 0.0
      %756 = vmatprep.subr.mxu0 0.0
      %757 = vmatpush1.msra.mxu0 0.0
      %758 = vmatprep.subr.mxu0 0.0
      %759 = vmatpush1.msra.mxu0 0.0
      %760 = vmatprep.subr.mxu0 0.0
      %761 = vmatpush1.msra.mxu0 0.0
      %762 = vmatprep.subr.mxu0 0.0
      %763 = vmatpush1.msra.mxu0 0.0
      %764 = vmatprep.subr.mxu0 0.0
      %765 = vmatpush1.msra.mxu0 0.0
      %766 = vmatprep.subr.mxu0 0.0
      %767 = vmatpush1.msra.mxu0 0.0
      %768 = vmatprep.subr.mxu0 0.0
      %769 = vmatpush1.msra.mxu0 0.0
      %770 = vmatprep.subr.mxu0 0.0
      %771 = vmatpush1.msra.mxu0 0.0
      %772 = vmatprep.subr.mxu0 0.0
      %773 = vmatpush1.msra.mxu0 0.0
      %774 = vmatprep.subr.mxu0 0.0
      %775 = vmatpush1.msra.mxu0 0.0
      %776 = vmatprep.subr.mxu0 0.0
      %777 = vmatpush1.msra.mxu0 0.0
      %778 = vmatprep.mubr.f32.mxu0 0.0
      %779 = vmatmul.mubr.f32.gmra.mrb[0].mxu0 %v706
      %v780 = vpop.f32.mrb[0].mxu0
      %v781 = vadd.f32 0.0, %v780
      %v782 = vpop.f32.mrb[0].mxu0
      %v783 = vadd.f32 0.0, %v782
      %784 = vdwg.mxu0
      %785 = vmatprep.subr.mxu0 0.0
      %786 = vmatpush1.msra.mxu0 %v690
      %787 = vmatprep.subr.mxu0 0.0
      %788 = vmatpush1.msra.mxu0 %v712
      %789 = vmatprep.subr.mxu0 0.0
      %790 = vmatpush1.msra.mxu0 0.0
      %791 = vmatprep.subr.mxu0 0.0
      %792 = vmatpush1.msra.mxu0 0.0
      %793 = vmatprep.subr.mxu0 0.0
      %794 = vmatpush1.msra.mxu0 0.0
      %795 = vmatprep.subr.mxu0 0.0
      %796 = vmatpush1.msra.mxu0 0.0
      %797 = vmatprep.subr.mxu0 0.0
      %798 = vmatpush1.msra.mxu0 0.0
      %799 = vmatprep.subr.mxu0 0.0
      %800 = vmatpush1.msra.mxu0 0.0
      %801 = vmatprep.subr.mxu0 0.0
      %802 = vmatpush1.msra.mxu0 0.0
      %803 = vmatprep.subr.mxu0 0.0
      %804 = vmatpush1.msra.mxu0 0.0
      %805 = vmatprep.subr.mxu0 0.0
      %806 = vmatpush1.msra.mxu0 0.0
      %807 = vmatprep.subr.mxu0 0.0
      %808 = vmatpush1.msra.mxu0 0.0
      %809 = vmatprep.subr.mxu0 0.0
      %810 = vmatpush1.msra.mxu0 0.0
      %811 = vmatprep.subr.mxu0 0.0
      %812 = vmatpush1.msra.mxu0 0.0
      %813 = vmatprep.subr.mxu0 0.0
      %814 = vmatpush1.msra.mxu0 0.0
      %815 = vmatprep.subr.mxu0 0.0
      %816 = vmatpush1.msra.mxu0 0.0
      %817 = vmatprep.subr.mxu0 0.0
      %818 = vmatpush1.msra.mxu0 0.0
      %819 = vmatprep.subr.mxu0 0.0
      %820 = vmatpush1.msra.mxu0 0.0
      %821 = vmatprep.subr.mxu0 0.0
      %822 = vmatpush1.msra.mxu0 0.0
      %823 = vmatprep.subr.mxu0 0.0
      %824 = vmatpush1.msra.mxu0 0.0
      %825 = vmatprep.subr.mxu0 0.0
      %826 = vmatpush1.msra.mxu0 0.0
      %827 = vmatprep.subr.mxu0 0.0
      %828 = vmatpush1.msra.mxu0 0.0
      %829 = vmatprep.subr.mxu0 0.0
      %830 = vmatpush1.msra.mxu0 0.0
      %831 = vmatprep.subr.mxu0 0.0
      %832 = vmatpush1.msra.mxu0 0.0
      %833 = vmatprep.subr.mxu0 0.0
      %834 = vmatpush1.msra.mxu0 0.0
      %835 = vmatprep.subr.mxu0 0.0
      %836 = vmatpush1.msra.mxu0 0.0
      %837 = vmatprep.subr.mxu0 0.0
      %838 = vmatpush1.msra.mxu0 0.0
      %839 = vmatprep.subr.mxu0 0.0
      %840 = vmatpush1.msra.mxu0 0.0
      %841 = vmatprep.subr.mxu0 0.0
      %842 = vmatpush1.msra.mxu0 0.0
      %843 = vmatprep.subr.mxu0 0.0
      %844 = vmatpush1.msra.mxu0 0.0
      %845 = vmatprep.subr.mxu0 0.0
      %846 = vmatpush1.msra.mxu0 0.0
      %847 = vmatprep.subr.mxu0 0.0
      %848 = vmatpush1.msra.mxu0 0.0
      %849 = vmatprep.mubr.f32.mxu0 0.0
      %850 = vmatmul.mubr.f32.gmra.mrb[0].mxu0 %v706
      %v851 = vpop.f32.mrb[0].mxu0
      %v852 = vadd.f32 0.0, %v851
      %v853 = vpop.f32.mrb[0].mxu0
      %854 = vdwg.mxu0
      %v855 = vadd.f32 %v680, %v781
      %v856 = vadd.f32 %v681, %v783
      %v857 = vadd.f32 %v682, %v852
      %s858 = scalar_lea.vmem %s1, 16
      %v859 = vld [vmem:[%s858] sm:$0xf]
      %860 = vrot.lane.b32.xlu0 %v171, 109
      %v861 = vpop.permute.xlu0 %860
      %862 = vrot.lane.b32.xlu0 %v172, 109
      %v863 = vpop.permute.xlu0 %862
      %864 = vrot.lane.b32.xlu0 %v173, 109
      %v865 = vpop.permute.xlu0 %864
      %866 = vrot.lane.b32.xlu0 %v174, 109
      %v867 = vpop.permute.xlu0 %866
      %868 = vrot.lane.b32.xlu0 %v175, 109
      %v869 = vpop.permute.xlu0 %868
      %870 = vrot.lane.b32.xlu0 %v176, 109
      %v871 = vpop.permute.xlu0 %870
      %vm872 = vcmask 891904
      %v873 = vsel %vm872, %v861, %v863
      %v874 = vsel %vm872, %v863, %v865
      %v875 = vsel %vm872, %v867, %v869
      %v876 = vsel %vm872, %v869, %v871
      %v881 = vsel %vm206, %v859, 0
      %v883 = vsel %vm210, %v875, 0
      %v885 = vsel %vm210, %v876, 0
      %v887 = vsel %vm210, %v871, 0
      %889 = vmatprep.subr.mxu0 %v874
      %890 = vmatpush1.msra.mxu0 %v873
      %891 = vmatprep.subr.mxu0 %v885
      %892 = vmatpush1.msra.mxu0 %v883
      %893 = vmatprep.subr.mxu0 0.0
      %894 = vmatpush1.msra.mxu0 0.0
      %895 = vmatprep.subr.mxu0 0.0
      %896 = vmatpush1.msra.mxu0 0.0
      %897 = vmatprep.subr.mxu0 0.0
      %898 = vmatpush1.msra.mxu0 0.0
      %899 = vmatprep.subr.mxu0 0.0
      %900 = vmatpush1.msra.mxu0 0.0
      %901 = vmatprep.subr.mxu0 0.0
      %902 = vmatpush1.msra.mxu0 0.0
      %903 = vmatprep.subr.mxu0 0.0
      %904 = vmatpush1.msra.mxu0 0.0
      %905 = vmatprep.subr.mxu0 0.0
      %906 = vmatpush1.msra.mxu0 0.0
      %907 = vmatprep.subr.mxu0 0.0
      %908 = vmatpush1.msra.mxu0 0.0
      %909 = vmatprep.subr.mxu0 0.0
      %910 = vmatpush1.msra.mxu0 0.0
      %911 = vmatprep.subr.mxu0 0.0
      %912 = vmatpush1.msra.mxu0 0.0
      %913 = vmatprep.subr.mxu0 0.0
      %914 = vmatpush1.msra.mxu0 0.0
      %915 = vmatprep.subr.mxu0 0.0
      %916 = vmatpush1.msra.mxu0 0.0
      %917 = vmatprep.subr.mxu0 0.0
      %918 = vmatpush1.msra.mxu0 0.0
      %919 = vmatprep.subr.mxu0 0.0
      %920 = vmatpush1.msra.mxu0 0.0
      %921 = vmatprep.subr.mxu0 0.0
      %922 = vmatpush1.msra.mxu0 0.0
      %923 = vmatprep.subr.mxu0 0.0
      %924 = vmatpush1.msra.mxu0 0.0
      %925 = vmatprep.subr.mxu0 0.0
      %926 = vmatpush1.msra.mxu0 0.0
      %927 = vmatprep.subr.mxu0 0.0
      %928 = vmatpush1.msra.mxu0 0.0
      %929 = vmatprep.subr.mxu0 0.0
      %930 = vmatpush1.msra.mxu0 0.0
      %931 = vmatprep.subr.mxu0 0.0
      %932 = vmatpush1.msra.mxu0 0.0
      %933 = vmatprep.subr.mxu0 0.0
      %934 = vmatpush1.msra.mxu0 0.0
      %935 = vmatprep.subr.mxu0 0.0
      %936 = vmatpush1.msra.mxu0 0.0
      %937 = vmatprep.subr.mxu0 0.0
      %938 = vmatpush1.msra.mxu0 0.0
      %939 = vmatprep.subr.mxu0 0.0
      %940 = vmatpush1.msra.mxu0 0.0
      %941 = vmatprep.subr.mxu0 0.0
      %942 = vmatpush1.msra.mxu0 0.0
      %943 = vmatprep.subr.mxu0 0.0
      %944 = vmatpush1.msra.mxu0 0.0
      %945 = vmatprep.subr.mxu0 0.0
      %946 = vmatpush1.msra.mxu0 0.0
      %947 = vmatprep.subr.mxu0 0.0
      %948 = vmatpush1.msra.mxu0 0.0
      %949 = vmatprep.subr.mxu0 0.0
      %950 = vmatpush1.msra.mxu0 0.0
      %951 = vmatprep.subr.mxu0 0.0
      %952 = vmatpush1.msra.mxu0 0.0
      %953 = vmatprep.mubr.f32.mxu0 0.0
      %954 = vmatmul.mubr.f32.gmra.mrb[0].mxu0 %v881
      %v955 = vpop.f32.mrb[0].mxu0
      %v956 = vadd.f32 0.0, %v955
      %v957 = vpop.f32.mrb[0].mxu0
      %v958 = vadd.f32 0.0, %v957
      %959 = vdwg.mxu0
      %960 = vmatprep.subr.mxu0 0.0
      %961 = vmatpush1.msra.mxu0 %v865
      %962 = vmatprep.subr.mxu0 0.0
      %963 = vmatpush1.msra.mxu0 %v887
      %964 = vmatprep.subr.mxu0 0.0
      %965 = vmatpush1.msra.mxu0 0.0
      %966 = vmatprep.subr.mxu0 0.0
      %967 = vmatpush1.msra.mxu0 0.0
      %968 = vmatprep.subr.mxu0 0.0
      %969 = vmatpush1.msra.mxu0 0.0
      %970 = vmatprep.subr.mxu0 0.0
      %971 = vmatpush1.msra.mxu0 0.0
      %972 = vmatprep.subr.mxu0 0.0
      %973 = vmatpush1.msra.mxu0 0.0
      %974 = vmatprep.subr.mxu0 0.0
      %975 = vmatpush1.msra.mxu0 0.0
      %976 = vmatprep.subr.mxu0 0.0
      %977 = vmatpush1.msra.mxu0 0.0
      %978 = vmatprep.subr.mxu0 0.0
      %979 = vmatpush1.msra.mxu0 0.0
      %980 = vmatprep.subr.mxu0 0.0
      %981 = vmatpush1.msra.mxu0 0.0
      %982 = vmatprep.subr.mxu0 0.0
      %983 = vmatpush1.msra.mxu0 0.0
      %984 = vmatprep.subr.mxu0 0.0
      %985 = vmatpush1.msra.mxu0 0.0
      %986 = vmatprep.subr.mxu0 0.0
      %987 = vmatpush1.msra.mxu0 0.0
      %988 = vmatprep.subr.mxu0 0.0
      %989 = vmatpush1.msra.mxu0 0.0
      %990 = vmatprep.subr.mxu0 0.0
      %991 = vmatpush1.msra.mxu0 0.0
      %992 = vmatprep.subr.mxu0 0.0
      %993 = vmatpush1.msra.mxu0 0.0
      %994 = vmatprep.subr.mxu0 0.0
      %995 = vmatpush1.msra.mxu0 0.0
      %996 = vmatprep.subr.mxu0 0.0
      %997 = vmatpush1.msra.mxu0 0.0
      %998 = vmatprep.subr.mxu0 0.0
      %999 = vmatpush1.msra.mxu0 0.0
      %1000 = vmatprep.subr.mxu0 0.0
      %1001 = vmatpush1.msra.mxu0 0.0
      %1002 = vmatprep.subr.mxu0 0.0
      %1003 = vmatpush1.msra.mxu0 0.0
      %1004 = vmatprep.subr.mxu0 0.0
      %1005 = vmatpush1.msra.mxu0 0.0
      %1006 = vmatprep.subr.mxu0 0.0
      %1007 = vmatpush1.msra.mxu0 0.0
      %1008 = vmatprep.subr.mxu0 0.0
      %1009 = vmatpush1.msra.mxu0 0.0
      %1010 = vmatprep.subr.mxu0 0.0
      %1011 = vmatpush1.msra.mxu0 0.0
      %1012 = vmatprep.subr.mxu0 0.0
      %1013 = vmatpush1.msra.mxu0 0.0
      %1014 = vmatprep.subr.mxu0 0.0
      %1015 = vmatpush1.msra.mxu0 0.0
      %1016 = vmatprep.subr.mxu0 0.0
      %1017 = vmatpush1.msra.mxu0 0.0
      %1018 = vmatprep.subr.mxu0 0.0
      %1019 = vmatpush1.msra.mxu0 0.0
      %1020 = vmatprep.subr.mxu0 0.0
      %1021 = vmatpush1.msra.mxu0 0.0
      %1022 = vmatprep.subr.mxu0 0.0
      %1023 = vmatpush1.msra.mxu0 0.0
      %1024 = vmatprep.mubr.f32.mxu0 0.0
      %1025 = vmatmul.mubr.f32.gmra.mrb[0].mxu0 %v881
      %v1026 = vpop.f32.mrb[0].mxu0
      %v1027 = vadd.f32 0.0, %v1026
      %v1028 = vpop.f32.mrb[0].mxu0
      %1029 = vdwg.mxu0
      %v1030 = vadd.f32 %v855, %v956
      %v1031 = vadd.f32 %v856, %v958
      %v1032 = vadd.f32 %v857, %v1027
      %s1033 = scalar_lea.vmem %s1, 20
      %v1034 = vld [vmem:[%s1033] sm:$0xf]
      %1035 = vrot.lane.b32.xlu0 %v171, 108
      %v1036 = vpop.permute.xlu0 %1035
      %1037 = vrot.lane.b32.xlu0 %v172, 108
      %v1038 = vpop.permute.xlu0 %1037
      %1039 = vrot.lane.b32.xlu0 %v173, 108
      %v1040 = vpop.permute.xlu0 %1039
      %1041 = vrot.lane.b32.xlu0 %v174, 108
      %v1042 = vpop.permute.xlu0 %1041
      %1043 = vrot.lane.b32.xlu0 %v175, 108
      %v1044 = vpop.permute.xlu0 %1043
      %1045 = vrot.lane.b32.xlu0 %v176, 108
      %v1046 = vpop.permute.xlu0 %1045
      %vm1047 = vcmask 883712
      %v1048 = vsel %vm1047, %v1036, %v1038
      %v1049 = vsel %vm1047, %v1038, %v1040
      %v1050 = vsel %vm1047, %v1042, %v1044
      %v1051 = vsel %vm1047, %v1044, %v1046
      %v1056 = vsel %vm206, %v1034, 0
      %v1058 = vsel %vm210, %v1050, 0
      %v1060 = vsel %vm210, %v1051, 0
      %v1062 = vsel %vm210, %v1046, 0
      %1064 = vmatprep.subr.mxu0 %v1049
      %1065 = vmatpush1.msra.mxu0 %v1048
      %1066 = vmatprep.subr.mxu0 %v1060
      %1067 = vmatpush1.msra.mxu0 %v1058
      %1068 = vmatprep.subr.mxu0 0.0
      %1069 = vmatpush1.msra.mxu0 0.0
      %1070 = vmatprep.subr.mxu0 0.0
      %1071 = vmatpush1.msra.mxu0 0.0
      %1072 = vmatprep.subr.mxu0 0.0
      %1073 = vmatpush1.msra.mxu0 0.0
      %1074 = vmatprep.subr.mxu0 0.0
      %1075 = vmatpush1.msra.mxu0 0.0
      %1076 = vmatprep.subr.mxu0 0.0
      %1077 = vmatpush1.msra.mxu0 0.0
      %1078 = vmatprep.subr.mxu0 0.0
      %1079 = vmatpush1.msra.mxu0 0.0
      %1080 = vmatprep.subr.mxu0 0.0
      %1081 = vmatpush1.msra.mxu0 0.0
      %1082 = vmatprep.subr.mxu0 0.0
      %1083 = vmatpush1.msra.mxu0 0.0
      %1084 = vmatprep.subr.mxu0 0.0
      %1085 = vmatpush1.msra.mxu0 0.0
      %1086 = vmatprep.subr.mxu0 0.0
      %1087 = vmatpush1.msra.mxu0 0.0
      %1088 = vmatprep.subr.mxu0 0.0
      %1089 = vmatpush1.msra.mxu0 0.0
      %1090 = vmatprep.subr.mxu0 0.0
      %1091 = vmatpush1.msra.mxu0 0.0
      %1092 = vmatprep.subr.mxu0 0.0
      %1093 = vmatpush1.msra.mxu0 0.0
      %1094 = vmatprep.subr.mxu0 0.0
      %1095 = vmatpush1.msra.mxu0 0.0
      %1096 = vmatprep.subr.mxu0 0.0
      %1097 = vmatpush1.msra.mxu0 0.0
      %1098 = vmatprep.subr.mxu0 0.0
      %1099 = vmatpush1.msra.mxu0 0.0
      %1100 = vmatprep.subr.mxu0 0.0
      %1101 = vmatpush1.msra.mxu0 0.0
      %1102 = vmatprep.subr.mxu0 0.0
      %1103 = vmatpush1.msra.mxu0 0.0
      %1104 = vmatprep.subr.mxu0 0.0
      %1105 = vmatpush1.msra.mxu0 0.0
      %1106 = vmatprep.subr.mxu0 0.0
      %1107 = vmatpush1.msra.mxu0 0.0
      %1108 = vmatprep.subr.mxu0 0.0
      %1109 = vmatpush1.msra.mxu0 0.0
      %1110 = vmatprep.subr.mxu0 0.0
      %1111 = vmatpush1.msra.mxu0 0.0
      %1112 = vmatprep.subr.mxu0 0.0
      %1113 = vmatpush1.msra.mxu0 0.0
      %1114 = vmatprep.subr.mxu0 0.0
      %1115 = vmatpush1.msra.mxu0 0.0
      %1116 = vmatprep.subr.mxu0 0.0
      %1117 = vmatpush1.msra.mxu0 0.0
      %1118 = vmatprep.subr.mxu0 0.0
      %1119 = vmatpush1.msra.mxu0 0.0
      %1120 = vmatprep.subr.mxu0 0.0
      %1121 = vmatpush1.msra.mxu0 0.0
      %1122 = vmatprep.subr.mxu0 0.0
      %1123 = vmatpush1.msra.mxu0 0.0
      %1124 = vmatprep.subr.mxu0 0.0
      %1125 = vmatpush1.msra.mxu0 0.0
      %1126 = vmatprep.subr.mxu0 0.0
      %1127 = vmatpush1.msra.mxu0 0.0
      %1128 = vmatprep.mubr.f32.mxu0 0.0
      %1129 = vmatmul.mubr.f32.gmra.mrb[0].mxu0 %v1056
      %v1130 = vpop.f32.mrb[0].mxu0
      %v1131 = vadd.f32 0.0, %v1130
      %v1132 = vpop.f32.mrb[0].mxu0
      %v1133 = vadd.f32 0.0, %v1132
      %1134 = vdwg.mxu0
      %1135 = vmatprep.subr.mxu0 0.0
      %1136 = vmatpush1.msra.mxu0 %v1040
      %1137 = vmatprep.subr.mxu0 0.0
      %1138 = vmatpush1.msra.mxu0 %v1062
      %1139 = vmatprep.subr.mxu0 0.0
      %1140 = vmatpush1.msra.mxu0 0.0
      %1141 = vmatprep.subr.mxu0 0.0
      %1142 = vmatpush1.msra.mxu0 0.0
      %1143 = vmatprep.subr.mxu0 0.0
      %1144 = vmatpush1.msra.mxu0 0.0
      %1145 = vmatprep.subr.mxu0 0.0
      %1146 = vmatpush1.msra.mxu0 0.0
      %1147 = vmatprep.subr.mxu0 0.0
      %1148 = vmatpush1.msra.mxu0 0.0
      %1149 = vmatprep.subr.mxu0 0.0
      %1150 = vmatpush1.msra.mxu0 0.0
      %1151 = vmatprep.subr.mxu0 0.0
      %1152 = vmatpush1.msra.mxu0 0.0
      %1153 = vmatprep.subr.mxu0 0.0
      %1154 = vmatpush1.msra.mxu0 0.0
      %1155 = vmatprep.subr.mxu0 0.0
      %1156 = vmatpush1.msra.mxu0 0.0
      %1157 = vmatprep.subr.mxu0 0.0
      %1158 = vmatpush1.msra.mxu0 0.0
      %1159 = vmatprep.subr.mxu0 0.0
      %1160 = vmatpush1.msra.mxu0 0.0
      %1161 = vmatprep.subr.mxu0 0.0
      %1162 = vmatpush1.msra.mxu0 0.0
      %1163 = vmatprep.subr.mxu0 0.0
      %1164 = vmatpush1.msra.mxu0 0.0
      %1165 = vmatprep.subr.mxu0 0.0
      %1166 = vmatpush1.msra.mxu0 0.0
      %1167 = vmatprep.subr.mxu0 0.0
      %1168 = vmatpush1.msra.mxu0 0.0
      %1169 = vmatprep.subr.mxu0 0.0
      %1170 = vmatpush1.msra.mxu0 0.0
      %1171 = vmatprep.subr.mxu0 0.0
      %1172 = vmatpush1.msra.mxu0 0.0
      %1173 = vmatprep.subr.mxu0 0.0
      %1174 = vmatpush1.msra.mxu0 0.0
      %1175 = vmatprep.subr.mxu0 0.0
      %1176 = vmatpush1.msra.mxu0 0.0
      %1177 = vmatprep.subr.mxu0 0.0
      %1178 = vmatpush1.msra.mxu0 0.0
      %1179 = vmatprep.subr.mxu0 0.0
      %1180 = vmatpush1.msra.mxu0 0.0
      %1181 = vmatprep.subr.mxu0 0.0
      %1182 = vmatpush1.msra.mxu0 0.0
      %1183 = vmatprep.subr.mxu0 0.0
      %1184 = vmatpush1.msra.mxu0 0.0
      %1185 = vmatprep.subr.mxu0 0.0
      %1186 = vmatpush1.msra.mxu0 0.0
      %1187 = vmatprep.subr.mxu0 0.0
      %1188 = vmatpush1.msra.mxu0 0.0
      %1189 = vmatprep.subr.mxu0 0.0
      %1190 = vmatpush1.msra.mxu0 0.0
      %1191 = vmatprep.subr.mxu0 0.0
      %1192 = vmatpush1.msra.mxu0 0.0
      %1193 = vmatprep.subr.mxu0 0.0
      %1194 = vmatpush1.msra.mxu0 0.0
      %1195 = vmatprep.subr.mxu0 0.0
      %1196 = vmatpush1.msra.mxu0 0.0
      %1197 = vmatprep.subr.mxu0 0.0
      %1198 = vmatpush1.msra.mxu0 0.0
      %1199 = vmatprep.mubr.f32.mxu0 0.0
      %1200 = vmatmul.mubr.f32.gmra.mrb[0].mxu0 %v1056
      %v1201 = vpop.f32.mrb[0].mxu0
      %v1202 = vadd.f32 0.0, %v1201
      %v1203 = vpop.f32.mrb[0].mxu0
      %1204 = vdwg.mxu0
      %v1205 = vadd.f32 %v1030, %v1131
      %v1206 = vadd.f32 %v1031, %v1133
      %v1207 = vadd.f32 %v1032, %v1202
      %s1208 = scalar_lea.vmem %s1, 24
      %v1209 = vld [vmem:[%s1208] sm:$0xf]
      %1210 = vrot.lane.b32.xlu0 %v171, 92
      %v1211 = vpop.permute.xlu0 %1210
      %1212 = vrot.lane.b32.xlu0 %v172, 92
      %v1213 = vpop.permute.xlu0 %1212
      %1214 = vrot.lane.b32.xlu0 %v173, 92
      %v1215 = vpop.permute.xlu0 %1214
      %1216 = vrot.lane.b32.xlu0 %v174, 92
      %v1217 = vpop.permute.xlu0 %1216
      %1218 = vrot.lane.b32.xlu0 %v175, 92
      %v1219 = vpop.permute.xlu0 %1218
      %1220 = vrot.lane.b32.xlu0 %v176, 92
      %v1221 = vpop.permute.xlu0 %1220
      %vm1222 = vcmask 752640
      %v1223 = vsel %vm1222, %v1211, %v1213
      %v1224 = vsel %vm1222, %v1213, %v1215
      %v1225 = vsel %vm1222, %v1217, %v1219
      %v1226 = vsel %vm1222, %v1219, %v1221
      %v1231 = vsel %vm206, %v1209, 0
      %v1233 = vsel %vm210, %v1225, 0
      %v1235 = vsel %vm210, %v1226, 0
      %v1237 = vsel %vm210, %v1221, 0
      %1239 = vmatprep.subr.mxu0 %v1224
      %1240 = vmatpush1.msra.mxu0 %v1223
      %1241 = vmatprep.subr.mxu0 %v1235
      %1242 = vmatpush1.msra.mxu0 %v1233
      %1243 = vmatprep.subr.mxu0 0.0
      %1244 = vmatpush1.msra.mxu0 0.0
      %1245 = vmatprep.subr.mxu0 0.0
      %1246 = vmatpush1.msra.mxu0 0.0
      %1247 = vmatprep.subr.mxu0 0.0
      %1248 = vmatpush1.msra.mxu0 0.0
      %1249 = vmatprep.subr.mxu0 0.0
      %1250 = vmatpush1.msra.mxu0 0.0
      %1251 = vmatprep.subr.mxu0 0.0
      %1252 = vmatpush1.msra.mxu0 0.0
      %1253 = vmatprep.subr.mxu0 0.0
      %1254 = vmatpush1.msra.mxu0 0.0
      %1255 = vmatprep.subr.mxu0 0.0
      %1256 = vmatpush1.msra.mxu0 0.0
      %1257 = vmatprep.subr.mxu0 0.0
      %1258 = vmatpush1.msra.mxu0 0.0
      %1259 = vmatprep.subr.mxu0 0.0
      %1260 = vmatpush1.msra.mxu0 0.0
      %1261 = vmatprep.subr.mxu0 0.0
      %1262 = vmatpush1.msra.mxu0 0.0
      %1263 = vmatprep.subr.mxu0 0.0
      %1264 = vmatpush1.msra.mxu0 0.0
      %1265 = vmatprep.subr.mxu0 0.0
      %1266 = vmatpush1.msra.mxu0 0.0
      %1267 = vmatprep.subr.mxu0 0.0
      %1268 = vmatpush1.msra.mxu0 0.0
      %1269 = vmatprep.subr.mxu0 0.0
      %1270 = vmatpush1.msra.mxu0 0.0
      %1271 = vmatprep.subr.mxu0 0.0
      %1272 = vmatpush1.msra.mxu0 0.0
      %1273 = vmatprep.subr.mxu0 0.0
      %1274 = vmatpush1.msra.mxu0 0.0
      %1275 = vmatprep.subr.mxu0 0.0
      %1276 = vmatpush1.msra.mxu0 0.0
      %1277 = vmatprep.subr.mxu0 0.0
      %1278 = vmatpush1.msra.mxu0 0.0
      %1279 = vmatprep.subr.mxu0 0.0
      %1280 = vmatpush1.msra.mxu0 0.0
      %1281 = vmatprep.subr.mxu0 0.0
      %1282 = vmatpush1.msra.mxu0 0.0
      %1283 = vmatprep.subr.mxu0 0.0
      %1284 = vmatpush1.msra.mxu0 0.0
      %1285 = vmatprep.subr.mxu0 0.0
      %1286 = vmatpush1.msra.mxu0 0.0
      %1287 = vmatprep.subr.mxu0 0.0
      %1288 = vmatpush1.msra.mxu0 0.0
      %1289 = vmatprep.subr.mxu0 0.0
      %1290 = vmatpush1.msra.mxu0 0.0
      %1291 = vmatprep.subr.mxu0 0.0
      %1292 = vmatpush1.msra.mxu0 0.0
      %1293 = vmatprep.subr.mxu0 0.0
      %1294 = vmatpush1.msra.mxu0 0.0
      %1295 = vmatprep.subr.mxu0 0.0
      %1296 = vmatpush1.msra.mxu0 0.0
      %1297 = vmatprep.subr.mxu0 0.0
      %1298 = vmatpush1.msra.mxu0 0.0
      %1299 = vmatprep.subr.mxu0 0.0
      %1300 = vmatpush1.msra.mxu0 0.0
      %1301 = vmatprep.subr.mxu0 0.0
      %1302 = vmatpush1.msra.mxu0 0.0
      %1303 = vmatprep.mubr.f32.mxu0 0.0
      %1304 = vmatmul.mubr.f32.gmra.mrb[0].mxu0 %v1231
      %v1305 = vpop.f32.mrb[0].mxu0
      %v1306 = vadd.f32 0.0, %v1305
      %v1307 = vpop.f32.mrb[0].mxu0
      %v1308 = vadd.f32 0.0, %v1307
      %1309 = vdwg.mxu0
      %1310 = vmatprep.subr.mxu0 0.0
      %1311 = vmatpush1.msra.mxu0 %v1215
      %1312 = vmatprep.subr.mxu0 0.0
      %1313 = vmatpush1.msra.mxu0 %v1237
      %1314 = vmatprep.subr.mxu0 0.0
      %1315 = vmatpush1.msra.mxu0 0.0
      %1316 = vmatprep.subr.mxu0 0.0
      %1317 = vmatpush1.msra.mxu0 0.0
      %1318 = vmatprep.subr.mxu0 0.0
      %1319 = vmatpush1.msra.mxu0 0.0
      %1320 = vmatprep.subr.mxu0 0.0
      %1321 = vmatpush1.msra.mxu0 0.0
      %1322 = vmatprep.subr.mxu0 0.0
      %1323 = vmatpush1.msra.mxu0 0.0
      %1324 = vmatprep.subr.mxu0 0.0
      %1325 = vmatpush1.msra.mxu0 0.0
      %1326 = vmatprep.subr.mxu0 0.0
      %1327 = vmatpush1.msra.mxu0 0.0
      %1328 = vmatprep.subr.mxu0 0.0
      %1329 = vmatpush1.msra.mxu0 0.0
      %1330 = vmatprep.subr.mxu0 0.0
      %1331 = vmatpush1.msra.mxu0 0.0
      %1332 = vmatprep.subr.mxu0 0.0
      %1333 = vmatpush1.msra.mxu0 0.0
      %1334 = vmatprep.subr.mxu0 0.0
      %1335 = vmatpush1.msra.mxu0 0.0
      %1336 = vmatprep.subr.mxu0 0.0
      %1337 = vmatpush1.msra.mxu0 0.0
      %1338 = vmatprep.subr.mxu0 0.0
      %1339 = vmatpush1.msra.mxu0 0.0
      %1340 = vmatprep.subr.mxu0 0.0
      %1341 = vmatpush1.msra.mxu0 0.0
      %1342 = vmatprep.subr.mxu0 0.0
      %1343 = vmatpush1.msra.mxu0 0.0
      %1344 = vmatprep.subr.mxu0 0.0
      %1345 = vmatpush1.msra.mxu0 0.0
      %1346 = vmatprep.subr.mxu0 0.0
      %1347 = vmatpush1.msra.mxu0 0.0
      %1348 = vmatprep.subr.mxu0 0.0
      %1349 = vmatpush1.msra.mxu0 0.0
      %1350 = vmatprep.subr.mxu0 0.0
      %1351 = vmatpush1.msra.mxu0 0.0
      %1352 = vmatprep.subr.mxu0 0.0
      %1353 = vmatpush1.msra.mxu0 0.0
      %1354 = vmatprep.subr.mxu0 0.0
      %1355 = vmatpush1.msra.mxu0 0.0
      %1356 = vmatprep.subr.mxu0 0.0
      %1357 = vmatpush1.msra.mxu0 0.0
      %1358 = vmatprep.subr.mxu0 0.0
      %1359 = vmatpush1.msra.mxu0 0.0
      %1360 = vmatprep.subr.mxu0 0.0
      %1361 = vmatpush1.msra.mxu0 0.0
      %1362 = vmatprep.subr.mxu0 0.0
      %1363 = vmatpush1.msra.mxu0 0.0
      %1364 = vmatprep.subr.mxu0 0.0
      %1365 = vmatpush1.msra.mxu0 0.0
      %1366 = vmatprep.subr.mxu0 0.0
      %1367 = vmatpush1.msra.mxu0 0.0
      %1368 = vmatprep.subr.mxu0 0.0
      %1369 = vmatpush1.msra.mxu0 0.0
      %1370 = vmatprep.subr.mxu0 0.0
      %1371 = vmatpush1.msra.mxu0 0.0
      %1372 = vmatprep.subr.mxu0 0.0
      %1373 = vmatpush1.msra.mxu0 0.0
      %1374 = vmatprep.mubr.f32.mxu0 0.0
      %1375 = vmatmul.mubr.f32.gmra.mrb[0].mxu0 %v1231
      %v1376 = vpop.f32.mrb[0].mxu0
      %v1377 = vadd.f32 0.0, %v1376
      %v1378 = vpop.f32.mrb[0].mxu0
      %1379 = vdwg.mxu0
      %v1380 = vadd.f32 %v1205, %v1306
      %v1381 = vadd.f32 %v1206, %v1308
      %v1382 = vadd.f32 %v1207, %v1377
      %s1383 = scalar_lea.vmem %s1, 28
      %v1384 = vld [vmem:[%s1383] sm:$0xf]
      %1385 = vrot.lane.b32.xlu0 %v171, 91
      %v1386 = vpop.permute.xlu0 %1385
      %1387 = vrot.lane.b32.xlu0 %v172, 91
      %v1388 = vpop.permute.xlu0 %1387
      %1389 = vrot.lane.b32.xlu0 %v173, 91
      %v1390 = vpop.permute.xlu0 %1389
      %1391 = vrot.lane.b32.xlu0 %v174, 91
      %v1392 = vpop.permute.xlu0 %1391
      %1393 = vrot.lane.b32.xlu0 %v175, 91
      %v1394 = vpop.permute.xlu0 %1393
      %1395 = vrot.lane.b32.xlu0 %v176, 91
      %v1396 = vpop.permute.xlu0 %1395
      %vm1397 = vcmask 744448
      %v1398 = vsel %vm1397, %v1386, %v1388
      %v1399 = vsel %vm1397, %v1388, %v1390
      %v1400 = vsel %vm1397, %v1392, %v1394
      %v1401 = vsel %vm1397, %v1394, %v1396
      %v1406 = vsel %vm206, %v1384, 0
      %v1408 = vsel %vm210, %v1400, 0
      %v1410 = vsel %vm210, %v1401, 0
      %v1412 = vsel %vm210, %v1396, 0
      %1414 = vmatprep.subr.mxu0 %v1399
      %1415 = vmatpush1.msra.mxu0 %v1398
      %1416 = vmatprep.subr.mxu0 %v1410
      %1417 = vmatpush1.msra.mxu0 %v1408
      %1418 = vmatprep.subr.mxu0 0.0
      %1419 = vmatpush1.msra.mxu0 0.0
      %1420 = vmatprep.subr.mxu0 0.0
      %1421 = vmatpush1.msra.mxu0 0.0
      %1422 = vmatprep.subr.mxu0 0.0
      %1423 = vmatpush1.msra.mxu0 0.0
      %1424 = vmatprep.subr.mxu0 0.0
      %1425 = vmatpush1.msra.mxu0 0.0
      %1426 = vmatprep.subr.mxu0 0.0
      %1427 = vmatpush1.msra.mxu0 0.0
      %1428 = vmatprep.subr.mxu0 0.0
      %1429 = vmatpush1.msra.mxu0 0.0
      %1430 = vmatprep.subr.mxu0 0.0
      %1431 = vmatpush1.msra.mxu0 0.0
      %1432 = vmatprep.subr.mxu0 0.0
      %1433 = vmatpush1.msra.mxu0 0.0
      %1434 = vmatprep.subr.mxu0 0.0
      %1435 = vmatpush1.msra.mxu0 0.0
      %1436 = vmatprep.subr.mxu0 0.0
      %1437 = vmatpush1.msra.mxu0 0.0
      %1438 = vmatprep.subr.mxu0 0.0
      %1439 = vmatpush1.msra.mxu0 0.0
      %1440 = vmatprep.subr.mxu0 0.0
      %1441 = vmatpush1.msra.mxu0 0.0
      %1442 = vmatprep.subr.mxu0 0.0
      %1443 = vmatpush1.msra.mxu0 0.0
      %1444 = vmatprep.subr.mxu0 0.0
      %1445 = vmatpush1.msra.mxu0 0.0
      %1446 = vmatprep.subr.mxu0 0.0
      %1447 = vmatpush1.msra.mxu0 0.0
      %1448 = vmatprep.subr.mxu0 0.0
      %1449 = vmatpush1.msra.mxu0 0.0
      %1450 = vmatprep.subr.mxu0 0.0
      %1451 = vmatpush1.msra.mxu0 0.0
      %1452 = vmatprep.subr.mxu0 0.0
      %1453 = vmatpush1.msra.mxu0 0.0
      %1454 = vmatprep.subr.mxu0 0.0
      %1455 = vmatpush1.msra.mxu0 0.0
      %1456 = vmatprep.subr.mxu0 0.0
      %1457 = vmatpush1.msra.mxu0 0.0
      %1458 = vmatprep.subr.mxu0 0.0
      %1459 = vmatpush1.msra.mxu0 0.0
      %1460 = vmatprep.subr.mxu0 0.0
      %1461 = vmatpush1.msra.mxu0 0.0
      %1462 = vmatprep.subr.mxu0 0.0
      %1463 = vmatpush1.msra.mxu0 0.0
      %1464 = vmatprep.subr.mxu0 0.0
      %1465 = vmatpush1.msra.mxu0 0.0
      %1466 = vmatprep.subr.mxu0 0.0
      %1467 = vmatpush1.msra.mxu0 0.0
      %1468 = vmatprep.subr.mxu0 0.0
      %1469 = vmatpush1.msra.mxu0 0.0
      %1470 = vmatprep.subr.mxu0 0.0
      %1471 = vmatpush1.msra.mxu0 0.0
      %1472 = vmatprep.subr.mxu0 0.0
      %1473 = vmatpush1.msra.mxu0 0.0
      %1474 = vmatprep.subr.mxu0 0.0
      %1475 = vmatpush1.msra.mxu0 0.0
      %1476 = vmatprep.subr.mxu0 0.0
      %1477 = vmatpush1.msra.mxu0 0.0
      %1478 = vmatprep.mubr.f32.mxu0 0.0
      %1479 = vmatmul.mubr.f32.gmra.mrb[0].mxu0 %v1406
      %v1480 = vpop.f32.mrb[0].mxu0
      %v1481 = vadd.f32 0.0, %v1480
      %v1482 = vpop.f32.mrb[0].mxu0
      %v1483 = vadd.f32 0.0, %v1482
      %1484 = vdwg.mxu0
      %1485 = vmatprep.subr.mxu0 0.0
      %1486 = vmatpush1.msra.mxu0 %v1390
      %1487 = vmatprep.subr.mxu0 0.0
      %1488 = vmatpush1.msra.mxu0 %v1412
      %1489 = vmatprep.subr.mxu0 0.0
      %1490 = vmatpush1.msra.mxu0 0.0
      %1491 = vmatprep.subr.mxu0 0.0
      %1492 = vmatpush1.msra.mxu0 0.0
      %1493 = vmatprep.subr.mxu0 0.0
      %1494 = vmatpush1.msra.mxu0 0.0
      %1495 = vmatprep.subr.mxu0 0.0
      %1496 = vmatpush1.msra.mxu0 0.0
      %1497 = vmatprep.subr.mxu0 0.0
      %1498 = vmatpush1.msra.mxu0 0.0
      %1499 = vmatprep.subr.mxu0 0.0
      %1500 = vmatpush1.msra.mxu0 0.0
      %1501 = vmatprep.subr.mxu0 0.0
      %1502 = vmatpush1.msra.mxu0 0.0
      %1503 = vmatprep.subr.mxu0 0.0
      %1504 = vmatpush1.msra.mxu0 0.0
      %1505 = vmatprep.subr.mxu0 0.0
      %1506 = vmatpush1.msra.mxu0 0.0
      %1507 = vmatprep.subr.mxu0 0.0
      %1508 = vmatpush1.msra.mxu0 0.0
      %1509 = vmatprep.subr.mxu0 0.0
      %1510 = vmatpush1.msra.mxu0 0.0
      %1511 = vmatprep.subr.mxu0 0.0
      %1512 = vmatpush1.msra.mxu0 0.0
      %1513 = vmatprep.subr.mxu0 0.0
      %1514 = vmatpush1.msra.mxu0 0.0
      %1515 = vmatprep.subr.mxu0 0.0
      %1516 = vmatpush1.msra.mxu0 0.0
      %1517 = vmatprep.subr.mxu0 0.0
      %1518 = vmatpush1.msra.mxu0 0.0
      %1519 = vmatprep.subr.mxu0 0.0
      %1520 = vmatpush1.msra.mxu0 0.0
      %1521 = vmatprep.subr.mxu0 0.0
      %1522 = vmatpush1.msra.mxu0 0.0
      %1523 = vmatprep.subr.mxu0 0.0
      %1524 = vmatpush1.msra.mxu0 0.0
      %1525 = vmatprep.subr.mxu0 0.0
      %1526 = vmatpush1.msra.mxu0 0.0
      %1527 = vmatprep.subr.mxu0 0.0
      %1528 = vmatpush1.msra.mxu0 0.0
      %1529 = vmatprep.subr.mxu0 0.0
      %1530 = vmatpush1.msra.mxu0 0.0
      %1531 = vmatprep.subr.mxu0 0.0
      %1532 = vmatpush1.msra.mxu0 0.0
      %1533 = vmatprep.subr.mxu0 0.0
      %1534 = vmatpush1.msra.mxu0 0.0
      %1535 = vmatprep.subr.mxu0 0.0
      %1536 = vmatpush1.msra.mxu0 0.0
      %1537 = vmatprep.subr.mxu0 0.0
      %1538 = vmatpush1.msra.mxu0 0.0
      %1539 = vmatprep.subr.mxu0 0.0
      %1540 = vmatpush1.msra.mxu0 0.0
      %1541 = vmatprep.subr.mxu0 0.0
      %1542 = vmatpush1.msra.mxu0 0.0
      %1543 = vmatprep.subr.mxu0 0.0
      %1544 = vmatpush1.msra.mxu0 0.0
      %1545 = vmatprep.subr.mxu0 0.0
      %1546 = vmatpush1.msra.mxu0 0.0
      %1547 = vmatprep.subr.mxu0 0.0
      %1548 = vmatpush1.msra.mxu0 0.0
      %1549 = vmatprep.mubr.f32.mxu0 0.0
      %1550 = vmatmul.mubr.f32.gmra.mrb[0].mxu0 %v1406
      %v1551 = vpop.f32.mrb[0].mxu0
      %v1552 = vadd.f32 0.0, %v1551
      %v1553 = vpop.f32.mrb[0].mxu0
      %1554 = vdwg.mxu0
      %v1555 = vadd.f32 %v1380, %v1481
      %v1556 = vadd.f32 %v1381, %v1483
      %v1557 = vadd.f32 %v1382, %v1552
      %s1558 = scalar_lea.vmem %s1, 32
      %v1559 = vld [vmem:[%s1558] sm:$0xf]
      %1560 = vrot.lane.b32.xlu0 %v171, 90
      %v1561 = vpop.permute.xlu0 %1560
      %1562 = vrot.lane.b32.xlu0 %v172, 90
      %v1563 = vpop.permute.xlu0 %1562
      %1564 = vrot.lane.b32.xlu0 %v173, 90
      %v1565 = vpop.permute.xlu0 %1564
      %1566 = vrot.lane.b32.xlu0 %v174, 90
      %v1567 = vpop.permute.xlu0 %1566
      %1568 = vrot.lane.b32.xlu0 %v175, 90
      %v1569 = vpop.permute.xlu0 %1568
      %1570 = vrot.lane.b32.xlu0 %v176, 90
      %v1571 = vpop.permute.xlu0 %1570
      %vm1572 = vcmask 736256
      %v1573 = vsel %vm1572, %v1561, %v1563
      %v1574 = vsel %vm1572, %v1563, %v1565
      %v1575 = vsel %vm1572, %v1567, %v1569
      %v1576 = vsel %vm1572, %v1569, %v1571
      %v1581 = vsel %vm206, %v1559, 0
      %v1583 = vsel %vm210, %v1575, 0
      %v1585 = vsel %vm210, %v1576, 0
      %v1587 = vsel %vm210, %v1571, 0
      %1589 = vmatprep.subr.mxu0 %v1574
      %1590 = vmatpush1.msra.mxu0 %v1573
      %1591 = vmatprep.subr.mxu0 %v1585
      %1592 = vmatpush1.msra.mxu0 %v1583
      %1593 = vmatprep.subr.mxu0 0.0
      %1594 = vmatpush1.msra.mxu0 0.0
      %1595 = vmatprep.subr.mxu0 0.0
      %1596 = vmatpush1.msra.mxu0 0.0
      %1597 = vmatprep.subr.mxu0 0.0
      %1598 = vmatpush1.msra.mxu0 0.0
      %1599 = vmatprep.subr.mxu0 0.0
      %1600 = vmatpush1.msra.mxu0 0.0
      %1601 = vmatprep.subr.mxu0 0.0
      %1602 = vmatpush1.msra.mxu0 0.0
      %1603 = vmatprep.subr.mxu0 0.0
      %1604 = vmatpush1.msra.mxu0 0.0
      %1605 = vmatprep.subr.mxu0 0.0
      %1606 = vmatpush1.msra.mxu0 0.0
      %1607 = vmatprep.subr.mxu0 0.0
      %1608 = vmatpush1.msra.mxu0 0.0
      %1609 = vmatprep.subr.mxu0 0.0
      %1610 = vmatpush1.msra.mxu0 0.0
      %1611 = vmatprep.subr.mxu0 0.0
      %1612 = vmatpush1.msra.mxu0 0.0
      %1613 = vmatprep.subr.mxu0 0.0
      %1614 = vmatpush1.msra.mxu0 0.0
      %1615 = vmatprep.subr.mxu0 0.0
      %1616 = vmatpush1.msra.mxu0 0.0
      %1617 = vmatprep.subr.mxu0 0.0
      %1618 = vmatpush1.msra.mxu0 0.0
      %1619 = vmatprep.subr.mxu0 0.0
      %1620 = vmatpush1.msra.mxu0 0.0
      %1621 = vmatprep.subr.mxu0 0.0
      %1622 = vmatpush1.msra.mxu0 0.0
      %1623 = vmatprep.subr.mxu0 0.0
      %1624 = vmatpush1.msra.mxu0 0.0
      %1625 = vmatprep.subr.mxu0 0.0
      %1626 = vmatpush1.msra.mxu0 0.0
      %1627 = vmatprep.subr.mxu0 0.0
      %1628 = vmatpush1.msra.mxu0 0.0
      %1629 = vmatprep.subr.mxu0 0.0
      %1630 = vmatpush1.msra.mxu0 0.0
      %1631 = vmatprep.subr.mxu0 0.0
      %1632 = vmatpush1.msra.mxu0 0.0
      %1633 = vmatprep.subr.mxu0 0.0
      %1634 = vmatpush1.msra.mxu0 0.0
      %1635 = vmatprep.subr.mxu0 0.0
      %1636 = vmatpush1.msra.mxu0 0.0
      %1637 = vmatprep.subr.mxu0 0.0
      %1638 = vmatpush1.msra.mxu0 0.0
      %1639 = vmatprep.subr.mxu0 0.0
      %1640 = vmatpush1.msra.mxu0 0.0
      %1641 = vmatprep.subr.mxu0 0.0
      %1642 = vmatpush1.msra.mxu0 0.0
      %1643 = vmatprep.subr.mxu0 0.0
      %1644 = vmatpush1.msra.mxu0 0.0
      %1645 = vmatprep.subr.mxu0 0.0
      %1646 = vmatpush1.msra.mxu0 0.0
      %1647 = vmatprep.subr.mxu0 0.0
      %1648 = vmatpush1.msra.mxu0 0.0
      %1649 = vmatprep.subr.mxu0 0.0
      %1650 = vmatpush1.msra.mxu0 0.0
      %1651 = vmatprep.subr.mxu0 0.0
      %1652 = vmatpush1.msra.mxu0 0.0
      %1653 = vmatprep.mubr.f32.mxu0 0.0
      %1654 = vmatmul.mubr.f32.gmra.mrb[0].mxu0 %v1581
      %v1655 = vpop.f32.mrb[0].mxu0
      %v1656 = vadd.f32 0.0, %v1655
      %v1657 = vpop.f32.mrb[0].mxu0
      %v1658 = vadd.f32 0.0, %v1657
      %1659 = vdwg.mxu0
      %1660 = vmatprep.subr.mxu0 0.0
      %1661 = vmatpush1.msra.mxu0 %v1565
      %1662 = vmatprep.subr.mxu0 0.0
      %1663 = vmatpush1.msra.mxu0 %v1587
      %1664 = vmatprep.subr.mxu0 0.0
      %1665 = vmatpush1.msra.mxu0 0.0
      %1666 = vmatprep.subr.mxu0 0.0
      %1667 = vmatpush1.msra.mxu0 0.0
      %1668 = vmatprep.subr.mxu0 0.0
      %1669 = vmatpush1.msra.mxu0 0.0
      %1670 = vmatprep.subr.mxu0 0.0
      %1671 = vmatpush1.msra.mxu0 0.0
      %1672 = vmatprep.subr.mxu0 0.0
      %1673 = vmatpush1.msra.mxu0 0.0
      %1674 = vmatprep.subr.mxu0 0.0
      %1675 = vmatpush1.msra.mxu0 0.0
      %1676 = vmatprep.subr.mxu0 0.0
      %1677 = vmatpush1.msra.mxu0 0.0
      %1678 = vmatprep.subr.mxu0 0.0
      %1679 = vmatpush1.msra.mxu0 0.0
      %1680 = vmatprep.subr.mxu0 0.0
      %1681 = vmatpush1.msra.mxu0 0.0
      %1682 = vmatprep.subr.mxu0 0.0
      %1683 = vmatpush1.msra.mxu0 0.0
      %1684 = vmatprep.subr.mxu0 0.0
      %1685 = vmatpush1.msra.mxu0 0.0
      %1686 = vmatprep.subr.mxu0 0.0
      %1687 = vmatpush1.msra.mxu0 0.0
      %1688 = vmatprep.subr.mxu0 0.0
      %1689 = vmatpush1.msra.mxu0 0.0
      %1690 = vmatprep.subr.mxu0 0.0
      %1691 = vmatpush1.msra.mxu0 0.0
      %1692 = vmatprep.subr.mxu0 0.0
      %1693 = vmatpush1.msra.mxu0 0.0
      %1694 = vmatprep.subr.mxu0 0.0
      %1695 = vmatpush1.msra.mxu0 0.0
      %1696 = vmatprep.subr.mxu0 0.0
      %1697 = vmatpush1.msra.mxu0 0.0
      %1698 = vmatprep.subr.mxu0 0.0
      %1699 = vmatpush1.msra.mxu0 0.0
      %1700 = vmatprep.subr.mxu0 0.0
      %1701 = vmatpush1.msra.mxu0 0.0
      %1702 = vmatprep.subr.mxu0 0.0
      %1703 = vmatpush1.msra.mxu0 0.0
      %1704 = vmatprep.subr.mxu0 0.0
      %1705 = vmatpush1.msra.mxu0 0.0
      %1706 = vmatprep.subr.mxu0 0.0
      %1707 = vmatpush1.msra.mxu0 0.0
      %1708 = vmatprep.subr.mxu0 0.0
      %1709 = vmatpush1.msra.mxu0 0.0
      %1710 = vmatprep.subr.mxu0 0.0
      %1711 = vmatpush1.msra.mxu0 0.0
      %1712 = vmatprep.subr.mxu0 0.0
      %1713 = vmatpush1.msra.mxu0 0.0
      %1714 = vmatprep.subr.mxu0 0.0
      %1715 = vmatpush1.msra.mxu0 0.0
      %1716 = vmatprep.subr.mxu0 0.0
      %1717 = vmatpush1.msra.mxu0 0.0
      %1718 = vmatprep.subr.mxu0 0.0
      %1719 = vmatpush1.msra.mxu0 0.0
      %1720 = vmatprep.subr.mxu0 0.0
      %1721 = vmatpush1.msra.mxu0 0.0
      %1722 = vmatprep.subr.mxu0 0.0
      %1723 = vmatpush1.msra.mxu0 0.0
      %1724 = vmatprep.mubr.f32.mxu0 0.0
      %1725 = vmatmul.mubr.f32.gmra.mrb[0].mxu0 %v1581
      %v1726 = vpop.f32.mrb[0].mxu0
      %v1727 = vadd.f32 0.0, %v1726
      %v1728 = vpop.f32.mrb[0].mxu0
      %1729 = vdwg.mxu0
      %v1730 = vadd.f32 %v1555, %v1656
      %v1731 = vadd.f32 %v1556, %v1658
      %v1732 = vadd.f32 %v1557, %v1727
      %v1733 = vld [vmem:[%s2] sm:$0xf]
      %1735 = vset.pattern.permute.xlu0 0
      %1736 = vperm.xlu0 %1735, %v1733
      %v1737 = vpop.permute.xlu0 %1736
      %v1739 = vadd.f32 %v1730, %v1737
      %v1740 = vadd.f32 %v1731, %v1737
      %v1741 = vadd.f32 %v1732, %v1737
      %v1742 = vmin.f32 %v1739, 0.0
      %v1743 = vmin.f32 %v1740, 0.0
      %v1744 = vmin.f32 %v1741, 0.0
      %v1745 = vmul.f32 %v1742, 1.442695
      %v1746 = vpow.pop %v1745
      %v1747 = vmul.f32 %v1743, 1.442695
      %v1748 = vpow.pop %v1747
      %v1749 = vmul.f32 %v1744, 1.442695
      %v1750 = vpow.pop %v1749
      %v1751 = vsub.f32 %v1746, 1.0
      %v1752 = vsub.f32 %v1748, 1.0
      %v1753 = vsub.f32 %v1750, 1.0
      %v1754 = vmul.f32 %v1751, 1.6732632
      %v1755 = vmul.f32 %v1752, 1.6732632
      %v1756 = vmul.f32 %v1753, 1.6732632
      %vm1757 = vcmp.gt.f32.partialorder %v1739, 0.0
      %vm1758 = vcmp.gt.f32.partialorder %v1740, 0.0
      %vm1759 = vcmp.gt.f32.partialorder %v1741, 0.0
      %v1760 = vsel %vm1757, %v1739, %v1754
      %v1761 = vsel %vm1758, %v1740, %v1755
      %v1762 = vsel %vm1759, %v1741, %v1756
      %v1763 = vmul.f32 %v1760, 1.050701
      %v1764 = vmul.f32 %v1761, 1.050701
      %v1765 = vmul.f32 %v1762, 1.050701
      %v1768 = vcombine.low %v1763, %v1764
      %1770 = vst [vmem:[%s170] sm:$0xff] %v1768
      %vm1771 = vcmask 551936
      %1772 = vst.msk [vmem:[%s170 + $0x8] sm:$0xf] %vm1771, %v1765
      %p1773 = scmp.lt.s32.totalorder %s14, 1
      %s1774 = scalar_select %p1773, %s14, 1
      %s1775 = smul.addr %s1774, 3
      %s1776 = smul.addr %s1775, 4
      %s1777 = scalar_lea.vmem %s3, %s1776
      // Predicated region
      $region33: #{sadenseblock_forward.6} parent=31 // pred_check
        %p1778 = pneg %p100
      $region34: #{sadenseblock_forward.6} parent=31 // pred_check_branch
        %1780 = sbr.rel (%p1778) target = $region36
      $region35: #{sadenseblock_forward.6} parent=31 // pred_region
        _
      $region36: #{sadenseblock_forward.6} parent=31 // pred_fallthru
        _
    $region32: #{sadenseblock_forward.6} parent=5 // pred_fallthru
      _
    %p1781 = scmp.le.s32.totalorder 2, %s9
    // Predicated region
    $region37: #{sadenseblock_forward.6} parent=5 // pred_check
      %p1782 = pneg %p1781
    $region38: #{sadenseblock_forward.6} parent=5 // pred_check_branch
      %1784 = sbr.rel (%p1782) target = $region40
    $region39: #{sadenseblock_forward.6} parent=5 // pred_region
      %s1785 = ssub.s32 %s9, 2
      // Predicated region
      $region41: #{sadenseblock_forward.6} parent=39 // pred_check
        %p1786 = pneg %p106
      $region42: #{sadenseblock_forward.6} parent=39 // pred_check_branch
        %1788 = sbr.rel (%p1786) target = $region44
      $region43: #{sadenseblock_forward.6} parent=39 // pred_region
        %p1789 = scmp.lt.s32.totalorder %s15, 1
        %s1790 = scalar_select %p1789, %s15, 1
        %s1791 = smul.addr %s1790, 3
        %s1792 = smul.addr %s1791, 4
        %s1793 = scalar_lea.vmem %s3, %s1792
      $region44: #{sadenseblock_forward.6} parent=39 // pred_fallthru
        _
    $region40: #{sadenseblock_forward.6} parent=5 // pred_fallthru
      _
  $region6: #{sadenseblock_forward.6} parent=0 // loop_footer
    %s13 = sadd.s32 1, %s9
  $region7: #{sadenseblock_forward.6} parent=0 // loop_footer_branch
    %8 = sbr.rel target = $region3
  $region8: #{sadenseblock_forward.6} parent=0 // loop_exit
    _

</llo_original>
